<compile_context>
chip_gen: v6e
topology: v6e:2x2x1
jax: 0.10.0
libtpu: 0.0.40
codegen_flags: <defaults>
</compile_context>

<pallas_src>
import functools

import jax
import jax.numpy as jnp
import numpy as np
from jax.experimental import pallas as pl
from jax.experimental.pallas import tpu as pltpu


def _resnet_block_kernel(x_ref, w1_ref, b1_ref, w2_ref, b2_ref, o_ref,
                         xp_ref, h_ref, *, tile_h):
    # x_ref : (1, H, W, C)   input for this batch element (f32 or bf16)
    # w*_ref: (3, 3C, C)     bf16 weights, kx taps fused into contraction dim
    # b*_ref: (1, C)         f32 bias
    # o_ref : (1, H, W, C)
    # xp_ref: (H+2, W+2, C)  bf16 VMEM scratch: reflection-padded activations
    # h_ref : (H, W, C)      f32 VMEM scratch: raw (pre-norm) conv output
    _, H, W, C = o_ref.shape
    inv_n = 1.0 / float(H * W)

    def reflect_pad_write(src_bf16):
        # ReflectionPad2d(1): out[0]=in[1], out[-1]=in[-2] along each axis.
        # Corners come out right because the top/bottom rows are copied from
        # rows that are already horizontally padded.
        xp_ref[1:H + 1, 1:W + 1, :] = src_bf16                      # interior
        xp_ref[1:H + 1, 0:1, :] = src_bf16[:, 1:2, :]               # left col
        xp_ref[1:H + 1, W + 1:W + 2, :] = src_bf16[:, W - 2:W - 1, :]  # right
        xp_ref[0:1, :, :] = xp_ref[2:3, :, :]                       # top row
        xp_ref[H + 1:H + 2, :, :] = xp_ref[H - 1:H, :, :]           # bottom

    def conv3x3(w_ref, b_ref):
        """Row-tiled 3x3 conv over the padded map in xp_ref.

        Writes the raw (bias-added) f32 output to h_ref and returns one-pass
        instance-norm statistics (mean, rsqrt(var + eps)), both (1, C) f32."""
        wk = [w_ref[k] for k in range(3)]             # 3 x (3C, C) bf16, hoisted
        bias = b_ref[...].astype(jnp.float32)         # (1, C)
        s = jnp.zeros((1, C), jnp.float32)
        ss = jnp.zeros((1, C), jnp.float32)
        for r0 in range(0, H, tile_h):                # static unroll over rows
            # kx (sublane) shifts fused into the lane axis once per tile:
            # (tile_h+2, W, 3C) bf16 slab; contraction dim is 3C.
            slab = jnp.concatenate(
                [xp_ref[r0:r0 + tile_h + 2, kx:kx + W, :] for kx in range(3)],
                axis=-1)
            acc = jnp.zeros((tile_h * W, C), jnp.float32)
            for ky in range(3):
                patch = slab[ky:ky + tile_h].reshape(tile_h * W, 3 * C)
                acc = acc + jnp.dot(patch, wk[ky],        # bf16 x bf16 on MXU
                                    preferred_element_type=jnp.float32)
            acc = acc + bias
            # One-pass IN statistics while the accumulator is live (f32).
            s = s + jnp.sum(acc, axis=0, keepdims=True)
            ss = ss + jnp.sum(acc * acc, axis=0, keepdims=True)
            h_ref[r0:r0 + tile_h, :, :] = acc.reshape(tile_h, W, C)
        mean = s * inv_n
        var = jnp.maximum(ss * inv_n - mean * mean, 0.0)
        return mean, jax.lax.rsqrt(var + 1e-5)

    x = x_ref[0]                                       # (H, W, C), loaded once
    reflect_pad_write(x.astype(jnp.bfloat16))

    mean1, rstd1 = conv3x3(w1_ref, b1_ref)
    # IN + ReLU fused into the padded-scratch write feeding the second conv.
    reflect_pad_write(
        jnp.maximum((h_ref[...] - mean1) * rstd1, 0.0).astype(jnp.bfloat16))

    mean2, rstd2 = conv3x3(w2_ref, b2_ref)
    # Residual add reuses the already-loaded x (no second x_ref read).
    o_ref[0] = (x.astype(jnp.float32)
                + (h_ref[...] - mean2) * rstd2).astype(o_ref.dtype)


def _vmem_limit_bytes():
    # ~0.75x physical VMEM, capped at 96 MiB: 96 MiB on 128-MiB chips
    # (v5e/v6e), 48 MiB on v7x (64 MiB physical).  Conservative fallback.
    try:
        cap = int(pltpu.get_tpu_info().vmem_capacity_bytes)
    except Exception:  # any query failure -> safe-on-all-chips default
        cap = 64 * 1024 * 1024
    return min(cap * 3 // 4, 96 * 1024 * 1024)


def _pick_tile_h(h):
    for th in (8, 4, 2, 1):
        if h % th == 0:
            return th
    return h


def resnet_block_nhwc(x_nhwc, w1, b1, w2, b2):
    """x_nhwc: (N,H,W,C); w*: (3,3,C,C) as (ky,kx,Cin,Cout); b*: (C,).

    NHWC entry point (f32 or bf16 activations) so stacked residual blocks can
    skip per-block NCHW<->NHWC transposes.  Returns (N,H,W,C) in x's dtype."""
    N, H, W, C = x_nhwc.shape
    tile_h = _pick_tile_h(H)

    # Fuse the 3 kx taps into the contraction dim: (ky, kx*Cin, Cout) bf16.
    w1_f = w1.astype(jnp.bfloat16).reshape(3, 3 * C, C)
    w2_f = w2.astype(jnp.bfloat16).reshape(3, 3 * C, C)
    b1_2d = b1.reshape(1, C).astype(jnp.float32)
    b2_2d = b2.reshape(1, C).astype(jnp.float32)

    itemsize = np.dtype(x_nhwc.dtype).itemsize
    flops = N * 2 * (2 * H * W * 9 * C * C)               # two 3x3 convs
    bytes_accessed = (2 * N * H * W * C * itemsize        # in + out
                      + 2 * (9 * C * C) * 2               # bf16 weights
                      + 2 * C * 4)                        # biases

    def weight_spec(shape):
        # Grid-invariant across N: single-buffer to save VMEM (no pipelining
        # benefit from double-buffering a constant block).
        return pl.BlockSpec(shape, lambda n: (0,) * len(shape),
                            pipeline_mode=pl.Buffered(1))

    return pl.pallas_call(
        functools.partial(_resnet_block_kernel, tile_h=tile_h),
        out_shape=jax.ShapeDtypeStruct((N, H, W, C), x_nhwc.dtype),
        grid_spec=pltpu.PrefetchScalarGridSpec(
            num_scalar_prefetch=0,
            grid=(N,),
            in_specs=[
                pl.BlockSpec((1, H, W, C), lambda n: (n, 0, 0, 0)),
                weight_spec((3, 3 * C, C)),
                weight_spec((1, C)),
                weight_spec((3, 3 * C, C)),
                weight_spec((1, C)),
            ],
            out_specs=pl.BlockSpec((1, H, W, C), lambda n: (n, 0, 0, 0)),
            scratch_shapes=[
                pltpu.VMEM((H + 2, W + 2, C), jnp.bfloat16),   # padded halo
                pltpu.VMEM((H, W, C), jnp.float32),            # conv output
            ],
        ),
        compiler_params=pltpu.CompilerParams(
            dimension_semantics=("parallel",),
            vmem_limit_bytes=_vmem_limit_bytes()),
        cost_estimate=pl.CostEstimate(
            flops=flops, transcendentals=0, bytes_accessed=bytes_accessed),
    )(x_nhwc, w1_f, b1_2d, w2_f, b2_2d)


def resnet_block(x_nchw, w1, b1, w2, b2):
    """PyTorch-layout wrapper: x_nchw (N, C, H, W) -> (N, C, H, W)."""
    x_nhwc = jnp.transpose(x_nchw, (0, 2, 3, 1))
    out_nhwc = resnet_block_nhwc(x_nhwc, w1, b1, w2, b2)
    return jnp.transpose(out_nhwc, (0, 3, 1, 2))


def resnet_block_ref(x, w1, b1, w2, b2):
    """Pure-JAX f32 reference (NCHW), mirrors the PyTorch module semantics."""
    def conv(y, w, b):
        w_oihw = jnp.transpose(w, (3, 2, 0, 1))            # (ky,kx,i,o)->OIHW
        y = jax.lax.conv_general_dilated(
            y, w_oihw, (1, 1), "VALID",
            dimension_numbers=("NCHW", "OIHW", "NCHW"))
        return y + b.reshape(1, -1, 1, 1)

    def inorm(y):
        m = y.mean(axis=(2, 3), keepdims=True)
        v = ((y - m) ** 2).mean(axis=(2, 3), keepdims=True)
        return (y - m) / jnp.sqrt(v + 1e-5)

    def rpad(y):
        return jnp.pad(y, ((0, 0), (0, 0), (1, 1), (1, 1)), mode="reflect")

    h = conv(rpad(x), w1, b1)
    h = jnp.maximum(inorm(h), 0.0)
    h = conv(rpad(h), w2, b2)
    h = inorm(h)
    return x + h


if __name__ == "__main__":
    N, C, H, W = 2, 4, 16, 16  # dim = C (toy sizes; production is C=256, H=W=64)

    key = jax.random.PRNGKey(0)
    kx, kw1, kb1, kw2, kb2 = jax.random.split(key, 5)

    x = jax.random.normal(kx, (N, C, H, W), dtype=jnp.float32)
    # PyTorch weight (C, C, 3, 3) stored directly as (ky, kx, Cin, Cout).
    fan_in = C * 3 * 3
    bound = 1.0 / np.sqrt(fan_in)
    w1 = jax.random.uniform(kw1, (3, 3, C, C), jnp.float32, -bound, bound)
    b1 = jax.random.uniform(kb1, (C,), jnp.float32, -bound, bound)
    w2 = jax.random.uniform(kw2, (3, 3, C, C), jnp.float32, -bound, bound)
    b2 = jax.random.uniform(kb2, (C,), jnp.float32, -bound, bound)

    out = jax.block_until_ready(resnet_block(x, w1, b1, w2, b2))
    ref = jax.block_until_ready(resnet_block_ref(x, w1, b1, w2, b2))

    assert out.shape == (N, C, H, W)
    # bf16 MXU operands (f32 accumulation) -> looser tolerance vs f32 reference.
    np.testing.assert_allclose(np.asarray(out), np.asarray(ref),
                               atol=3e-2, rtol=3e-2)
    print("KERNEL_OK")
</pallas_src>

<mosaic_0001>
module attributes {stable_mosaic.version = 11 : i64} {
  func.func @_resnet_block_kernel(%arg0: i32, %arg1: memref<1x16x16x4xf32, #tpu.memory_space<vmem>>, %arg2: memref<3x12x4xbf16, #tpu.memory_space<vmem>>, %arg3: memref<1x4xf32, #tpu.memory_space<vmem>>, %arg4: memref<3x12x4xbf16, #tpu.memory_space<vmem>>, %arg5: memref<1x4xf32, #tpu.memory_space<vmem>>, %arg6: memref<1x16x16x4xf32, #tpu.memory_space<vmem>>, %arg7: memref<18x18x4xbf16, #tpu.memory_space<vmem>>, %arg8: memref<16x16x4xf32, #tpu.memory_space<vmem>>) attributes {dimension_semantics = [#tpu.dimension_semantics<parallel>], iteration_bounds = array<i64: 2>, scalar_prefetch = 0 : i64, scratch_operands = 2 : i64, tpu.core_type = #tpu.core_type<tc>, window_params = [{transform_indices = @transform_0, window_bounds = array<i64: 1, 16, 16, 4>}, {pipeline_mode = #tpu.pipeline_mode<synchronous>, transform_indices = @transform_1, window_bounds = array<i64: 3, 12, 4>}, {pipeline_mode = #tpu.pipeline_mode<synchronous>, transform_indices = @transform_2, window_bounds = array<i64: 1, 4>}, {pipeline_mode = #tpu.pipeline_mode<synchronous>, transform_indices = @transform_3, window_bounds = array<i64: 3, 12, 4>}, {pipeline_mode = #tpu.pipeline_mode<synchronous>, transform_indices = @transform_4, window_bounds = array<i64: 1, 4>}, {transform_indices = @transform_5, window_bounds = array<i64: 1, 16, 16, 4>}]} {
    %c0 = arith.constant 0 : index
    %c0_0 = arith.constant 0 : index
    %c0_1 = arith.constant 0 : index
    %c0_2 = arith.constant 0 : index
    %0 = vector.load %arg1[%c0, %c0_0, %c0_1, %c0_2] : memref<1x16x16x4xf32, #tpu.memory_space<vmem>>, vector<1x16x16x4xf32>
    %1 = vector.shape_cast %0 : vector<1x16x16x4xf32> to vector<16x16x4xf32>
    %2 = arith.truncf %1 : vector<16x16x4xf32> to vector<16x16x4xbf16>
    %c1 = arith.constant 1 : index
    %c1_3 = arith.constant 1 : index
    %c0_4 = arith.constant 0 : index
    %3 = vector.load %arg7[%c1, %c1_3, %c0_4] : memref<18x18x4xbf16, #tpu.memory_space<vmem>>, vector<16x16x4xbf16>
    tpu.vector_store %arg7[%c1, %c1_3, %c0_4], %2 {strides = array<i32>} : memref<18x18x4xbf16, #tpu.memory_space<vmem>>, vector<16x16x4xbf16>,
    %4 = vector.extract_strided_slice %2 {offsets = [0, 1, 0], sizes = [16, 1, 4], strides = [1, 1, 1]} : vector<16x16x4xbf16> to vector<16x1x4xbf16>
    %c1_5 = arith.constant 1 : index
    %c0_6 = arith.constant 0 : index
    %c0_7 = arith.constant 0 : index
    %5 = vector.load %arg7[%c1_5, %c0_6, %c0_7] : memref<18x18x4xbf16, #tpu.memory_space<vmem>>, vector<16x1x4xbf16>
    tpu.vector_store %arg7[%c1_5, %c0_6, %c0_7], %4 {strides = array<i32>} : memref<18x18x4xbf16, #tpu.memory_space<vmem>>, vector<16x1x4xbf16>,
    %6 = vector.extract_strided_slice %2 {offsets = [0, 14, 0], sizes = [16, 1, 4], strides = [1, 1, 1]} : vector<16x16x4xbf16> to vector<16x1x4xbf16>
    %c1_8 = arith.constant 1 : index
    %c17 = arith.constant 17 : index
    %c0_9 = arith.constant 0 : index
    %7 = vector.load %arg7[%c1_8, %c17, %c0_9] : memref<18x18x4xbf16, #tpu.memory_space<vmem>>, vector<16x1x4xbf16>
    tpu.vector_store %arg7[%c1_8, %c17, %c0_9], %6 {strides = array<i32>} : memref<18x18x4xbf16, #tpu.memory_space<vmem>>, vector<16x1x4xbf16>,
    %c2 = arith.constant 2 : index
    %c0_10 = arith.constant 0 : index
    %c0_11 = arith.constant 0 : index
    %8 = vector.load %arg7[%c2, %c0_10, %c0_11] : memref<18x18x4xbf16, #tpu.memory_space<vmem>>, vector<1x18x4xbf16>
    %c0_12 = arith.constant 0 : index
    %c0_13 = arith.constant 0 : index
    %c0_14 = arith.constant 0 : index
    %9 = vector.load %arg7[%c0_12, %c0_13, %c0_14] : memref<18x18x4xbf16, #tpu.memory_space<vmem>>, vector<1x18x4xbf16>
    tpu.vector_store %arg7[%c0_12, %c0_13, %c0_14], %8 {strides = array<i32>} : memref<18x18x4xbf16, #tpu.memory_space<vmem>>, vector<1x18x4xbf16>,
    %c15 = arith.constant 15 : index
    %c0_15 = arith.constant 0 : index
    %c0_16 = arith.constant 0 : index
    %10 = vector.load %arg7[%c15, %c0_15, %c0_16] : memref<18x18x4xbf16, #tpu.memory_space<vmem>>, vector<1x18x4xbf16>
    %c17_17 = arith.constant 17 : index
    %c0_18 = arith.constant 0 : index
    %c0_19 = arith.constant 0 : index
    %11 = vector.load %arg7[%c17_17, %c0_18, %c0_19] : memref<18x18x4xbf16, #tpu.memory_space<vmem>>, vector<1x18x4xbf16>
    tpu.vector_store %arg7[%c17_17, %c0_18, %c0_19], %10 {strides = array<i32>} : memref<18x18x4xbf16, #tpu.memory_space<vmem>>, vector<1x18x4xbf16>,
    %c0_20 = arith.constant 0 : index
    %c0_21 = arith.constant 0 : index
    %c0_22 = arith.constant 0 : index
    %12 = vector.load %arg2[%c0_20, %c0_21, %c0_22] : memref<3x12x4xbf16, #tpu.memory_space<vmem>>, vector<1x12x4xbf16>
    %13 = vector.shape_cast %12 : vector<1x12x4xbf16> to vector<12x4xbf16>
    %c1_23 = arith.constant 1 : index
    %c0_24 = arith.constant 0 : index
    %c0_25 = arith.constant 0 : index
    %14 = vector.load %arg2[%c1_23, %c0_24, %c0_25] : memref<3x12x4xbf16, #tpu.memory_space<vmem>>, vector<1x12x4xbf16>
    %15 = vector.shape_cast %14 : vector<1x12x4xbf16> to vector<12x4xbf16>
    %c2_26 = arith.constant 2 : index
    %c0_27 = arith.constant 0 : index
    %c0_28 = arith.constant 0 : index
    %16 = vector.load %arg2[%c2_26, %c0_27, %c0_28] : memref<3x12x4xbf16, #tpu.memory_space<vmem>>, vector<1x12x4xbf16>
    %17 = vector.shape_cast %16 : vector<1x12x4xbf16> to vector<12x4xbf16>
    %c0_29 = arith.constant 0 : index
    %c0_30 = arith.constant 0 : index
    %18 = vector.load %arg3[%c0_29, %c0_30] : memref<1x4xf32, #tpu.memory_space<vmem>>, vector<1x4xf32>
    %cst = arith.constant 0.000000e+00 : f32
    %19 = vector.broadcast %cst : f32 to vector<1x4xf32>
    %cst_31 = arith.constant 0.000000e+00 : f32
    %20 = vector.broadcast %cst_31 : f32 to vector<1x4xf32>
    %c0_32 = arith.constant 0 : index
    %c0_33 = arith.constant 0 : index
    %c0_34 = arith.constant 0 : index
    %21 = vector.load %arg7[%c0_32, %c0_33, %c0_34] : memref<18x18x4xbf16, #tpu.memory_space<vmem>>, vector<10x16x4xbf16>
    %c0_35 = arith.constant 0 : index
    %c1_36 = arith.constant 1 : index
    %c0_37 = arith.constant 0 : index
    %22 = vector.load %arg7[%c0_35, %c1_36, %c0_37] : memref<18x18x4xbf16, #tpu.memory_space<vmem>>, vector<10x16x4xbf16>
    %c0_38 = arith.constant 0 : index
    %c2_39 = arith.constant 2 : index
    %c0_40 = arith.constant 0 : index
    %23 = vector.load %arg7[%c0_38, %c2_39, %c0_40] : memref<18x18x4xbf16, #tpu.memory_space<vmem>>, vector<10x16x4xbf16>
    %24 = tpu.concatenate %21, %22, %23 in 2 : vector<10x16x4xbf16>, vector<10x16x4xbf16>, vector<10x16x4xbf16> -> vector<10x16x12xbf16>
    %cst_41 = arith.constant 0.000000e+00 : f32
    %25 = vector.broadcast %cst_41 : f32 to vector<128x4xf32>
    %26 = vector.extract_strided_slice %24 {offsets = [0, 0, 0], sizes = [8, 16, 12], strides = [1, 1, 1]} : vector<10x16x12xbf16> to vector<8x16x12xbf16>
    %27 = vector.shape_cast %26 : vector<8x16x12xbf16> to vector<128x12xbf16>
    %cst_42 = arith.constant dense<0.000000e+00> : vector<128x4xf32>
    %28 = tpu.matmul %27, %13, %cst_42 {dimension_numbers = #tpu.dot_dimension_numbers<[1], [0], [0], [1], [0, 0, 1, 1], [], []>} : vector<128x12xbf16>, vector<12x4xbf16>, vector<128x4xf32> -> vector<128x4xf32>
    %29 = arith.addf %25, %28 : vector<128x4xf32>
    %30 = vector.extract_strided_slice %24 {offsets = [1, 0, 0], sizes = [8, 16, 12], strides = [1, 1, 1]} : vector<10x16x12xbf16> to vector<8x16x12xbf16>
    %31 = vector.shape_cast %30 : vector<8x16x12xbf16> to vector<128x12xbf16>
    %cst_43 = arith.constant dense<0.000000e+00> : vector<128x4xf32>
    %32 = tpu.matmul %31, %15, %cst_43 {dimension_numbers = #tpu.dot_dimension_numbers<[1], [0], [0], [1], [0, 0, 1, 1], [], []>} : vector<128x12xbf16>, vector<12x4xbf16>, vector<128x4xf32> -> vector<128x4xf32>
    %33 = arith.addf %29, %32 : vector<128x4xf32>
    %34 = vector.extract_strided_slice %24 {offsets = [2, 0, 0], sizes = [8, 16, 12], strides = [1, 1, 1]} : vector<10x16x12xbf16> to vector<8x16x12xbf16>
    %35 = vector.shape_cast %34 : vector<8x16x12xbf16> to vector<128x12xbf16>
    %cst_44 = arith.constant dense<0.000000e+00> : vector<128x4xf32>
    %36 = tpu.matmul %35, %17, %cst_44 {dimension_numbers = #tpu.dot_dimension_numbers<[1], [0], [0], [1], [0, 0, 1, 1], [], []>} : vector<128x12xbf16>, vector<12x4xbf16>, vector<128x4xf32> -> vector<128x4xf32>
    %37 = arith.addf %33, %36 : vector<128x4xf32>
    %38 = vector.broadcast %18 : vector<1x4xf32> to vector<128x4xf32>
    %39 = arith.addf %37, %38 : vector<128x4xf32>
    %cst_45 = arith.constant dense<0.000000e+00> : vector<4xf32>
    %40 = vector.multi_reduction <add>, %39, %cst_45 [0] : vector<128x4xf32> to vector<4xf32>
    %41 = vector.shape_cast %40 : vector<4xf32> to vector<1x4xf32>
    %42 = arith.addf %19, %41 : vector<1x4xf32>
    %43 = arith.mulf %39, %39 : vector<128x4xf32>
    %cst_46 = arith.constant dense<0.000000e+00> : vector<4xf32>
    %44 = vector.multi_reduction <add>, %43, %cst_46 [0] : vector<128x4xf32> to vector<4xf32>
    %45 = vector.shape_cast %44 : vector<4xf32> to vector<1x4xf32>
    %46 = arith.addf %20, %45 : vector<1x4xf32>
    %47 = vector.shape_cast %39 : vector<128x4xf32> to vector<8x16x4xf32>
    %c0_47 = arith.constant 0 : index
    %c0_48 = arith.constant 0 : index
    %c0_49 = arith.constant 0 : index
    %48 = vector.load %arg8[%c0_47, %c0_48, %c0_49] : memref<16x16x4xf32, #tpu.memory_space<vmem>>, vector<8x16x4xf32>
    tpu.vector_store %arg8[%c0_47, %c0_48, %c0_49], %47 {strides = array<i32>} : memref<16x16x4xf32, #tpu.memory_space<vmem>>, vector<8x16x4xf32>,
    %c8 = arith.constant 8 : index
    %c0_50 = arith.constant 0 : index
    %c0_51 = arith.constant 0 : index
    %49 = vector.load %arg7[%c8, %c0_50, %c0_51] : memref<18x18x4xbf16, #tpu.memory_space<vmem>>, vector<10x16x4xbf16>
    %c8_52 = arith.constant 8 : index
    %c1_53 = arith.constant 1 : index
    %c0_54 = arith.constant 0 : index
    %50 = vector.load %arg7[%c8_52, %c1_53, %c0_54] : memref<18x18x4xbf16, #tpu.memory_space<vmem>>, vector<10x16x4xbf16>
    %c8_55 = arith.constant 8 : index
    %c2_56 = arith.constant 2 : index
    %c0_57 = arith.constant 0 : index
    %51 = vector.load %arg7[%c8_55, %c2_56, %c0_57] : memref<18x18x4xbf16, #tpu.memory_space<vmem>>, vector<10x16x4xbf16>
    %52 = tpu.concatenate %49, %50, %51 in 2 : vector<10x16x4xbf16>, vector<10x16x4xbf16>, vector<10x16x4xbf16> -> vector<10x16x12xbf16>
    %cst_58 = arith.constant 0.000000e+00 : f32
    %53 = vector.broadcast %cst_58 : f32 to vector<128x4xf32>
    %54 = vector.extract_strided_slice %52 {offsets = [0, 0, 0], sizes = [8, 16, 12], strides = [1, 1, 1]} : vector<10x16x12xbf16> to vector<8x16x12xbf16>
    %55 = vector.shape_cast %54 : vector<8x16x12xbf16> to vector<128x12xbf16>
    %cst_59 = arith.constant dense<0.000000e+00> : vector<128x4xf32>
    %56 = tpu.matmul %55, %13, %cst_59 {dimension_numbers = #tpu.dot_dimension_numbers<[1], [0], [0], [1], [0, 0, 1, 1], [], []>} : vector<128x12xbf16>, vector<12x4xbf16>, vector<128x4xf32> -> vector<128x4xf32>
    %57 = arith.addf %53, %56 : vector<128x4xf32>
    %58 = vector.extract_strided_slice %52 {offsets = [1, 0, 0], sizes = [8, 16, 12], strides = [1, 1, 1]} : vector<10x16x12xbf16> to vector<8x16x12xbf16>
    %59 = vector.shape_cast %58 : vector<8x16x12xbf16> to vector<128x12xbf16>
    %cst_60 = arith.constant dense<0.000000e+00> : vector<128x4xf32>
    %60 = tpu.matmul %59, %15, %cst_60 {dimension_numbers = #tpu.dot_dimension_numbers<[1], [0], [0], [1], [0, 0, 1, 1], [], []>} : vector<128x12xbf16>, vector<12x4xbf16>, vector<128x4xf32> -> vector<128x4xf32>
    %61 = arith.addf %57, %60 : vector<128x4xf32>
    %62 = vector.extract_strided_slice %52 {offsets = [2, 0, 0], sizes = [8, 16, 12], strides = [1, 1, 1]} : vector<10x16x12xbf16> to vector<8x16x12xbf16>
    %63 = vector.shape_cast %62 : vector<8x16x12xbf16> to vector<128x12xbf16>
    %cst_61 = arith.constant dense<0.000000e+00> : vector<128x4xf32>
    %64 = tpu.matmul %63, %17, %cst_61 {dimension_numbers = #tpu.dot_dimension_numbers<[1], [0], [0], [1], [0, 0, 1, 1], [], []>} : vector<128x12xbf16>, vector<12x4xbf16>, vector<128x4xf32> -> vector<128x4xf32>
    %65 = arith.addf %61, %64 : vector<128x4xf32>
    %66 = vector.broadcast %18 : vector<1x4xf32> to vector<128x4xf32>
    %67 = arith.addf %65, %66 : vector<128x4xf32>
    %cst_62 = arith.constant dense<0.000000e+00> : vector<4xf32>
    %68 = vector.multi_reduction <add>, %67, %cst_62 [0] : vector<128x4xf32> to vector<4xf32>
    %69 = vector.shape_cast %68 : vector<4xf32> to vector<1x4xf32>
    %70 = arith.addf %42, %69 : vector<1x4xf32>
    %71 = arith.mulf %67, %67 : vector<128x4xf32>
    %cst_63 = arith.constant dense<0.000000e+00> : vector<4xf32>
    %72 = vector.multi_reduction <add>, %71, %cst_63 [0] : vector<128x4xf32> to vector<4xf32>
    %73 = vector.shape_cast %72 : vector<4xf32> to vector<1x4xf32>
    %74 = arith.addf %46, %73 : vector<1x4xf32>
    %75 = vector.shape_cast %67 : vector<128x4xf32> to vector<8x16x4xf32>
    %c8_64 = arith.constant 8 : index
    %c0_65 = arith.constant 0 : index
    %c0_66 = arith.constant 0 : index
    %76 = vector.load %arg8[%c8_64, %c0_65, %c0_66] : memref<16x16x4xf32, #tpu.memory_space<vmem>>, vector<8x16x4xf32>
    tpu.vector_store %arg8[%c8_64, %c0_65, %c0_66], %75 {strides = array<i32>} : memref<16x16x4xf32, #tpu.memory_space<vmem>>, vector<8x16x4xf32>,
    %cst_67 = arith.constant 3.906250e-03 : f32
    %77 = vector.broadcast %cst_67 : f32 to vector<1x4xf32>
    %78 = arith.mulf %70, %77 : vector<1x4xf32>
    %cst_68 = arith.constant 3.906250e-03 : f32
    %79 = vector.broadcast %cst_68 : f32 to vector<1x4xf32>
    %80 = arith.mulf %74, %79 : vector<1x4xf32>
    %81 = arith.mulf %78, %78 : vector<1x4xf32>
    %82 = arith.subf %80, %81 : vector<1x4xf32>
    %cst_69 = arith.constant 0.000000e+00 : f32
    %83 = vector.broadcast %cst_69 : f32 to vector<1x4xf32>
    %84 = arith.maximumf %82, %83 : vector<1x4xf32>
    %cst_70 = arith.constant 9.99999974E-6 : f32
    %85 = vector.broadcast %cst_70 : f32 to vector<1x4xf32>
    %86 = arith.addf %84, %85 : vector<1x4xf32>
    %87 = math.rsqrt %86 : vector<1x4xf32>
    %c0_71 = arith.constant 0 : index
    %c0_72 = arith.constant 0 : index
    %c0_73 = arith.constant 0 : index
    %88 = vector.load %arg8[%c0_71, %c0_72, %c0_73] : memref<16x16x4xf32, #tpu.memory_space<vmem>>, vector<16x16x4xf32>
    %89 = vector.shape_cast %78 : vector<1x4xf32> to vector<1x1x4xf32>
    %90 = vector.broadcast %89 : vector<1x1x4xf32> to vector<16x16x4xf32>
    %91 = arith.subf %88, %90 : vector<16x16x4xf32>
    %92 = vector.shape_cast %87 : vector<1x4xf32> to vector<1x1x4xf32>
    %93 = vector.broadcast %92 : vector<1x1x4xf32> to vector<16x16x4xf32>
    %94 = arith.mulf %91, %93 : vector<16x16x4xf32>
    %cst_74 = arith.constant 0.000000e+00 : f32
    %95 = vector.broadcast %cst_74 : f32 to vector<16x16x4xf32>
    %96 = arith.maximumf %94, %95 : vector<16x16x4xf32>
    %97 = arith.truncf %96 : vector<16x16x4xf32> to vector<16x16x4xbf16>
    %c1_75 = arith.constant 1 : index
    %c1_76 = arith.constant 1 : index
    %c0_77 = arith.constant 0 : index
    %98 = vector.load %arg7[%c1_75, %c1_76, %c0_77] : memref<18x18x4xbf16, #tpu.memory_space<vmem>>, vector<16x16x4xbf16>
    tpu.vector_store %arg7[%c1_75, %c1_76, %c0_77], %97 {strides = array<i32>} : memref<18x18x4xbf16, #tpu.memory_space<vmem>>, vector<16x16x4xbf16>,
    %99 = vector.extract_strided_slice %97 {offsets = [0, 1, 0], sizes = [16, 1, 4], strides = [1, 1, 1]} : vector<16x16x4xbf16> to vector<16x1x4xbf16>
    %c1_78 = arith.constant 1 : index
    %c0_79 = arith.constant 0 : index
    %c0_80 = arith.constant 0 : index
    %100 = vector.load %arg7[%c1_78, %c0_79, %c0_80] : memref<18x18x4xbf16, #tpu.memory_space<vmem>>, vector<16x1x4xbf16>
    tpu.vector_store %arg7[%c1_78, %c0_79, %c0_80], %99 {strides = array<i32>} : memref<18x18x4xbf16, #tpu.memory_space<vmem>>, vector<16x1x4xbf16>,
    %101 = vector.extract_strided_slice %97 {offsets = [0, 14, 0], sizes = [16, 1, 4], strides = [1, 1, 1]} : vector<16x16x4xbf16> to vector<16x1x4xbf16>
    %c1_81 = arith.constant 1 : index
    %c17_82 = arith.constant 17 : index
    %c0_83 = arith.constant 0 : index
    %102 = vector.load %arg7[%c1_81, %c17_82, %c0_83] : memref<18x18x4xbf16, #tpu.memory_space<vmem>>, vector<16x1x4xbf16>
    tpu.vector_store %arg7[%c1_81, %c17_82, %c0_83], %101 {strides = array<i32>} : memref<18x18x4xbf16, #tpu.memory_space<vmem>>, vector<16x1x4xbf16>,
    %c2_84 = arith.constant 2 : index
    %c0_85 = arith.constant 0 : index
    %c0_86 = arith.constant 0 : index
    %103 = vector.load %arg7[%c2_84, %c0_85, %c0_86] : memref<18x18x4xbf16, #tpu.memory_space<vmem>>, vector<1x18x4xbf16>
    %c0_87 = arith.constant 0 : index
    %c0_88 = arith.constant 0 : index
    %c0_89 = arith.constant 0 : index
    %104 = vector.load %arg7[%c0_87, %c0_88, %c0_89] : memref<18x18x4xbf16, #tpu.memory_space<vmem>>, vector<1x18x4xbf16>
    tpu.vector_store %arg7[%c0_87, %c0_88, %c0_89], %103 {strides = array<i32>} : memref<18x18x4xbf16, #tpu.memory_space<vmem>>, vector<1x18x4xbf16>,
    %c15_90 = arith.constant 15 : index
    %c0_91 = arith.constant 0 : index
    %c0_92 = arith.constant 0 : index
    %105 = vector.load %arg7[%c15_90, %c0_91, %c0_92] : memref<18x18x4xbf16, #tpu.memory_space<vmem>>, vector<1x18x4xbf16>
    %c17_93 = arith.constant 17 : index
    %c0_94 = arith.constant 0 : index
    %c0_95 = arith.constant 0 : index
    %106 = vector.load %arg7[%c17_93, %c0_94, %c0_95] : memref<18x18x4xbf16, #tpu.memory_space<vmem>>, vector<1x18x4xbf16>
    tpu.vector_store %arg7[%c17_93, %c0_94, %c0_95], %105 {strides = array<i32>} : memref<18x18x4xbf16, #tpu.memory_space<vmem>>, vector<1x18x4xbf16>,
    %c0_96 = arith.constant 0 : index
    %c0_97 = arith.constant 0 : index
    %c0_98 = arith.constant 0 : index
    %107 = vector.load %arg4[%c0_96, %c0_97, %c0_98] : memref<3x12x4xbf16, #tpu.memory_space<vmem>>, vector<1x12x4xbf16>
    %108 = vector.shape_cast %107 : vector<1x12x4xbf16> to vector<12x4xbf16>
    %c1_99 = arith.constant 1 : index
    %c0_100 = arith.constant 0 : index
    %c0_101 = arith.constant 0 : index
    %109 = vector.load %arg4[%c1_99, %c0_100, %c0_101] : memref<3x12x4xbf16, #tpu.memory_space<vmem>>, vector<1x12x4xbf16>
    %110 = vector.shape_cast %109 : vector<1x12x4xbf16> to vector<12x4xbf16>
    %c2_102 = arith.constant 2 : index
    %c0_103 = arith.constant 0 : index
    %c0_104 = arith.constant 0 : index
    %111 = vector.load %arg4[%c2_102, %c0_103, %c0_104] : memref<3x12x4xbf16, #tpu.memory_space<vmem>>, vector<1x12x4xbf16>
    %112 = vector.shape_cast %111 : vector<1x12x4xbf16> to vector<12x4xbf16>
    %c0_105 = arith.constant 0 : index
    %c0_106 = arith.constant 0 : index
    %113 = vector.load %arg5[%c0_105, %c0_106] : memref<1x4xf32, #tpu.memory_space<vmem>>, vector<1x4xf32>
    %cst_107 = arith.constant 0.000000e+00 : f32
    %114 = vector.broadcast %cst_107 : f32 to vector<1x4xf32>
    %cst_108 = arith.constant 0.000000e+00 : f32
    %115 = vector.broadcast %cst_108 : f32 to vector<1x4xf32>
    %c0_109 = arith.constant 0 : index
    %c0_110 = arith.constant 0 : index
    %c0_111 = arith.constant 0 : index
    %116 = vector.load %arg7[%c0_109, %c0_110, %c0_111] : memref<18x18x4xbf16, #tpu.memory_space<vmem>>, vector<10x16x4xbf16>
    %c0_112 = arith.constant 0 : index
    %c1_113 = arith.constant 1 : index
    %c0_114 = arith.constant 0 : index
    %117 = vector.load %arg7[%c0_112, %c1_113, %c0_114] : memref<18x18x4xbf16, #tpu.memory_space<vmem>>, vector<10x16x4xbf16>
    %c0_115 = arith.constant 0 : index
    %c2_116 = arith.constant 2 : index
    %c0_117 = arith.constant 0 : index
    %118 = vector.load %arg7[%c0_115, %c2_116, %c0_117] : memref<18x18x4xbf16, #tpu.memory_space<vmem>>, vector<10x16x4xbf16>
    %119 = tpu.concatenate %116, %117, %118 in 2 : vector<10x16x4xbf16>, vector<10x16x4xbf16>, vector<10x16x4xbf16> -> vector<10x16x12xbf16>
    %cst_118 = arith.constant 0.000000e+00 : f32
    %120 = vector.broadcast %cst_118 : f32 to vector<128x4xf32>
    %121 = vector.extract_strided_slice %119 {offsets = [0, 0, 0], sizes = [8, 16, 12], strides = [1, 1, 1]} : vector<10x16x12xbf16> to vector<8x16x12xbf16>
    %122 = vector.shape_cast %121 : vector<8x16x12xbf16> to vector<128x12xbf16>
    %cst_119 = arith.constant dense<0.000000e+00> : vector<128x4xf32>
    %123 = tpu.matmul %122, %108, %cst_119 {dimension_numbers = #tpu.dot_dimension_numbers<[1], [0], [0], [1], [0, 0, 1, 1], [], []>} : vector<128x12xbf16>, vector<12x4xbf16>, vector<128x4xf32> -> vector<128x4xf32>
    %124 = arith.addf %120, %123 : vector<128x4xf32>
    %125 = vector.extract_strided_slice %119 {offsets = [1, 0, 0], sizes = [8, 16, 12], strides = [1, 1, 1]} : vector<10x16x12xbf16> to vector<8x16x12xbf16>
    %126 = vector.shape_cast %125 : vector<8x16x12xbf16> to vector<128x12xbf16>
    %cst_120 = arith.constant dense<0.000000e+00> : vector<128x4xf32>
    %127 = tpu.matmul %126, %110, %cst_120 {dimension_numbers = #tpu.dot_dimension_numbers<[1], [0], [0], [1], [0, 0, 1, 1], [], []>} : vector<128x12xbf16>, vector<12x4xbf16>, vector<128x4xf32> -> vector<128x4xf32>
    %128 = arith.addf %124, %127 : vector<128x4xf32>
    %129 = vector.extract_strided_slice %119 {offsets = [2, 0, 0], sizes = [8, 16, 12], strides = [1, 1, 1]} : vector<10x16x12xbf16> to vector<8x16x12xbf16>
    %130 = vector.shape_cast %129 : vector<8x16x12xbf16> to vector<128x12xbf16>
    %cst_121 = arith.constant dense<0.000000e+00> : vector<128x4xf32>
    %131 = tpu.matmul %130, %112, %cst_121 {dimension_numbers = #tpu.dot_dimension_numbers<[1], [0], [0], [1], [0, 0, 1, 1], [], []>} : vector<128x12xbf16>, vector<12x4xbf16>, vector<128x4xf32> -> vector<128x4xf32>
    %132 = arith.addf %128, %131 : vector<128x4xf32>
    %133 = vector.broadcast %113 : vector<1x4xf32> to vector<128x4xf32>
    %134 = arith.addf %132, %133 : vector<128x4xf32>
    %cst_122 = arith.constant dense<0.000000e+00> : vector<4xf32>
    %135 = vector.multi_reduction <add>, %134, %cst_122 [0] : vector<128x4xf32> to vector<4xf32>
    %136 = vector.shape_cast %135 : vector<4xf32> to vector<1x4xf32>
    %137 = arith.addf %114, %136 : vector<1x4xf32>
    %138 = arith.mulf %134, %134 : vector<128x4xf32>
    %cst_123 = arith.constant dense<0.000000e+00> : vector<4xf32>
    %139 = vector.multi_reduction <add>, %138, %cst_123 [0] : vector<128x4xf32> to vector<4xf32>
    %140 = vector.shape_cast %139 : vector<4xf32> to vector<1x4xf32>
    %141 = arith.addf %115, %140 : vector<1x4xf32>
    %142 = vector.shape_cast %134 : vector<128x4xf32> to vector<8x16x4xf32>
    %c0_124 = arith.constant 0 : index
    %c0_125 = arith.constant 0 : index
    %c0_126 = arith.constant 0 : index
    %143 = vector.load %arg8[%c0_124, %c0_125, %c0_126] : memref<16x16x4xf32, #tpu.memory_space<vmem>>, vector<8x16x4xf32>
    tpu.vector_store %arg8[%c0_124, %c0_125, %c0_126], %142 {strides = array<i32>} : memref<16x16x4xf32, #tpu.memory_space<vmem>>, vector<8x16x4xf32>,
    %c8_127 = arith.constant 8 : index
    %c0_128 = arith.constant 0 : index
    %c0_129 = arith.constant 0 : index
    %144 = vector.load %arg7[%c8_127, %c0_128, %c0_129] : memref<18x18x4xbf16, #tpu.memory_space<vmem>>, vector<10x16x4xbf16>
    %c8_130 = arith.constant 8 : index
    %c1_131 = arith.constant 1 : index
    %c0_132 = arith.constant 0 : index
    %145 = vector.load %arg7[%c8_130, %c1_131, %c0_132] : memref<18x18x4xbf16, #tpu.memory_space<vmem>>, vector<10x16x4xbf16>
    %c8_133 = arith.constant 8 : index
    %c2_134 = arith.constant 2 : index
    %c0_135 = arith.constant 0 : index
    %146 = vector.load %arg7[%c8_133, %c2_134, %c0_135] : memref<18x18x4xbf16, #tpu.memory_space<vmem>>, vector<10x16x4xbf16>
    %147 = tpu.concatenate %144, %145, %146 in 2 : vector<10x16x4xbf16>, vector<10x16x4xbf16>, vector<10x16x4xbf16> -> vector<10x16x12xbf16>
    %cst_136 = arith.constant 0.000000e+00 : f32
    %148 = vector.broadcast %cst_136 : f32 to vector<128x4xf32>
    %149 = vector.extract_strided_slice %147 {offsets = [0, 0, 0], sizes = [8, 16, 12], strides = [1, 1, 1]} : vector<10x16x12xbf16> to vector<8x16x12xbf16>
    %150 = vector.shape_cast %149 : vector<8x16x12xbf16> to vector<128x12xbf16>
    %cst_137 = arith.constant dense<0.000000e+00> : vector<128x4xf32>
    %151 = tpu.matmul %150, %108, %cst_137 {dimension_numbers = #tpu.dot_dimension_numbers<[1], [0], [0], [1], [0, 0, 1, 1], [], []>} : vector<128x12xbf16>, vector<12x4xbf16>, vector<128x4xf32> -> vector<128x4xf32>
    %152 = arith.addf %148, %151 : vector<128x4xf32>
    %153 = vector.extract_strided_slice %147 {offsets = [1, 0, 0], sizes = [8, 16, 12], strides = [1, 1, 1]} : vector<10x16x12xbf16> to vector<8x16x12xbf16>
    %154 = vector.shape_cast %153 : vector<8x16x12xbf16> to vector<128x12xbf16>
    %cst_138 = arith.constant dense<0.000000e+00> : vector<128x4xf32>
    %155 = tpu.matmul %154, %110, %cst_138 {dimension_numbers = #tpu.dot_dimension_numbers<[1], [0], [0], [1], [0, 0, 1, 1], [], []>} : vector<128x12xbf16>, vector<12x4xbf16>, vector<128x4xf32> -> vector<128x4xf32>
    %156 = arith.addf %152, %155 : vector<128x4xf32>
    %157 = vector.extract_strided_slice %147 {offsets = [2, 0, 0], sizes = [8, 16, 12], strides = [1, 1, 1]} : vector<10x16x12xbf16> to vector<8x16x12xbf16>
    %158 = vector.shape_cast %157 : vector<8x16x12xbf16> to vector<128x12xbf16>
    %cst_139 = arith.constant dense<0.000000e+00> : vector<128x4xf32>
    %159 = tpu.matmul %158, %112, %cst_139 {dimension_numbers = #tpu.dot_dimension_numbers<[1], [0], [0], [1], [0, 0, 1, 1], [], []>} : vector<128x12xbf16>, vector<12x4xbf16>, vector<128x4xf32> -> vector<128x4xf32>
    %160 = arith.addf %156, %159 : vector<128x4xf32>
    %161 = vector.broadcast %113 : vector<1x4xf32> to vector<128x4xf32>
    %162 = arith.addf %160, %161 : vector<128x4xf32>
    %cst_140 = arith.constant dense<0.000000e+00> : vector<4xf32>
    %163 = vector.multi_reduction <add>, %162, %cst_140 [0] : vector<128x4xf32> to vector<4xf32>
    %164 = vector.shape_cast %163 : vector<4xf32> to vector<1x4xf32>
    %165 = arith.addf %137, %164 : vector<1x4xf32>
    %166 = arith.mulf %162, %162 : vector<128x4xf32>
    %cst_141 = arith.constant dense<0.000000e+00> : vector<4xf32>
    %167 = vector.multi_reduction <add>, %166, %cst_141 [0] : vector<128x4xf32> to vector<4xf32>
    %168 = vector.shape_cast %167 : vector<4xf32> to vector<1x4xf32>
    %169 = arith.addf %141, %168 : vector<1x4xf32>
    %170 = vector.shape_cast %162 : vector<128x4xf32> to vector<8x16x4xf32>
    %c8_142 = arith.constant 8 : index
    %c0_143 = arith.constant 0 : index
    %c0_144 = arith.constant 0 : index
    %171 = vector.load %arg8[%c8_142, %c0_143, %c0_144] : memref<16x16x4xf32, #tpu.memory_space<vmem>>, vector<8x16x4xf32>
    tpu.vector_store %arg8[%c8_142, %c0_143, %c0_144], %170 {strides = array<i32>} : memref<16x16x4xf32, #tpu.memory_space<vmem>>, vector<8x16x4xf32>,
    %cst_145 = arith.constant 3.906250e-03 : f32
    %172 = vector.broadcast %cst_145 : f32 to vector<1x4xf32>
    %173 = arith.mulf %165, %172 : vector<1x4xf32>
    %cst_146 = arith.constant 3.906250e-03 : f32
    %174 = vector.broadcast %cst_146 : f32 to vector<1x4xf32>
    %175 = arith.mulf %169, %174 : vector<1x4xf32>
    %176 = arith.mulf %173, %173 : vector<1x4xf32>
    %177 = arith.subf %175, %176 : vector<1x4xf32>
    %cst_147 = arith.constant 0.000000e+00 : f32
    %178 = vector.broadcast %cst_147 : f32 to vector<1x4xf32>
    %179 = arith.maximumf %177, %178 : vector<1x4xf32>
    %cst_148 = arith.constant 9.99999974E-6 : f32
    %180 = vector.broadcast %cst_148 : f32 to vector<1x4xf32>
    %181 = arith.addf %179, %180 : vector<1x4xf32>
    %182 = math.rsqrt %181 : vector<1x4xf32>
    %c0_149 = arith.constant 0 : index
    %c0_150 = arith.constant 0 : index
    %c0_151 = arith.constant 0 : index
    %183 = vector.load %arg8[%c0_149, %c0_150, %c0_151] : memref<16x16x4xf32, #tpu.memory_space<vmem>>, vector<16x16x4xf32>
    %184 = vector.shape_cast %173 : vector<1x4xf32> to vector<1x1x4xf32>
    %185 = vector.broadcast %184 : vector<1x1x4xf32> to vector<16x16x4xf32>
    %186 = arith.subf %183, %185 : vector<16x16x4xf32>
    %187 = vector.shape_cast %182 : vector<1x4xf32> to vector<1x1x4xf32>
    %188 = vector.broadcast %187 : vector<1x1x4xf32> to vector<16x16x4xf32>
    %189 = arith.mulf %186, %188 : vector<16x16x4xf32>
    %190 = arith.addf %1, %189 : vector<16x16x4xf32>
    %c0_152 = arith.constant 0 : index
    %c0_153 = arith.constant 0 : index
    %c0_154 = arith.constant 0 : index
    %c0_155 = arith.constant 0 : index
    %191 = vector.load %arg6[%c0_152, %c0_153, %c0_154, %c0_155] : memref<1x16x16x4xf32, #tpu.memory_space<vmem>>, vector<1x16x16x4xf32>
    %192 = vector.shape_cast %191 : vector<1x16x16x4xf32> to vector<16x16x4xf32>
    %193 = vector.shape_cast %190 : vector<16x16x4xf32> to vector<1x16x16x4xf32>
    tpu.vector_store %arg6[%c0_152, %c0_153, %c0_154, %c0_155], %193 {strides = array<i32>} : memref<1x16x16x4xf32, #tpu.memory_space<vmem>>, vector<1x16x16x4xf32>,
    return
  }
  func.func @transform_0(%arg0: i32) -> (i32, i32, i32, i32) {
    %c0_i32 = arith.constant 0 : i32
    %c0_i32_0 = arith.constant 0 : i32
    %c0_i32_1 = arith.constant 0 : i32
    %c0_i32_2 = arith.constant 0 : i32
    return %arg0, %c0_i32, %c0_i32_0, %c0_i32_1 : i32, i32, i32, i32
  }
  func.func @transform_1(%arg0: i32) -> (i32, i32, i32) {
    %c0_i32 = arith.constant 0 : i32
    %c0_i32_0 = arith.constant 0 : i32
    %c0_i32_1 = arith.constant 0 : i32
    %c0_i32_2 = arith.constant 0 : i32
    return %c0_i32, %c0_i32_0, %c0_i32_1 : i32, i32, i32
  }
  func.func @transform_2(%arg0: i32) -> (i32, i32) {
    %c0_i32 = arith.constant 0 : i32
    %c0_i32_0 = arith.constant 0 : i32
    %c0_i32_1 = arith.constant 0 : i32
    return %c0_i32, %c0_i32_0 : i32, i32
  }
  func.func @transform_3(%arg0: i32) -> (i32, i32, i32) {
    %c0_i32 = arith.constant 0 : i32
    %c0_i32_0 = arith.constant 0 : i32
    %c0_i32_1 = arith.constant 0 : i32
    %c0_i32_2 = arith.constant 0 : i32
    return %c0_i32, %c0_i32_0, %c0_i32_1 : i32, i32, i32
  }
  func.func @transform_4(%arg0: i32) -> (i32, i32) {
    %c0_i32 = arith.constant 0 : i32
    %c0_i32_0 = arith.constant 0 : i32
    %c0_i32_1 = arith.constant 0 : i32
    return %c0_i32, %c0_i32_0 : i32, i32
  }
  func.func @transform_5(%arg0: i32) -> (i32, i32, i32, i32) {
    %c0_i32 = arith.constant 0 : i32
    %c0_i32_0 = arith.constant 0 : i32
    %c0_i32_1 = arith.constant 0 : i32
    %c0_i32_2 = arith.constant 0 : i32
    return %arg0, %c0_i32, %c0_i32_0, %c0_i32_1 : i32, i32, i32, i32
  }
}

</mosaic_0001>

<llo_original>
// kernel: tpu_custom_call.1
$region0: #{tpu_custom_call.1}
  #allocation0 [shape = 'u32[]', space=smem, size = 0x4, offset = 0x4, fixed_abs, tag = 'smem constant byte address 0x4 - core index']
  #allocation1 [shape = 'u32[144,128]{1,0:T(1,128)}', space=vmem, size = 0x12000, scoped, tag = 'internal scratch']
  #allocation2 [shape = 'bf16[18,18,4]{2,1,0:T(8,128)(2,1)}', space=vmem, size = 0x1b000, scoped, tag = 'scratch operand']
  #allocation3 [shape = 'f32[16,16,4]{2,1,0:T(8,128)}', space=vmem, size = 0x20000, scoped, tag = 'scratch operand']
  %s0 = inlined_call_operand.vmem [shape: f32[2,16,16,4], index: 0, kind: input, shape index: {}]
  %s1 = inlined_call_operand.vmem [shape: bf16[3,12,4], index: 1, kind: input, shape index: {}]
  %s2 = inlined_call_operand.vmem [shape: f32[1,4], index: 2, kind: input, shape index: {}]
  %s3 = inlined_call_operand.vmem [shape: bf16[3,12,4], index: 3, kind: input, shape index: {}]
  %s4 = inlined_call_operand.vmem [shape: f32[1,4], index: 4, kind: input, shape index: {}]
  %s5 = inlined_call_operand.vmem [shape: f32[2,16,16,4], index: 5, kind: output, shape index: {}]
  %s6 = sld [smem:[#allocation0]]
  $region53: #{tpu_custom_call.1} parent=0
    _
  %s8 = ssub.s32 1, %s6
  %s9 = scalar_select 0, %s8, %s6
  loop: start=0, step=1, limit=4
  $region2: #{tpu_custom_call.1} parent=0 // loop_pre_header
    _
  $region3: #{tpu_custom_call.1} parent=0 // loop_header
    %s11 = sphi 0, %s15
    %p12 = scmp.ge.s32.totalorder %s11, 4
    %s21 = sphi 0, %s23
    %s24 = sphi 0, %s21
    %s25 = sphi 0, %s24
    %s41 = sphi 0, %s25
    %s45 = sphi 0, %s45
    %s47 = sphi 0, %s45
    %s48 = sphi 0, %s47
    %s62 = sphi 0, %s48
    %s66 = sphi 0, %s66
    %s68 = sphi 0, %s66
    %s69 = sphi 0, %s68
    %s83 = sphi 0, %s69
    %s87 = sphi 0, %s87
    %s89 = sphi 0, %s87
    %s90 = sphi 0, %s89
    %s104 = sphi 0, %s90
    %s108 = sphi 0, %s108
    %s110 = sphi 0, %s108
    %s111 = sphi 0, %s110
    %s125 = sphi 0, %s111
    %s131 = sphi 0, %s133
    %s134 = sphi 0, %s131
    %s135 = sphi 0, %s134
    %s151 = sphi 0, %s135
  $region4: #{tpu_custom_call.1} parent=0 // loop_header_branch
    %14 = sbr.rel (%p12) target = $region8
  $region5: #{tpu_custom_call.1} parent=0 // loop_body
    %s16 = ssub.s32 %s11, 1
    %s17 = ssub.s32 %s11, 2
    %s18 = sadd.s32 %s11, 1
    %s19 = ssub.s32 %s11, %s18
    %p20 = scmp.eq.s32.totalorder %s19, 0
    %s22 = sadd.s32 %s21, 1
    %s23 = scalar_select %p20, %s21, %s22
    %p26 = pneg %p20
    %p27 = scmp.eq.s32.totalorder %s11, 1
    %p28 = por %p26, %p27
    %p29 = scmp.ne.s32.totalorder %s21, %s24
    %p30 = scmp.eq.s32.totalorder %s11, 0
    %p31 = por %p29, %p30
    %p32 = scmp.ne.s32.totalorder %s21, %s24
    %p33 = scmp.eq.s32.totalorder %s16, 1
    %p34 = por %p32, %p33
    %p35 = scmp.ne.s32.totalorder %s24, %s25
    %p36 = scmp.eq.s32.totalorder %s16, 0
    %p37 = por %p35, %p36
    %p38 = scmp.ne.s32.totalorder %s24, %s25
    %p39 = scmp.eq.s32.totalorder %s17, 1
    %p40 = por %p38, %p39
    %p42 = scmp.ne.s32.totalorder %s25, %s41
    %p43 = scmp.eq.s32.totalorder %s17, 0
    %p44 = por %p42, %p43
    %s46 = sadd.s32 %s45, 1
    %p49 = scmp.eq.s32.totalorder %s11, 1
    %p50 = scmp.ne.s32.totalorder %s45, %s47
    %p51 = scmp.eq.s32.totalorder %s11, 0
    %p52 = por %p50, %p51
    %p53 = scmp.ne.s32.totalorder %s45, %s47
    %p54 = scmp.eq.s32.totalorder %s16, 1
    %p55 = por %p53, %p54
    %p56 = scmp.ne.s32.totalorder %s47, %s48
    %p57 = scmp.eq.s32.totalorder %s16, 0
    %p58 = por %p56, %p57
    %p59 = scmp.ne.s32.totalorder %s47, %s48
    %p60 = scmp.eq.s32.totalorder %s17, 1
    %p61 = por %p59, %p60
    %p63 = scmp.ne.s32.totalorder %s48, %s62
    %p64 = scmp.eq.s32.totalorder %s17, 0
    %p65 = por %p63, %p64
    %s67 = sadd.s32 %s66, 1
    %p70 = scmp.eq.s32.totalorder %s11, 1
    %p71 = scmp.ne.s32.totalorder %s66, %s68
    %p72 = scmp.eq.s32.totalorder %s11, 0
    %p73 = por %p71, %p72
    %p74 = scmp.ne.s32.totalorder %s66, %s68
    %p75 = scmp.eq.s32.totalorder %s16, 1
    %p76 = por %p74, %p75
    %p77 = scmp.ne.s32.totalorder %s68, %s69
    %p78 = scmp.eq.s32.totalorder %s16, 0
    %p79 = por %p77, %p78
    %p80 = scmp.ne.s32.totalorder %s68, %s69
    %p81 = scmp.eq.s32.totalorder %s17, 1
    %p82 = por %p80, %p81
    %p84 = scmp.ne.s32.totalorder %s69, %s83
    %p85 = scmp.eq.s32.totalorder %s17, 0
    %p86 = por %p84, %p85
    %s88 = sadd.s32 %s87, 1
    %p91 = scmp.eq.s32.totalorder %s11, 1
    %p92 = scmp.ne.s32.totalorder %s87, %s89
    %p93 = scmp.eq.s32.totalorder %s11, 0
    %p94 = por %p92, %p93
    %p95 = scmp.ne.s32.totalorder %s87, %s89
    %p96 = scmp.eq.s32.totalorder %s16, 1
    %p97 = por %p95, %p96
    %p98 = scmp.ne.s32.totalorder %s89, %s90
    %p99 = scmp.eq.s32.totalorder %s16, 0
    %p100 = por %p98, %p99
    %p101 = scmp.ne.s32.totalorder %s89, %s90
    %p102 = scmp.eq.s32.totalorder %s17, 1
    %p103 = por %p101, %p102
    %p105 = scmp.ne.s32.totalorder %s90, %s104
    %p106 = scmp.eq.s32.totalorder %s17, 0
    %p107 = por %p105, %p106
    %s109 = sadd.s32 %s108, 1
    %p112 = scmp.eq.s32.totalorder %s11, 1
    %p113 = scmp.ne.s32.totalorder %s108, %s110
    %p114 = scmp.eq.s32.totalorder %s11, 0
    %p115 = por %p113, %p114
    %p116 = scmp.ne.s32.totalorder %s108, %s110
    %p117 = scmp.eq.s32.totalorder %s16, 1
    %p118 = por %p116, %p117
    %p119 = scmp.ne.s32.totalorder %s110, %s111
    %p120 = scmp.eq.s32.totalorder %s16, 0
    %p121 = por %p119, %p120
    %p122 = scmp.ne.s32.totalorder %s110, %s111
    %p123 = scmp.eq.s32.totalorder %s17, 1
    %p124 = por %p122, %p123
    %p126 = scmp.ne.s32.totalorder %s111, %s125
    %p127 = scmp.eq.s32.totalorder %s17, 0
    %p128 = por %p126, %p127
    %s129 = ssub.s32 %s11, %s18
    %p130 = scmp.eq.s32.totalorder %s129, 0
    %s132 = sadd.s32 %s131, 1
    %s133 = scalar_select %p130, %s131, %s132
    %p136 = pneg %p130
    %p137 = scmp.eq.s32.totalorder %s11, 1
    %p138 = por %p136, %p137
    %p139 = scmp.ne.s32.totalorder %s131, %s134
    %p140 = scmp.eq.s32.totalorder %s11, 0
    %p141 = por %p139, %p140
    %p142 = scmp.ne.s32.totalorder %s131, %s134
    %p143 = scmp.eq.s32.totalorder %s16, 1
    %p144 = por %p142, %p143
    %p145 = scmp.ne.s32.totalorder %s134, %s135
    %p146 = scmp.eq.s32.totalorder %s16, 0
    %p147 = por %p145, %p146
    %p148 = scmp.ne.s32.totalorder %s134, %s135
    %p149 = scmp.eq.s32.totalorder %s17, 1
    %p150 = por %p148, %p149
    %p152 = scmp.ne.s32.totalorder %s135, %s151
    %p153 = scmp.eq.s32.totalorder %s17, 0
    %p154 = por %p152, %p153
    %p155 = scmp.le.s32.totalorder 1, %s11
    %p156 = scmp.lt.s32.totalorder %s11, 3
    %p157 = pnand %p155, %p156
    %p158 = pneg %p157
    // Predicated region
    $region9: #{tpu_custom_call.1} parent=5 // pred_check
      _
    $region10: #{tpu_custom_call.1} parent=5 // pred_check_branch
      %160 = sbr.rel (%p157) target = $region12
    $region11: #{tpu_custom_call.1} parent=5 // pred_region
      %s161 = ssub.s32 %s11, 1
      // Predicated region
      $region13: #{tpu_custom_call.1} parent=11 // pred_check
        %p162 = pneg %p58
      $region14: #{tpu_custom_call.1} parent=11 // pred_check_branch
        %164 = sbr.rel (%p162) target = $region16
      $region15: #{tpu_custom_call.1} parent=11 // pred_region
        _
      $region16: #{tpu_custom_call.1} parent=11 // pred_fallthru
        _
      // Predicated region
      $region17: #{tpu_custom_call.1} parent=11 // pred_check
        %p165 = pneg %p79
      $region18: #{tpu_custom_call.1} parent=11 // pred_check_branch
        %167 = sbr.rel (%p165) target = $region20
      $region19: #{tpu_custom_call.1} parent=11 // pred_region
        _
      $region20: #{tpu_custom_call.1} parent=11 // pred_fallthru
        _
      // Predicated region
      $region21: #{tpu_custom_call.1} parent=11 // pred_check
        %p168 = pneg %p100
      $region22: #{tpu_custom_call.1} parent=11 // pred_check_branch
        %170 = sbr.rel (%p168) target = $region24
      $region23: #{tpu_custom_call.1} parent=11 // pred_region
        _
      $region24: #{tpu_custom_call.1} parent=11 // pred_fallthru
        _
      // Predicated region
      $region25: #{tpu_custom_call.1} parent=11 // pred_check
        %p171 = pneg %p121
      $region26: #{tpu_custom_call.1} parent=11 // pred_check_branch
        %173 = sbr.rel (%p171) target = $region28
      $region27: #{tpu_custom_call.1} parent=11 // pred_region
        _
      $region28: #{tpu_custom_call.1} parent=11 // pred_fallthru
        _
    $region12: #{tpu_custom_call.1} parent=5 // pred_fallthru
      _
    %p174 = scmp.lt.s32.totalorder %s11, 2
    // Predicated region
    $region29: #{tpu_custom_call.1} parent=5 // pred_check
      %p175 = pneg %p174
    $region30: #{tpu_custom_call.1} parent=5 // pred_check_branch
      %177 = sbr.rel (%p175) target = $region32
    $region31: #{tpu_custom_call.1} parent=5 // pred_region
      // Predicated region
      $region33: #{tpu_custom_call.1} parent=31 // pred_check
        %p178 = pneg %p31
      $region34: #{tpu_custom_call.1} parent=31 // pred_check_branch
        %180 = sbr.rel (%p178) target = $region36
      $region35: #{tpu_custom_call.1} parent=31 // pred_region
        %p181 = scmp.lt.s32.totalorder %s11, 1
        %s182 = scalar_select %p181, %s11, 1
        %s183 = smul.addr %s182, 32
        %s184 = smul.addr %s183, 8
        %s185 = scalar_lea.vmem %s0, %s184
      $region36: #{tpu_custom_call.1} parent=31 // pred_fallthru
        _
    $region32: #{tpu_custom_call.1} parent=5 // pred_fallthru
      _
    %p186 = scmp.le.s32.totalorder 1, %s11
    %p187 = scmp.lt.s32.totalorder %s11, 3
    %p188 = pnand %p186, %p187
    %p189 = pneg %p188
    // Predicated region
    $region37: #{tpu_custom_call.1} parent=5 // pred_check
      _
    $region38: #{tpu_custom_call.1} parent=5 // pred_check_branch
      %191 = sbr.rel (%p188) target = $region40
    $region39: #{tpu_custom_call.1} parent=5 // pred_region
      %s192 = ssub.s32 %s11, 1
      %p193 = scmp.lt.s32.totalorder %s16, 1
      %s194 = scalar_select %p193, %s16, 1
      %s195 = smul.addr %s194, 32
      %s196 = smul.addr %s195, 8
      %s197 = scalar_lea.vmem %s0, %s196
      %p198 = pneg %p37
      %p199 = pneg %p34
      %p200 = pneg %p58
      %p201 = pneg %p55
      %p202 = pneg %p79
      %p203 = pneg %p76
      %p204 = pneg %p100
      %p205 = pneg %p97
      %p206 = pneg %p121
      %p207 = pneg %p118
      %p208 = pneg %p147
      %p209 = pneg %p144
      %p210 = scmp.lt.s32.totalorder %s16, 1
      %s211 = scalar_select %p210, %s16, 1
      %s212 = smul.addr %s211, 32
      %s213 = smul.addr %s212, 8
      %s214 = scalar_lea.vmem %s5, %s213
      %p215 = scmp.lt.s32.totalorder %s16, 1
      %s216 = scalar_select %p215, %s16, 1
      %s217 = smul.addr %s216, 32
      %s218 = smul.addr %s217, 8
      %s219 = scalar_lea.vmem %s0, %s218
      %p220 = scmp.lt.s32.totalorder %s16, 1
      %s221 = scalar_select %p220, %s16, 1
      %s222 = smul.addr %s221, 32
      %s223 = smul.addr %s222, 8
      %s224 = scalar_lea.vmem %s5, %s223
      %v226 = vld [vmem:[%s219] sm:$0xff]
      %v227 = vld [vmem:[%s219 + $0x8] sm:$0xff]
      %v228 = vld [vmem:[%s219 + $0x10] sm:$0xff]
      %v229 = vld [vmem:[%s219 + $0x18] sm:$0xff]
      %v230 = vld [vmem:[%s219 + $0x20] sm:$0xff]
      %v231 = vld [vmem:[%s219 + $0x28] sm:$0xff]
      %v232 = vld [vmem:[%s219 + $0x30] sm:$0xff]
      %v233 = vld [vmem:[%s219 + $0x38] sm:$0xff]
      %v234 = vld [vmem:[%s219 + $0x40] sm:$0xff]
      %v235 = vld [vmem:[%s219 + $0x48] sm:$0xff]
      %v236 = vld [vmem:[%s219 + $0x50] sm:$0xff]
      %v237 = vld [vmem:[%s219 + $0x58] sm:$0xff]
      %v238 = vld [vmem:[%s219 + $0x60] sm:$0xff]
      %v239 = vld [vmem:[%s219 + $0x68] sm:$0xff]
      %v240 = vld [vmem:[%s219 + $0x70] sm:$0xff]
      %v241 = vld [vmem:[%s219 + $0x78] sm:$0xff]
      %v242 = vld [vmem:[%s219 + $0x80] sm:$0xff]
      %v243 = vld [vmem:[%s219 + $0x88] sm:$0xff]
      %v244 = vld [vmem:[%s219 + $0x90] sm:$0xff]
      %v245 = vld [vmem:[%s219 + $0x98] sm:$0xff]
      %v246 = vld [vmem:[%s219 + $0xa0] sm:$0xff]
      %v247 = vld [vmem:[%s219 + $0xa8] sm:$0xff]
      %v248 = vld [vmem:[%s219 + $0xb0] sm:$0xff]
      %v249 = vld [vmem:[%s219 + $0xb8] sm:$0xff]
      %v250 = vld [vmem:[%s219 + $0xc0] sm:$0xff]
      %v251 = vld [vmem:[%s219 + $0xc8] sm:$0xff]
      %v252 = vld [vmem:[%s219 + $0xd0] sm:$0xff]
      %v253 = vld [vmem:[%s219 + $0xd8] sm:$0xff]
      %v254 = vld [vmem:[%s219 + $0xe0] sm:$0xff]
      %v255 = vld [vmem:[%s219 + $0xe8] sm:$0xff]
      %v256 = vld [vmem:[%s219 + $0xf0] sm:$0xff]
      %v257 = vld [vmem:[%s219 + $0xf8] sm:$0xff]
      %v258 = vpack.c.bf16 %v227, %v226
      %v259 = vpack.c.bf16 %v229, %v228
      %v260 = vpack.c.bf16 %v231, %v230
      %v261 = vpack.c.bf16 %v233, %v232
      %v262 = vpack.c.bf16 %v235, %v234
      %v263 = vpack.c.bf16 %v237, %v236
      %v264 = vpack.c.bf16 %v239, %v238
      %v265 = vpack.c.bf16 %v241, %v240
      %v266 = vpack.c.bf16 %v243, %v242
      %v267 = vpack.c.bf16 %v245, %v244
      %v268 = vpack.c.bf16 %v247, %v246
      %v269 = vpack.c.bf16 %v249, %v248
      %v270 = vpack.c.bf16 %v251, %v250
      %v271 = vpack.c.bf16 %v253, %v252
      %v272 = vpack.c.bf16 %v255, %v254
      %v273 = vpack.c.bf16 %v257, %v256
      %v290 = vunpack.c.l.b16 %v258
      %v291 = vunpack.c.h.b16 %v258
      %v292 = vunpack.c.l.b16 %v259
      %v293 = vunpack.c.h.b16 %v259
      %v294 = vunpack.c.l.b16 %v260
      %v295 = vunpack.c.h.b16 %v260
      %v296 = vunpack.c.l.b16 %v261
      %v297 = vunpack.c.h.b16 %v261
      %v298 = vunpack.c.l.b16 %v262
      %v299 = vunpack.c.h.b16 %v262
      %v300 = vunpack.c.l.b16 %v263
      %v301 = vunpack.c.h.b16 %v263
      %v302 = vunpack.c.l.b16 %v264
      %v303 = vunpack.c.h.b16 %v264
      %v304 = vunpack.c.l.b16 %v265
      %v305 = vunpack.c.h.b16 %v265
      %v306 = vunpack.c.l.b16 %v266
      %v307 = vunpack.c.h.b16 %v266
      %v308 = vunpack.c.l.b16 %v267
      %v309 = vunpack.c.h.b16 %v267
      %v310 = vunpack.c.l.b16 %v268
      %v311 = vunpack.c.h.b16 %v268
      %v312 = vunpack.c.l.b16 %v269
      %v313 = vunpack.c.h.b16 %v269
      %v314 = vunpack.c.l.b16 %v270
      %v315 = vunpack.c.h.b16 %v270
      %v316 = vunpack.c.l.b16 %v271
      %v317 = vunpack.c.h.b16 %v271
      %v318 = vunpack.c.l.b16 %v272
      %v319 = vunpack.c.h.b16 %v272
      %v320 = vunpack.c.l.b16 %v273
      %v321 = vunpack.c.h.b16 %v273
      %v322 = vpack.c.b16 %v290, %v290
      %v323 = vpack.c.b16 %v291, %v291
      %v324 = vpack.c.b16 %v292, %v292
      %v325 = vpack.c.b16 %v293, %v293
      %v326 = vpack.c.b16 %v294, %v294
      %v327 = vpack.c.b16 %v295, %v295
      %v328 = vpack.c.b16 %v296, %v296
      %v329 = vpack.c.b16 %v297, %v297
      %v330 = vpack.c.b16 %v298, %v298
      %v331 = vpack.c.b16 %v299, %v299
      %v332 = vpack.c.b16 %v300, %v300
      %v333 = vpack.c.b16 %v301, %v301
      %v334 = vpack.c.b16 %v302, %v302
      %v335 = vpack.c.b16 %v303, %v303
      %v336 = vpack.c.b16 %v304, %v304
      %v337 = vpack.c.b16 %v305, %v305
      %v338 = vpack.c.b16 %v306, %v306
      %v339 = vpack.c.b16 %v307, %v307
      %v340 = vpack.c.b16 %v308, %v308
      %v341 = vpack.c.b16 %v309, %v309
      %v342 = vpack.c.b16 %v310, %v310
      %v343 = vpack.c.b16 %v311, %v311
      %v344 = vpack.c.b16 %v312, %v312
      %v345 = vpack.c.b16 %v313, %v313
      %v346 = vpack.c.b16 %v314, %v314
      %v347 = vpack.c.b16 %v315, %v315
      %v348 = vpack.c.b16 %v316, %v316
      %v349 = vpack.c.b16 %v317, %v317
      %v350 = vpack.c.b16 %v318, %v318
      %v351 = vpack.c.b16 %v319, %v319
      %v352 = vpack.c.b16 %v320, %v320
      %v353 = vpack.c.b16 %v321, %v321
      %vm354 = vsmask.f32 256
      %vm355 = vsmask.f32 4368
      %vm356 = vmor %vm354, %vm355
      %v358 = vshrl.u32 %v322, 16
      %v360 = vrot.slane %v358, 7
      %v361 = vshll.u32 %v322, 16
      %v363 = vor.u32 %v360, %v361
      %v364 = vrot.slane %v360, 4
      %v366 = vshrl.u32 %v323, 16
      %v368 = vrot.slane %v366, 7
      %v369 = vshll.u32 %v323, 16
      %v371 = vor.u32 %v368, %v369
      %v372 = vsel %vm356, %v364, %v371
      %v373 = vrot.slane %v368, 4
      %v375 = vshrl.u32 %v324, 16
      %v377 = vrot.slane %v375, 7
      %v378 = vshll.u32 %v324, 16
      %v380 = vor.u32 %v377, %v378
      %v381 = vrot.slane %v377, 4
      %v383 = vshrl.u32 %v325, 16
      %v385 = vrot.slane %v383, 7
      %v386 = vshll.u32 %v325, 16
      %v388 = vor.u32 %v385, %v386
      %v389 = vsel %vm356, %v381, %v388
      %v390 = vrot.slane %v385, 4
      %v392 = vshrl.u32 %v326, 16
      %v394 = vrot.slane %v392, 7
      %v395 = vshll.u32 %v326, 16
      %v397 = vor.u32 %v394, %v395
      %v398 = vrot.slane %v394, 4
      %v400 = vshrl.u32 %v327, 16
      %v402 = vrot.slane %v400, 7
      %v403 = vshll.u32 %v327, 16
      %v405 = vor.u32 %v402, %v403
      %v406 = vsel %vm356, %v398, %v405
      %v407 = vrot.slane %v402, 4
      %v409 = vshrl.u32 %v328, 16
      %v411 = vrot.slane %v409, 7
      %v412 = vshll.u32 %v328, 16
      %v414 = vor.u32 %v411, %v412
      %v415 = vrot.slane %v411, 4
      %v417 = vshrl.u32 %v329, 16
      %v419 = vrot.slane %v417, 7
      %v420 = vshll.u32 %v329, 16
      %v422 = vor.u32 %v419, %v420
      %v423 = vsel %vm356, %v415, %v422
      %v424 = vrot.slane %v419, 4
      %v426 = vshrl.u32 %v330, 16
      %v428 = vrot.slane %v426, 7
      %v429 = vshll.u32 %v330, 16
      %v431 = vor.u32 %v428, %v429
      %v432 = vrot.slane %v428, 4
      %v434 = vshrl.u32 %v331, 16
      %v436 = vrot.slane %v434, 7
      %v437 = vshll.u32 %v331, 16
      %v439 = vor.u32 %v436, %v437
      %v440 = vsel %vm356, %v432, %v439
      %v441 = vrot.slane %v436, 4
      %v443 = vshrl.u32 %v332, 16
      %v445 = vrot.slane %v443, 7
      %v446 = vshll.u32 %v332, 16
      %v448 = vor.u32 %v445, %v446
      %v449 = vrot.slane %v445, 4
      %v451 = vshrl.u32 %v333, 16
      %v453 = vrot.slane %v451, 7
      %v454 = vshll.u32 %v333, 16
      %v456 = vor.u32 %v453, %v454
      %v457 = vsel %vm356, %v449, %v456
      %v458 = vrot.slane %v453, 4
      %v460 = vshrl.u32 %v334, 16
      %v462 = vrot.slane %v460, 7
      %v463 = vshll.u32 %v334, 16
      %v465 = vor.u32 %v462, %v463
      %v466 = vrot.slane %v462, 4
      %v468 = vshrl.u32 %v335, 16
      %v470 = vrot.slane %v468, 7
      %v471 = vshll.u32 %v335, 16
      %v473 = vor.u32 %v470, %v471
      %v474 = vsel %vm356, %v466, %v473
      %v475 = vrot.slane %v470, 4
      %v477 = vshrl.u32 %v336, 16
      %v479 = vrot.slane %v477, 7
      %v480 = vshll.u32 %v336, 16
      %v482 = vor.u32 %v479, %v480
      %v483 = vrot.slane %v479, 4
      %v485 = vshrl.u32 %v337, 16
      %v487 = vrot.slane %v485, 7
      %v488 = vshll.u32 %v337, 16
      %v490 = vor.u32 %v487, %v488
      %v491 = vsel %vm356, %v483, %v490
      %v492 = vrot.slane %v487, 4
      %v494 = vshrl.u32 %v338, 16
      %v496 = vrot.slane %v494, 7
      %v497 = vshll.u32 %v338, 16
      %v499 = vor.u32 %v496, %v497
      %v500 = vrot.slane %v496, 4
      %v502 = vshrl.u32 %v339, 16
      %v504 = vrot.slane %v502, 7
      %v505 = vshll.u32 %v339, 16
      %v507 = vor.u32 %v504, %v505
      %v508 = vsel %vm356, %v500, %v507
      %v509 = vrot.slane %v504, 4
      %v511 = vshrl.u32 %v340, 16
      %v513 = vrot.slane %v511, 7
      %v514 = vshll.u32 %v340, 16
      %v516 = vor.u32 %v513, %v514
      %v517 = vrot.slane %v513, 4
      %v519 = vshrl.u32 %v341, 16
      %v521 = vrot.slane %v519, 7
      %v522 = vshll.u32 %v341, 16
      %v524 = vor.u32 %v521, %v522
      %v525 = vsel %vm356, %v517, %v524
      %v526 = vrot.slane %v521, 4
      %v528 = vshrl.u32 %v342, 16
      %v530 = vrot.slane %v528, 7
      %v531 = vshll.u32 %v342, 16
      %v533 = vor.u32 %v530, %v531
      %v534 = vrot.slane %v530, 4
      %v536 = vshrl.u32 %v343, 16
      %v538 = vrot.slane %v536, 7
      %v539 = vshll.u32 %v343, 16
      %v541 = vor.u32 %v538, %v539
      %v542 = vsel %vm356, %v534, %v541
      %v543 = vrot.slane %v538, 4
      %v545 = vshrl.u32 %v344, 16
      %v547 = vrot.slane %v545, 7
      %v548 = vshll.u32 %v344, 16
      %v550 = vor.u32 %v547, %v548
      %v551 = vrot.slane %v547, 4
      %v553 = vshrl.u32 %v345, 16
      %v555 = vrot.slane %v553, 7
      %v556 = vshll.u32 %v345, 16
      %v558 = vor.u32 %v555, %v556
      %v559 = vsel %vm356, %v551, %v558
      %v560 = vrot.slane %v555, 4
      %v562 = vshrl.u32 %v346, 16
      %v564 = vrot.slane %v562, 7
      %v565 = vshll.u32 %v346, 16
      %v567 = vor.u32 %v564, %v565
      %v568 = vrot.slane %v564, 4
      %v570 = vshrl.u32 %v347, 16
      %v572 = vrot.slane %v570, 7
      %v573 = vshll.u32 %v347, 16
      %v575 = vor.u32 %v572, %v573
      %v576 = vsel %vm356, %v568, %v575
      %v577 = vrot.slane %v572, 4
      %v579 = vshrl.u32 %v348, 16
      %v581 = vrot.slane %v579, 7
      %v582 = vshll.u32 %v348, 16
      %v584 = vor.u32 %v581, %v582
      %v585 = vrot.slane %v581, 4
      %v587 = vshrl.u32 %v349, 16
      %v589 = vrot.slane %v587, 7
      %v590 = vshll.u32 %v349, 16
      %v592 = vor.u32 %v589, %v590
      %v593 = vsel %vm356, %v585, %v592
      %v594 = vrot.slane %v589, 4
      %v596 = vshrl.u32 %v350, 16
      %v598 = vrot.slane %v596, 7
      %v599 = vshll.u32 %v350, 16
      %v601 = vor.u32 %v598, %v599
      %v602 = vrot.slane %v598, 4
      %v604 = vshrl.u32 %v351, 16
      %v606 = vrot.slane %v604, 7
      %v607 = vshll.u32 %v351, 16
      %v609 = vor.u32 %v606, %v607
      %v610 = vsel %vm356, %v602, %v609
      %v611 = vrot.slane %v606, 4
      %v613 = vshrl.u32 %v352, 16
      %v615 = vrot.slane %v613, 7
      %v616 = vshll.u32 %v352, 16
      %v618 = vor.u32 %v615, %v616
      %v619 = vrot.slane %v615, 4
      %v621 = vshrl.u32 %v353, 16
      %v623 = vrot.slane %v621, 7
      %v624 = vshll.u32 %v353, 16
      %v626 = vor.u32 %v623, %v624
      %v627 = vsel %vm356, %v619, %v626
      %v628 = vrot.slane %v623, 4
      %s677 = scalar_lea.vmem [#allocation2], 12
      %vm678 = vcmask 27648
      %vm679 = vsmask.f32 7938
      %vm680 = vmand %vm678, %vm679
      %v681 = vld [vmem:[%s677] sm:$0xf]
      %v682 = vsel %vm680, %v363, %v681
      %683 = vst [vmem:[%s677] sm:$0xf] %v682
      %vm684 = vcmask 27648
      %685 = vst.msk [vmem:[%s677 + $0x4] sm:$0xf] %vm684, %v372
      %vm686 = vcmask 24576
      %vm687 = vmand %vm686, %vm354
      %v688 = vld [vmem:[%s677 + $0x8] sm:$0x1]
      %v689 = vsel %vm687, %v373, %v688
      %690 = vst [vmem:[%s677 + $0x8] sm:$0x1] %v689
      %v691 = vld [vmem:[%s677 + $0xc] sm:$0xf]
      %v692 = vsel %vm680, %v380, %v691
      %693 = vst [vmem:[%s677 + $0xc] sm:$0xf] %v692
      %694 = vst.msk [vmem:[%s677 + $0x10] sm:$0xf] %vm684, %v389
      %v695 = vld [vmem:[%s677 + $0x14] sm:$0x1]
      %v696 = vsel %vm687, %v390, %v695
      %697 = vst [vmem:[%s677 + $0x14] sm:$0x1] %v696
      %v698 = vld [vmem:[%s677 + $0x18] sm:$0xf]
      %v699 = vsel %vm680, %v397, %v698
      %700 = vst [vmem:[%s677 + $0x18] sm:$0xf] %v699
      %701 = vst.msk [vmem:[%s677 + $0x1c] sm:$0xf] %vm684, %v406
      %v702 = vld [vmem:[%s677 + $0x20] sm:$0x1]
      %v703 = vsel %vm687, %v407, %v702
      %704 = vst [vmem:[%s677 + $0x20] sm:$0x1] %v703
      %v705 = vld [vmem:[%s677 + $0x24] sm:$0xf]
      %v706 = vsel %vm680, %v414, %v705
      %707 = vst [vmem:[%s677 + $0x24] sm:$0xf] %v706
      %708 = vst.msk [vmem:[%s677 + $0x28] sm:$0xf] %vm684, %v423
      %v709 = vld [vmem:[%s677 + $0x2c] sm:$0x1]
      %v710 = vsel %vm687, %v424, %v709
      %711 = vst [vmem:[%s677 + $0x2c] sm:$0x1] %v710
      %v712 = vld [vmem:[%s677 + $0x30] sm:$0xf]
      %v713 = vsel %vm680, %v431, %v712
      %714 = vst [vmem:[%s677 + $0x30] sm:$0xf] %v713
      %715 = vst.msk [vmem:[%s677 + $0x34] sm:$0xf] %vm684, %v440
      %v716 = vld [vmem:[%s677 + $0x38] sm:$0x1]
      %v717 = vsel %vm687, %v441, %v716
      %718 = vst [vmem:[%s677 + $0x38] sm:$0x1] %v717
      %v719 = vld [vmem:[%s677 + $0x3c] sm:$0xf]
      %v720 = vsel %vm680, %v448, %v719
      %721 = vst [vmem:[%s677 + $0x3c] sm:$0xf] %v720
      %722 = vst.msk [vmem:[%s677 + $0x40] sm:$0xf] %vm684, %v457
      %v723 = vld [vmem:[%s677 + $0x44] sm:$0x1]
      %v724 = vsel %vm687, %v458, %v723
      %725 = vst [vmem:[%s677 + $0x44] sm:$0x1] %v724
      %v726 = vld [vmem:[%s677 + $0x48] sm:$0xf]
      %v727 = vsel %vm680, %v465, %v726
      %728 = vst [vmem:[%s677 + $0x48] sm:$0xf] %v727
      %729 = vst.msk [vmem:[%s677 + $0x4c] sm:$0xf] %vm684, %v474
      %v730 = vld [vmem:[%s677 + $0x50] sm:$0x1]
      %v731 = vsel %vm687, %v475, %v730
      %732 = vst [vmem:[%s677 + $0x50] sm:$0x1] %v731
      %v733 = vld [vmem:[%s677 + $0x54] sm:$0xf]
      %v734 = vsel %vm680, %v482, %v733
      %735 = vst [vmem:[%s677 + $0x54] sm:$0xf] %v734
      %736 = vst.msk [vmem:[%s677 + $0x58] sm:$0xf] %vm684, %v491
      %v737 = vld [vmem:[%s677 + $0x5c] sm:$0x1]
      %v738 = vsel %vm687, %v492, %v737
      %739 = vst [vmem:[%s677 + $0x5c] sm:$0x1] %v738
      %v740 = vld [vmem:[%s677 + $0x60] sm:$0xf]
      %v741 = vsel %vm680, %v499, %v740
      %742 = vst [vmem:[%s677 + $0x60] sm:$0xf] %v741
      %743 = vst.msk [vmem:[%s677 + $0x64] sm:$0xf] %vm684, %v508
      %v744 = vld [vmem:[%s677 + $0x68] sm:$0x1]
      %v745 = vsel %vm687, %v509, %v744
      %746 = vst [vmem:[%s677 + $0x68] sm:$0x1] %v745
      %v747 = vld [vmem:[%s677 + $0x6c] sm:$0xf]
      %v748 = vsel %vm680, %v516, %v747
      %749 = vst [vmem:[%s677 + $0x6c] sm:$0xf] %v748
      %750 = vst.msk [vmem:[%s677 + $0x70] sm:$0xf] %vm684, %v525
      %v751 = vld [vmem:[%s677 + $0x74] sm:$0x1]
      %v752 = vsel %vm687, %v526, %v751
      %753 = vst [vmem:[%s677 + $0x74] sm:$0x1] %v752
      %v754 = vld [vmem:[%s677 + $0x78] sm:$0xf]
      %v755 = vsel %vm680, %v533, %v754
      %756 = vst [vmem:[%s677 + $0x78] sm:$0xf] %v755
      %757 = vst.msk [vmem:[%s677 + $0x7c] sm:$0xf] %vm684, %v542
      %v758 = vld [vmem:[%s677 + $0x80] sm:$0x1]
      %v759 = vsel %vm687, %v543, %v758
      %760 = vst [vmem:[%s677 + $0x80] sm:$0x1] %v759
      %v761 = vld [vmem:[%s677 + $0x84] sm:$0xf]
      %v762 = vsel %vm680, %v550, %v761
      %763 = vst [vmem:[%s677 + $0x84] sm:$0xf] %v762
      %764 = vst.msk [vmem:[%s677 + $0x88] sm:$0xf] %vm684, %v559
      %v765 = vld [vmem:[%s677 + $0x8c] sm:$0x1]
      %v766 = vsel %vm687, %v560, %v765
      %767 = vst [vmem:[%s677 + $0x8c] sm:$0x1] %v766
      %v768 = vld [vmem:[%s677 + $0x90] sm:$0xf]
      %v769 = vsel %vm680, %v567, %v768
      %770 = vst [vmem:[%s677 + $0x90] sm:$0xf] %v769
      %771 = vst.msk [vmem:[%s677 + $0x94] sm:$0xf] %vm684, %v576
      %v772 = vld [vmem:[%s677 + $0x98] sm:$0x1]
      %v773 = vsel %vm687, %v577, %v772
      %774 = vst [vmem:[%s677 + $0x98] sm:$0x1] %v773
      %v775 = vld [vmem:[%s677 + $0x9c] sm:$0xf]
      %v776 = vsel %vm680, %v584, %v775
      %777 = vst [vmem:[%s677 + $0x9c] sm:$0xf] %v776
      %778 = vst.msk [vmem:[%s677 + $0xa0] sm:$0xf] %vm684, %v593
      %v779 = vld [vmem:[%s677 + $0xa4] sm:$0x1]
      %v780 = vsel %vm687, %v594, %v779
      %781 = vst [vmem:[%s677 + $0xa4] sm:$0x1] %v780
      %v782 = vld [vmem:[%s677 + $0xa8] sm:$0xf]
      %v783 = vsel %vm680, %v601, %v782
      %784 = vst [vmem:[%s677 + $0xa8] sm:$0xf] %v783
      %785 = vst.msk [vmem:[%s677 + $0xac] sm:$0xf] %vm684, %v610
      %v786 = vld [vmem:[%s677 + $0xb0] sm:$0x1]
      %v787 = vsel %vm687, %v611, %v786
      %788 = vst [vmem:[%s677 + $0xb0] sm:$0x1] %v787
      %v789 = vld [vmem:[%s677 + $0xb4] sm:$0xf]
      %v790 = vsel %vm680, %v618, %v789
      %791 = vst [vmem:[%s677 + $0xb4] sm:$0xf] %v790
      %792 = vst.msk [vmem:[%s677 + $0xb8] sm:$0xf] %vm684, %v627
      %v793 = vld [vmem:[%s677 + $0xbc] sm:$0x1]
      %v794 = vsel %vm687, %v628, %v793
      %795 = vst [vmem:[%s677 + $0xbc] sm:$0x1] %v794
      %v796 = vrot.slane %v358, 4
      %v797 = vrot.slane %v796, 4
      %v798 = vrot.slane %v375, 4
      %v799 = vrot.slane %v798, 4
      %v800 = vrot.slane %v392, 4
      %v801 = vrot.slane %v800, 4
      %v802 = vrot.slane %v409, 4
      %v803 = vrot.slane %v802, 4
      %v804 = vrot.slane %v426, 4
      %v805 = vrot.slane %v804, 4
      %v806 = vrot.slane %v443, 4
      %v807 = vrot.slane %v806, 4
      %v808 = vrot.slane %v460, 4
      %v809 = vrot.slane %v808, 4
      %v810 = vrot.slane %v477, 4
      %v811 = vrot.slane %v810, 4
      %v812 = vrot.slane %v494, 4
      %v813 = vrot.slane %v812, 4
      %v814 = vrot.slane %v511, 4
      %v815 = vrot.slane %v814, 4
      %v816 = vrot.slane %v528, 4
      %v817 = vrot.slane %v816, 4
      %v818 = vrot.slane %v545, 4
      %v819 = vrot.slane %v818, 4
      %v820 = vrot.slane %v562, 4
      %v821 = vrot.slane %v820, 4
      %v822 = vrot.slane %v579, 4
      %v823 = vrot.slane %v822, 4
      %v824 = vrot.slane %v596, 4
      %v825 = vrot.slane %v824, 4
      %v826 = vrot.slane %v613, 4
      %v827 = vrot.slane %v826, 4
      %v844 = vld [vmem:[%s677] sm:$0x1]
      %v845 = vsel %vm687, %v797, %v844
      %846 = vst [vmem:[%s677] sm:$0x1] %v845
      %v847 = vld [vmem:[%s677 + $0xc] sm:$0x1]
      %v848 = vsel %vm687, %v799, %v847
      %849 = vst [vmem:[%s677 + $0xc] sm:$0x1] %v848
      %v850 = vld [vmem:[%s677 + $0x18] sm:$0x1]
      %v851 = vsel %vm687, %v801, %v850
      %852 = vst [vmem:[%s677 + $0x18] sm:$0x1] %v851
      %v853 = vld [vmem:[%s677 + $0x24] sm:$0x1]
      %v854 = vsel %vm687, %v803, %v853
      %855 = vst [vmem:[%s677 + $0x24] sm:$0x1] %v854
      %v856 = vld [vmem:[%s677 + $0x30] sm:$0x1]
      %v857 = vsel %vm687, %v805, %v856
      %858 = vst [vmem:[%s677 + $0x30] sm:$0x1] %v857
      %v859 = vld [vmem:[%s677 + $0x3c] sm:$0x1]
      %v860 = vsel %vm687, %v807, %v859
      %861 = vst [vmem:[%s677 + $0x3c] sm:$0x1] %v860
      %v862 = vld [vmem:[%s677 + $0x48] sm:$0x1]
      %v863 = vsel %vm687, %v809, %v862
      %864 = vst [vmem:[%s677 + $0x48] sm:$0x1] %v863
      %v865 = vld [vmem:[%s677 + $0x54] sm:$0x1]
      %v866 = vsel %vm687, %v811, %v865
      %867 = vst [vmem:[%s677 + $0x54] sm:$0x1] %v866
      %v868 = vld [vmem:[%s677 + $0x60] sm:$0x1]
      %v869 = vsel %vm687, %v813, %v868
      %870 = vst [vmem:[%s677 + $0x60] sm:$0x1] %v869
      %v871 = vld [vmem:[%s677 + $0x6c] sm:$0x1]
      %v872 = vsel %vm687, %v815, %v871
      %873 = vst [vmem:[%s677 + $0x6c] sm:$0x1] %v872
      %v874 = vld [vmem:[%s677 + $0x78] sm:$0x1]
      %v875 = vsel %vm687, %v817, %v874
      %876 = vst [vmem:[%s677 + $0x78] sm:$0x1] %v875
      %v877 = vld [vmem:[%s677 + $0x84] sm:$0x1]
      %v878 = vsel %vm687, %v819, %v877
      %879 = vst [vmem:[%s677 + $0x84] sm:$0x1] %v878
      %v880 = vld [vmem:[%s677 + $0x90] sm:$0x1]
      %v881 = vsel %vm687, %v821, %v880
      %882 = vst [vmem:[%s677 + $0x90] sm:$0x1] %v881
      %v883 = vld [vmem:[%s677 + $0x9c] sm:$0x1]
      %v884 = vsel %vm687, %v823, %v883
      %885 = vst [vmem:[%s677 + $0x9c] sm:$0x1] %v884
      %v886 = vld [vmem:[%s677 + $0xa8] sm:$0x1]
      %v887 = vsel %vm687, %v825, %v886
      %888 = vst [vmem:[%s677 + $0xa8] sm:$0x1] %v887
      %v889 = vld [vmem:[%s677 + $0xb4] sm:$0x1]
      %v890 = vsel %vm687, %v827, %v889
      %891 = vst [vmem:[%s677 + $0xb4] sm:$0x1] %v890
      %v892 = vrot.slane %v369, 7
      %v893 = vrot.slane %v892, 4
      %v894 = vrot.slane %v386, 7
      %v895 = vrot.slane %v894, 4
      %v896 = vrot.slane %v403, 7
      %v897 = vrot.slane %v896, 4
      %v898 = vrot.slane %v420, 7
      %v899 = vrot.slane %v898, 4
      %v900 = vrot.slane %v437, 7
      %v901 = vrot.slane %v900, 4
      %v902 = vrot.slane %v454, 7
      %v903 = vrot.slane %v902, 4
      %v904 = vrot.slane %v471, 7
      %v905 = vrot.slane %v904, 4
      %v906 = vrot.slane %v488, 7
      %v907 = vrot.slane %v906, 4
      %v908 = vrot.slane %v505, 7
      %v909 = vrot.slane %v908, 4
      %v910 = vrot.slane %v522, 7
      %v911 = vrot.slane %v910, 4
      %v912 = vrot.slane %v539, 7
      %v913 = vrot.slane %v912, 4
      %v914 = vrot.slane %v556, 7
      %v915 = vrot.slane %v914, 4
      %v916 = vrot.slane %v573, 7
      %v917 = vrot.slane %v916, 4
      %v918 = vrot.slane %v590, 7
      %v919 = vrot.slane %v918, 4
      %v920 = vrot.slane %v607, 7
      %v921 = vrot.slane %v920, 4
      %v922 = vrot.slane %v624, 7
      %v923 = vrot.slane %v922, 4
      %vm940 = vmand %vm686, %vm679
      %v941 = vld [vmem:[%s677 + $0x8] sm:$0x1]
      %v942 = vsel %vm940, %v893, %v941
      %943 = vst [vmem:[%s677 + $0x8] sm:$0x1] %v942
      %v944 = vld [vmem:[%s677 + $0x14] sm:$0x1]
      %v945 = vsel %vm940, %v895, %v944
      %946 = vst [vmem:[%s677 + $0x14] sm:$0x1] %v945
      %v947 = vld [vmem:[%s677 + $0x20] sm:$0x1]
      %v948 = vsel %vm940, %v897, %v947
      %949 = vst [vmem:[%s677 + $0x20] sm:$0x1] %v948
      %v950 = vld [vmem:[%s677 + $0x2c] sm:$0x1]
      %v951 = vsel %vm940, %v899, %v950
      %952 = vst [vmem:[%s677 + $0x2c] sm:$0x1] %v951
      %v953 = vld [vmem:[%s677 + $0x38] sm:$0x1]
      %v954 = vsel %vm940, %v901, %v953
      %955 = vst [vmem:[%s677 + $0x38] sm:$0x1] %v954
      %v956 = vld [vmem:[%s677 + $0x44] sm:$0x1]
      %v957 = vsel %vm940, %v903, %v956
      %958 = vst [vmem:[%s677 + $0x44] sm:$0x1] %v957
      %v959 = vld [vmem:[%s677 + $0x50] sm:$0x1]
      %v960 = vsel %vm940, %v905, %v959
      %961 = vst [vmem:[%s677 + $0x50] sm:$0x1] %v960
      %v962 = vld [vmem:[%s677 + $0x5c] sm:$0x1]
      %v963 = vsel %vm940, %v907, %v962
      %964 = vst [vmem:[%s677 + $0x5c] sm:$0x1] %v963
      %v965 = vld [vmem:[%s677 + $0x68] sm:$0x1]
      %v966 = vsel %vm940, %v909, %v965
      %967 = vst [vmem:[%s677 + $0x68] sm:$0x1] %v966
      %v968 = vld [vmem:[%s677 + $0x74] sm:$0x1]
      %v969 = vsel %vm940, %v911, %v968
      %970 = vst [vmem:[%s677 + $0x74] sm:$0x1] %v969
      %v971 = vld [vmem:[%s677 + $0x80] sm:$0x1]
      %v972 = vsel %vm940, %v913, %v971
      %973 = vst [vmem:[%s677 + $0x80] sm:$0x1] %v972
      %v974 = vld [vmem:[%s677 + $0x8c] sm:$0x1]
      %v975 = vsel %vm940, %v915, %v974
      %976 = vst [vmem:[%s677 + $0x8c] sm:$0x1] %v975
      %v977 = vld [vmem:[%s677 + $0x98] sm:$0x1]
      %v978 = vsel %vm940, %v917, %v977
      %979 = vst [vmem:[%s677 + $0x98] sm:$0x1] %v978
      %v980 = vld [vmem:[%s677 + $0xa4] sm:$0x1]
      %v981 = vsel %vm940, %v919, %v980
      %982 = vst [vmem:[%s677 + $0xa4] sm:$0x1] %v981
      %v983 = vld [vmem:[%s677 + $0xb0] sm:$0x1]
      %v984 = vsel %vm940, %v921, %v983
      %985 = vst [vmem:[%s677 + $0xb0] sm:$0x1] %v984
      %v986 = vld [vmem:[%s677 + $0xbc] sm:$0x1]
      %v987 = vsel %vm940, %v923, %v986
      %988 = vst [vmem:[%s677 + $0xbc] sm:$0x1] %v987
      %s989 = scalar_lea.vmem [#allocation2], 24
      %v990 = vld [vmem:[%s989] sm:$0xf]
      %v991 = vld [vmem:[%s989 + $0x4] sm:$0xf]
      %v992 = vld [vmem:[%s989 + $0x8] sm:$0x1]
      %993 = vst.msk [vmem:[#allocation2] sm:$0xf] %vm684, %v990
      %994 = vst.msk [vmem:[#allocation2 + $0x4] sm:$0xf] %vm684, %v991
      %vm995 = vcmask 24576
      %996 = vst.msk [vmem:[#allocation2 + $0x8] sm:$0x1] %vm995, %v992
      %s997 = scalar_lea.vmem [#allocation2], 180
      %v998 = vld [vmem:[%s997] sm:$0xf]
      %v999 = vld [vmem:[%s997 + $0x4] sm:$0xf]
      %v1000 = vld [vmem:[%s997 + $0x8] sm:$0x1]
      %s1001 = scalar_lea.vmem [#allocation2], 204
      %1002 = vst.msk [vmem:[%s1001] sm:$0xf] %vm684, %v998
      %1003 = vst.msk [vmem:[%s1001 + $0x4] sm:$0xf] %vm684, %v999
      %1004 = vst.msk [vmem:[%s1001 + $0x8] sm:$0x1] %vm995, %v1000
      %v1005 = vld [vmem:[%s1] sm:$0xf]
      %v1006 = vld [vmem:[%s1 + $0x4] sm:$0x3]
      %s1007 = scalar_lea.vmem %s1, 8
      %v1008 = vld [vmem:[%s1007] sm:$0xf]
      %v1009 = vld [vmem:[%s1007 + $0x4] sm:$0x3]
      %s1010 = scalar_lea.vmem %s1, 16
      %v1011 = vld [vmem:[%s1010] sm:$0xf]
      %v1012 = vld [vmem:[%s1010 + $0x4] sm:$0x3]
      %v1013 = vld [vmem:[%s2] sm:$0x1]
      %v1014 = vld [vmem:[#allocation2] sm:$0xf]
      %v1015 = vld [vmem:[#allocation2 + $0x4] sm:$0xf]
      %v1016 = vld [vmem:[#allocation2 + $0xc] sm:$0xf]
      %v1017 = vld [vmem:[#allocation2 + $0x10] sm:$0xf]
      %v1018 = vld [vmem:[#allocation2 + $0x18] sm:$0xf]
      %v1019 = vld [vmem:[#allocation2 + $0x1c] sm:$0xf]
      %v1020 = vld [vmem:[#allocation2 + $0x24] sm:$0xf]
      %v1021 = vld [vmem:[#allocation2 + $0x28] sm:$0xf]
      %v1022 = vld [vmem:[#allocation2 + $0x30] sm:$0xf]
      %v1023 = vld [vmem:[#allocation2 + $0x34] sm:$0xf]
      %v1024 = vld [vmem:[#allocation2 + $0x3c] sm:$0xf]
      %v1025 = vld [vmem:[#allocation2 + $0x40] sm:$0xf]
      %v1026 = vld [vmem:[#allocation2 + $0x48] sm:$0xf]
      %v1027 = vld [vmem:[#allocation2 + $0x4c] sm:$0xf]
      %v1028 = vld [vmem:[#allocation2 + $0x54] sm:$0xf]
      %v1029 = vld [vmem:[#allocation2 + $0x58] sm:$0xf]
      %v1030 = vld [vmem:[#allocation2 + $0x60] sm:$0xf]
      %v1031 = vld [vmem:[#allocation2 + $0x64] sm:$0xf]
      %v1032 = vld [vmem:[#allocation2 + $0x6c] sm:$0xf]
      %v1033 = vld [vmem:[#allocation2 + $0x70] sm:$0xf]
      %v1034 = vld [vmem:[#allocation2 + $0x8] sm:$0x1]
      %v1035 = vld [vmem:[#allocation2 + $0x14] sm:$0x1]
      %v1036 = vld [vmem:[#allocation2 + $0x20] sm:$0x1]
      %v1037 = vld [vmem:[#allocation2 + $0x2c] sm:$0x1]
      %v1038 = vld [vmem:[#allocation2 + $0x38] sm:$0x1]
      %v1039 = vld [vmem:[#allocation2 + $0x44] sm:$0x1]
      %v1040 = vld [vmem:[#allocation2 + $0x50] sm:$0x1]
      %v1041 = vld [vmem:[#allocation2 + $0x5c] sm:$0x1]
      %v1042 = vld [vmem:[#allocation2 + $0x68] sm:$0x1]
      %v1043 = vld [vmem:[#allocation2 + $0x74] sm:$0x1]
      %v1044 = vld [vmem:[#allocation2] sm:$0xe]
      %v1045 = vld [vmem:[#allocation2 + $0xc] sm:$0xe]
      %v1046 = vld [vmem:[#allocation2 + $0x18] sm:$0xe]
      %v1047 = vld [vmem:[#allocation2 + $0x24] sm:$0xe]
      %v1048 = vld [vmem:[#allocation2 + $0x30] sm:$0xe]
      %v1049 = vld [vmem:[#allocation2 + $0x3c] sm:$0xe]
      %v1050 = vld [vmem:[#allocation2 + $0x48] sm:$0xe]
      %v1051 = vld [vmem:[#allocation2 + $0x54] sm:$0xe]
      %v1052 = vld [vmem:[#allocation2 + $0x60] sm:$0xe]
      %v1053 = vld [vmem:[#allocation2 + $0x6c] sm:$0xe]
      %v1074 = vunpack.c.l.b16 %v1014
      %v1075 = vunpack.c.l.b16 %v1015
      %v1076 = vunpack.c.l.b16 %v1016
      %v1077 = vunpack.c.l.b16 %v1017
      %v1078 = vunpack.c.l.b16 %v1018
      %v1079 = vunpack.c.l.b16 %v1019
      %v1080 = vunpack.c.l.b16 %v1020
      %v1081 = vunpack.c.l.b16 %v1021
      %v1082 = vunpack.c.l.b16 %v1022
      %v1083 = vunpack.c.l.b16 %v1023
      %v1084 = vunpack.c.l.b16 %v1024
      %v1085 = vunpack.c.l.b16 %v1025
      %v1086 = vunpack.c.l.b16 %v1026
      %v1087 = vunpack.c.l.b16 %v1027
      %v1088 = vunpack.c.l.b16 %v1028
      %v1089 = vunpack.c.l.b16 %v1029
      %v1090 = vunpack.c.l.b16 %v1030
      %v1091 = vunpack.c.l.b16 %v1031
      %v1092 = vunpack.c.l.b16 %v1032
      %v1093 = vunpack.c.l.b16 %v1033
      %v1094 = vpack.c.b16 %v1075, %v1074
      %v1095 = vpack.c.b16 %v1077, %v1076
      %v1096 = vpack.c.b16 %v1079, %v1078
      %v1097 = vpack.c.b16 %v1081, %v1080
      %v1098 = vpack.c.b16 %v1083, %v1082
      %v1099 = vpack.c.b16 %v1085, %v1084
      %v1100 = vpack.c.b16 %v1087, %v1086
      %v1101 = vpack.c.b16 %v1089, %v1088
      %v1102 = vpack.c.b16 %v1091, %v1090
      %v1103 = vpack.c.b16 %v1093, %v1092
      %v1114 = vunpack.c.l.b16 %v1034
      %v1115 = vunpack.c.l.b16 %v1035
      %v1116 = vunpack.c.l.b16 %v1036
      %v1117 = vunpack.c.l.b16 %v1037
      %v1118 = vunpack.c.l.b16 %v1038
      %v1119 = vunpack.c.l.b16 %v1039
      %v1120 = vunpack.c.l.b16 %v1040
      %v1121 = vunpack.c.l.b16 %v1041
      %v1122 = vunpack.c.l.b16 %v1042
      %v1123 = vunpack.c.l.b16 %v1043
      %v1124 = vpack.c.b16 %v1114, %v1114
      %v1125 = vpack.c.b16 %v1115, %v1115
      %v1126 = vpack.c.b16 %v1116, %v1116
      %v1127 = vpack.c.b16 %v1117, %v1117
      %v1128 = vpack.c.b16 %v1118, %v1118
      %v1129 = vpack.c.b16 %v1119, %v1119
      %v1130 = vpack.c.b16 %v1120, %v1120
      %v1131 = vpack.c.b16 %v1121, %v1121
      %v1132 = vpack.c.b16 %v1122, %v1122
      %v1133 = vpack.c.b16 %v1123, %v1123
      %vm1134 = vsmask.f32 7424
      %v1136 = vshrl.u32 %v1094, 16
      %v1138 = vshll.u32 %v1094, 16
      %v1140 = vrot.slane %v1138, 1
      %v1141 = vor.u32 %v1136, %v1140
      %v1143 = vshll.u32 %v1124, 16
      %v1145 = vrot.slane %v1143, 1
      %v1146 = vsel %vm1134, %v1141, %v1145
      %v1148 = vshrl.u32 %v1095, 16
      %v1150 = vshll.u32 %v1095, 16
      %v1152 = vrot.slane %v1150, 1
      %v1153 = vor.u32 %v1148, %v1152
      %v1155 = vshll.u32 %v1125, 16
      %v1157 = vrot.slane %v1155, 1
      %v1158 = vsel %vm1134, %v1153, %v1157
      %v1160 = vshrl.u32 %v1096, 16
      %v1162 = vshll.u32 %v1096, 16
      %v1164 = vrot.slane %v1162, 1
      %v1165 = vor.u32 %v1160, %v1164
      %v1167 = vshll.u32 %v1126, 16
      %v1169 = vrot.slane %v1167, 1
      %v1170 = vsel %vm1134, %v1165, %v1169
      %v1172 = vshrl.u32 %v1097, 16
      %v1174 = vshll.u32 %v1097, 16
      %v1176 = vrot.slane %v1174, 1
      %v1177 = vor.u32 %v1172, %v1176
      %v1179 = vshll.u32 %v1127, 16
      %v1181 = vrot.slane %v1179, 1
      %v1182 = vsel %vm1134, %v1177, %v1181
      %v1184 = vshrl.u32 %v1098, 16
      %v1186 = vshll.u32 %v1098, 16
      %v1188 = vrot.slane %v1186, 1
      %v1189 = vor.u32 %v1184, %v1188
      %v1191 = vshll.u32 %v1128, 16
      %v1193 = vrot.slane %v1191, 1
      %v1194 = vsel %vm1134, %v1189, %v1193
      %v1196 = vshrl.u32 %v1099, 16
      %v1198 = vshll.u32 %v1099, 16
      %v1200 = vrot.slane %v1198, 1
      %v1201 = vor.u32 %v1196, %v1200
      %v1203 = vshll.u32 %v1129, 16
      %v1205 = vrot.slane %v1203, 1
      %v1206 = vsel %vm1134, %v1201, %v1205
      %v1208 = vshrl.u32 %v1100, 16
      %v1210 = vshll.u32 %v1100, 16
      %v1212 = vrot.slane %v1210, 1
      %v1213 = vor.u32 %v1208, %v1212
      %v1215 = vshll.u32 %v1130, 16
      %v1217 = vrot.slane %v1215, 1
      %v1218 = vsel %vm1134, %v1213, %v1217
      %v1220 = vshrl.u32 %v1101, 16
      %v1222 = vshll.u32 %v1101, 16
      %v1224 = vrot.slane %v1222, 1
      %v1225 = vor.u32 %v1220, %v1224
      %v1227 = vshll.u32 %v1131, 16
      %v1229 = vrot.slane %v1227, 1
      %v1230 = vsel %vm1134, %v1225, %v1229
      %v1232 = vshrl.u32 %v1102, 16
      %v1234 = vshll.u32 %v1102, 16
      %v1236 = vrot.slane %v1234, 1
      %v1237 = vor.u32 %v1232, %v1236
      %v1239 = vshll.u32 %v1132, 16
      %v1241 = vrot.slane %v1239, 1
      %v1242 = vsel %vm1134, %v1237, %v1241
      %v1244 = vshrl.u32 %v1103, 16
      %v1246 = vshll.u32 %v1103, 16
      %v1248 = vrot.slane %v1246, 1
      %v1249 = vor.u32 %v1244, %v1248
      %v1251 = vshll.u32 %v1133, 16
      %v1253 = vrot.slane %v1251, 1
      %v1254 = vsel %vm1134, %v1249, %v1253
      %1255 = vrot.lane.b32.xlu0 %v1146, 4
      %v1256 = vpop.permute.xlu0 %1255
      %1257 = vrot.lane.b32.xlu0 %v1158, 4
      %v1258 = vpop.permute.xlu0 %1257
      %1259 = vrot.lane.b32.xlu0 %v1170, 4
      %v1260 = vpop.permute.xlu0 %1259
      %1261 = vrot.lane.b32.xlu0 %v1182, 4
      %v1262 = vpop.permute.xlu0 %1261
      %1263 = vrot.lane.b32.xlu0 %v1194, 4
      %v1264 = vpop.permute.xlu0 %1263
      %1265 = vrot.lane.b32.xlu0 %v1206, 4
      %v1266 = vpop.permute.xlu0 %1265
      %1267 = vrot.lane.b32.xlu0 %v1218, 4
      %v1268 = vpop.permute.xlu0 %1267
      %1269 = vrot.lane.b32.xlu0 %v1230, 4
      %v1270 = vpop.permute.xlu0 %1269
      %1271 = vrot.lane.b32.xlu0 %v1242, 4
      %v1272 = vpop.permute.xlu0 %1271
      %1273 = vrot.lane.b32.xlu0 %v1254, 4
      %v1274 = vpop.permute.xlu0 %1273
      %v1285 = vunpack.c.l.b16 %v1044
      %v1286 = vunpack.c.l.b16 %v1045
      %v1287 = vunpack.c.l.b16 %v1046
      %v1288 = vunpack.c.l.b16 %v1047
      %v1289 = vunpack.c.l.b16 %v1048
      %v1290 = vunpack.c.l.b16 %v1049
      %v1291 = vunpack.c.l.b16 %v1050
      %v1292 = vunpack.c.l.b16 %v1051
      %v1293 = vunpack.c.l.b16 %v1052
      %v1294 = vunpack.c.l.b16 %v1053
      %v1295 = vpack.c.b16 %v1075, %v1285
      %v1296 = vpack.c.b16 %v1077, %v1286
      %v1297 = vpack.c.b16 %v1079, %v1287
      %v1298 = vpack.c.b16 %v1081, %v1288
      %v1299 = vpack.c.b16 %v1083, %v1289
      %v1300 = vpack.c.b16 %v1085, %v1290
      %v1301 = vpack.c.b16 %v1087, %v1291
      %v1302 = vpack.c.b16 %v1089, %v1292
      %v1303 = vpack.c.b16 %v1091, %v1293
      %v1304 = vpack.c.b16 %v1093, %v1294
      %vm1305 = vcmask 1046528
      %v1306 = vrot.slane %v1295, 1
      %v1307 = vrot.slane %v1124, 1
      %v1308 = vsel %vm1305, %v1306, %v1307
      %v1309 = vrot.slane %v1296, 1
      %v1310 = vrot.slane %v1125, 1
      %v1311 = vsel %vm1305, %v1309, %v1310
      %v1312 = vrot.slane %v1297, 1
      %v1313 = vrot.slane %v1126, 1
      %v1314 = vsel %vm1305, %v1312, %v1313
      %v1315 = vrot.slane %v1298, 1
      %v1316 = vrot.slane %v1127, 1
      %v1317 = vsel %vm1305, %v1315, %v1316
      %v1318 = vrot.slane %v1299, 1
      %v1319 = vrot.slane %v1128, 1
      %v1320 = vsel %vm1305, %v1318, %v1319
      %v1321 = vrot.slane %v1300, 1
      %v1322 = vrot.slane %v1129, 1
      %v1323 = vsel %vm1305, %v1321, %v1322
      %v1324 = vrot.slane %v1301, 1
      %v1325 = vrot.slane %v1130, 1
      %v1326 = vsel %vm1305, %v1324, %v1325
      %v1327 = vrot.slane %v1302, 1
      %v1328 = vrot.slane %v1131, 1
      %v1329 = vsel %vm1305, %v1327, %v1328
      %v1330 = vrot.slane %v1303, 1
      %v1331 = vrot.slane %v1132, 1
      %v1332 = vsel %vm1305, %v1330, %v1331
      %v1333 = vrot.slane %v1304, 1
      %v1334 = vrot.slane %v1133, 1
      %v1335 = vsel %vm1305, %v1333, %v1334
      %1336 = vrot.lane.b32.xlu0 %v1308, 8
      %v1337 = vpop.permute.xlu0 %1336
      %1338 = vrot.lane.b32.xlu0 %v1311, 8
      %v1339 = vpop.permute.xlu0 %1338
      %1340 = vrot.lane.b32.xlu0 %v1314, 8
      %v1341 = vpop.permute.xlu0 %1340
      %1342 = vrot.lane.b32.xlu0 %v1317, 8
      %v1343 = vpop.permute.xlu0 %1342
      %1344 = vrot.lane.b32.xlu0 %v1320, 8
      %v1345 = vpop.permute.xlu0 %1344
      %1346 = vrot.lane.b32.xlu0 %v1323, 8
      %v1347 = vpop.permute.xlu0 %1346
      %1348 = vrot.lane.b32.xlu0 %v1326, 8
      %v1349 = vpop.permute.xlu0 %1348
      %1350 = vrot.lane.b32.xlu0 %v1329, 8
      %v1351 = vpop.permute.xlu0 %1350
      %1352 = vrot.lane.b32.xlu0 %v1332, 8
      %v1353 = vpop.permute.xlu0 %1352
      %1354 = vrot.lane.b32.xlu0 %v1335, 8
      %v1355 = vpop.permute.xlu0 %1354
      %vm1356 = vcmask 31744
      %v1358 = vsel %vm1356, %v1094, %v1256
      %v1360 = vsel %vm1356, %v1095, %v1258
      %v1362 = vsel %vm1356, %v1096, %v1260
      %v1364 = vsel %vm1356, %v1097, %v1262
      %v1366 = vsel %vm1356, %v1098, %v1264
      %v1368 = vsel %vm1356, %v1099, %v1266
      %v1370 = vsel %vm1356, %v1100, %v1268
      %v1372 = vsel %vm1356, %v1101, %v1270
      %v1374 = vsel %vm1356, %v1102, %v1272
      %v1376 = vsel %vm1356, %v1103, %v1274
      %vm1377 = vcmask 64512
      %v1379 = vsel %vm1377, %v1358, %v1337
      %v1381 = vsel %vm1377, %v1360, %v1339
      %v1383 = vsel %vm1377, %v1362, %v1341
      %v1385 = vsel %vm1377, %v1364, %v1343
      %v1387 = vsel %vm1377, %v1366, %v1345
      %v1389 = vsel %vm1377, %v1368, %v1347
      %v1391 = vsel %vm1377, %v1370, %v1349
      %v1393 = vsel %vm1377, %v1372, %v1351
      %v1395 = vsel %vm1377, %v1374, %v1353
      %v1397 = vsel %vm1377, %v1376, %v1355
      %v1400 = vunpack.c.l.b16 %v1008
      %v1401 = vunpack.c.l.b16 %v1009
      %v1402 = vpack.c.b16 %v1401, %v1400
      %vm1403 = vcmask 97280
      %v1404 = vsel %vm1403, %v1381, 0
      %v1406 = vsel %vm1403, %v1383, 0
      %v1408 = vsel %vm1403, %v1385, 0
      %v1410 = vsel %vm1403, %v1387, 0
      %v1412 = vsel %vm1403, %v1389, 0
      %v1414 = vsel %vm1403, %v1391, 0
      %v1416 = vsel %vm1403, %v1393, 0
      %v1418 = vsel %vm1403, %v1395, 0
      %vm1420 = vcmask 1045504
      %v1422 = vsel %vm1420, %v1402, 0
      %1424 = vmatprep.subr.bf16.mxu0 0
      %1425 = vmatpush1.bf16.msra.mxu0 0
      %1426 = vmatprep.subr.bf16.mxu0 0
      %1427 = vmatpush1.bf16.msra.mxu0 0
      %1428 = vmatprep.subr.bf16.mxu0 0
      %1429 = vmatpush1.bf16.msra.mxu0 0
      %1430 = vmatprep.subr.bf16.mxu0 0
      %1431 = vmatpush1.bf16.msra.mxu0 0
      %1432 = vmatprep.subr.bf16.mxu0 0
      %1433 = vmatpush1.bf16.msra.mxu0 0
      %1434 = vmatprep.subr.bf16.mxu0 0
      %1435 = vmatpush1.bf16.msra.mxu0 0
      %1436 = vmatprep.subr.bf16.mxu0 0
      %1437 = vmatpush1.bf16.msra.mxu0 0
      %1438 = vmatprep.subr.bf16.mxu0 0
      %1439 = vmatpush1.bf16.msra.mxu0 %v1422
      %1440 = vmatprep.subr.bf16.mxu0 0
      %1441 = vmatpush2.bf16.msra.mxu0 0
      %1442 = vmatprep.subr.bf16.mxu0 0
      %1443 = vmatpush2.bf16.msra.mxu0 0
      %1444 = vmatprep.subr.bf16.mxu0 0
      %1445 = vmatpush2.bf16.msra.mxu0 0
      %1446 = vmatprep.subr.bf16.mxu0 0
      %1447 = vmatpush2.bf16.msra.mxu0 0
      %1448 = vmatprep.subr.bf16.mxu0 0
      %1449 = vmatpush2.bf16.msra.mxu0 0
      %1450 = vmatprep.subr.bf16.mxu0 0
      %1451 = vmatpush2.bf16.msra.mxu0 0
      %1452 = vmatprep.subr.bf16.mxu0 0
      %1453 = vmatpush2.bf16.msra.mxu0 0
      %1454 = vmatprep.subr.bf16.mxu0 0
      %1455 = vmatpush2.bf16.msra.mxu0 0
      %1456 = vmatprep.mubr.bf16.mxu0 0
      %1457 = vmatmul.mubr.bf16.gmra.mxu0 %v1404
      %v1458 = vpop.f32.mrf.mxu0
      %v1459 = vadd.f32 0.0, %v1458
      %v1460 = vpop.f32.mrf.mxu0
      %v1461 = vpop.f32.mrf.mxu0
      %v1462 = vadd.f32 0.0, %v1461
      %v1463 = vpop.f32.mrf.mxu0
      %1464 = vmatprep.mubr.bf16.mxu0 0
      %1465 = vmatmul.mubr.bf16.gmra.mxu0 %v1406
      %v1466 = vpop.f32.mrf.mxu0
      %v1467 = vadd.f32 0.0, %v1466
      %v1468 = vpop.f32.mrf.mxu0
      %v1469 = vpop.f32.mrf.mxu0
      %v1470 = vadd.f32 0.0, %v1469
      %v1471 = vpop.f32.mrf.mxu0
      %1472 = vmatprep.mubr.bf16.mxu0 0
      %1473 = vmatmul.mubr.bf16.gmra.mxu0 %v1408
      %v1474 = vpop.f32.mrf.mxu0
      %v1475 = vadd.f32 0.0, %v1474
      %v1476 = vpop.f32.mrf.mxu0
      %v1477 = vpop.f32.mrf.mxu0
      %v1478 = vadd.f32 0.0, %v1477
      %v1479 = vpop.f32.mrf.mxu0
      %1480 = vmatprep.mubr.bf16.mxu0 0
      %1481 = vmatmul.mubr.bf16.gmra.mxu0 %v1410
      %v1482 = vpop.f32.mrf.mxu0
      %v1483 = vadd.f32 0.0, %v1482
      %v1484 = vpop.f32.mrf.mxu0
      %v1485 = vpop.f32.mrf.mxu0
      %v1486 = vadd.f32 0.0, %v1485
      %v1487 = vpop.f32.mrf.mxu0
      %1488 = vmatprep.mubr.bf16.mxu0 0
      %1489 = vmatmul.mubr.bf16.gmra.mxu0 %v1412
      %v1490 = vpop.f32.mrf.mxu0
      %v1491 = vadd.f32 0.0, %v1490
      %v1492 = vpop.f32.mrf.mxu0
      %v1493 = vpop.f32.mrf.mxu0
      %v1494 = vadd.f32 0.0, %v1493
      %v1495 = vpop.f32.mrf.mxu0
      %1496 = vmatprep.mubr.bf16.mxu0 0
      %1497 = vmatmul.mubr.bf16.gmra.mxu0 %v1414
      %v1498 = vpop.f32.mrf.mxu0
      %v1499 = vadd.f32 0.0, %v1498
      %v1500 = vpop.f32.mrf.mxu0
      %v1501 = vpop.f32.mrf.mxu0
      %v1502 = vadd.f32 0.0, %v1501
      %v1503 = vpop.f32.mrf.mxu0
      %1504 = vmatprep.mubr.bf16.mxu0 0
      %1505 = vmatmul.mubr.bf16.gmra.mxu0 %v1416
      %v1506 = vpop.f32.mrf.mxu0
      %v1507 = vadd.f32 0.0, %v1506
      %v1508 = vpop.f32.mrf.mxu0
      %v1509 = vpop.f32.mrf.mxu0
      %v1510 = vadd.f32 0.0, %v1509
      %v1511 = vpop.f32.mrf.mxu0
      %1512 = vmatprep.mubr.bf16.mxu0 0
      %1513 = vmatmul.mubr.bf16.gmra.mxu0 %v1418
      %v1514 = vpop.f32.mrf.mxu0
      %v1515 = vadd.f32 0.0, %v1514
      %v1516 = vpop.f32.mrf.mxu0
      %v1517 = vpop.f32.mrf.mxu0
      %v1518 = vadd.f32 0.0, %v1517
      %v1519 = vpop.f32.mrf.mxu0
      %1520 = vdwg.mxu0
      %v1523 = vunpack.c.l.b16 %v1005
      %v1524 = vunpack.c.l.b16 %v1006
      %v1525 = vpack.c.b16 %v1524, %v1523
      %v1526 = vsel %vm1403, %v1379, 0
      %v1529 = vsel %vm1420, %v1525, 0
      %1531 = vmatprep.subr.bf16.mxu0 0
      %1532 = vmatpush1.bf16.msra.mxu0 0
      %1533 = vmatprep.subr.bf16.mxu0 0
      %1534 = vmatpush1.bf16.msra.mxu0 0
      %1535 = vmatprep.subr.bf16.mxu0 0
      %1536 = vmatpush1.bf16.msra.mxu0 0
      %1537 = vmatprep.subr.bf16.mxu0 0
      %1538 = vmatpush1.bf16.msra.mxu0 0
      %1539 = vmatprep.subr.bf16.mxu0 0
      %1540 = vmatpush1.bf16.msra.mxu0 0
      %1541 = vmatprep.subr.bf16.mxu0 0
      %1542 = vmatpush1.bf16.msra.mxu0 0
      %1543 = vmatprep.subr.bf16.mxu0 0
      %1544 = vmatpush1.bf16.msra.mxu0 0
      %1545 = vmatprep.subr.bf16.mxu0 0
      %1546 = vmatpush1.bf16.msra.mxu0 %v1529
      %1547 = vmatprep.subr.bf16.mxu0 0
      %1548 = vmatpush2.bf16.msra.mxu0 0
      %1549 = vmatprep.subr.bf16.mxu0 0
      %1550 = vmatpush2.bf16.msra.mxu0 0
      %1551 = vmatprep.subr.bf16.mxu0 0
      %1552 = vmatpush2.bf16.msra.mxu0 0
      %1553 = vmatprep.subr.bf16.mxu0 0
      %1554 = vmatpush2.bf16.msra.mxu0 0
      %1555 = vmatprep.subr.bf16.mxu0 0
      %1556 = vmatpush2.bf16.msra.mxu0 0
      %1557 = vmatprep.subr.bf16.mxu0 0
      %1558 = vmatpush2.bf16.msra.mxu0 0
      %1559 = vmatprep.subr.bf16.mxu0 0
      %1560 = vmatpush2.bf16.msra.mxu0 0
      %1561 = vmatprep.subr.bf16.mxu0 0
      %1562 = vmatpush2.bf16.msra.mxu0 0
      %1563 = vmatprep.mubr.bf16.mxu0 0
      %1564 = vmatmul.mubr.bf16.gmra.mxu0 %v1526
      %v1565 = vpop.f32.mrf.mxu0
      %v1566 = vadd.f32 %v1459, %v1565
      %v1567 = vpop.f32.mrf.mxu0
      %v1568 = vpop.f32.mrf.mxu0
      %v1569 = vadd.f32 %v1462, %v1568
      %v1570 = vpop.f32.mrf.mxu0
      %1571 = vmatprep.mubr.bf16.mxu0 0
      %1572 = vmatmul.mubr.bf16.gmra.mxu0 %v1404
      %v1573 = vpop.f32.mrf.mxu0
      %v1574 = vadd.f32 %v1467, %v1573
      %v1575 = vpop.f32.mrf.mxu0
      %v1576 = vpop.f32.mrf.mxu0
      %v1577 = vadd.f32 %v1470, %v1576
      %v1578 = vpop.f32.mrf.mxu0
      %1579 = vmatprep.mubr.bf16.mxu0 0
      %1580 = vmatmul.mubr.bf16.gmra.mxu0 %v1406
      %v1581 = vpop.f32.mrf.mxu0
      %v1582 = vadd.f32 %v1475, %v1581
      %v1583 = vpop.f32.mrf.mxu0
      %v1584 = vpop.f32.mrf.mxu0
      %v1585 = vadd.f32 %v1478, %v1584
      %v1586 = vpop.f32.mrf.mxu0
      %1587 = vmatprep.mubr.bf16.mxu0 0
      %1588 = vmatmul.mubr.bf16.gmra.mxu0 %v1408
      %v1589 = vpop.f32.mrf.mxu0
      %v1590 = vadd.f32 %v1483, %v1589
      %v1591 = vpop.f32.mrf.mxu0
      %v1592 = vpop.f32.mrf.mxu0
      %v1593 = vadd.f32 %v1486, %v1592
      %v1594 = vpop.f32.mrf.mxu0
      %1595 = vmatprep.mubr.bf16.mxu0 0
      %1596 = vmatmul.mubr.bf16.gmra.mxu0 %v1410
      %v1597 = vpop.f32.mrf.mxu0
      %v1598 = vadd.f32 %v1491, %v1597
      %v1599 = vpop.f32.mrf.mxu0
      %v1600 = vpop.f32.mrf.mxu0
      %v1601 = vadd.f32 %v1494, %v1600
      %v1602 = vpop.f32.mrf.mxu0
      %1603 = vmatprep.mubr.bf16.mxu0 0
      %1604 = vmatmul.mubr.bf16.gmra.mxu0 %v1412
      %v1605 = vpop.f32.mrf.mxu0
      %v1606 = vadd.f32 %v1499, %v1605
      %v1607 = vpop.f32.mrf.mxu0
      %v1608 = vpop.f32.mrf.mxu0
      %v1609 = vadd.f32 %v1502, %v1608
      %v1610 = vpop.f32.mrf.mxu0
      %1611 = vmatprep.mubr.bf16.mxu0 0
      %1612 = vmatmul.mubr.bf16.gmra.mxu0 %v1414
      %v1613 = vpop.f32.mrf.mxu0
      %v1614 = vadd.f32 %v1507, %v1613
      %v1615 = vpop.f32.mrf.mxu0
      %v1616 = vpop.f32.mrf.mxu0
      %v1617 = vadd.f32 %v1510, %v1616
      %v1618 = vpop.f32.mrf.mxu0
      %1619 = vmatprep.mubr.bf16.mxu0 0
      %1620 = vmatmul.mubr.bf16.gmra.mxu0 %v1416
      %v1621 = vpop.f32.mrf.mxu0
      %v1622 = vadd.f32 %v1515, %v1621
      %v1623 = vpop.f32.mrf.mxu0
      %v1624 = vpop.f32.mrf.mxu0
      %v1625 = vadd.f32 %v1518, %v1624
      %v1626 = vpop.f32.mrf.mxu0
      %1627 = vdwg.mxu0
      %v1630 = vunpack.c.l.b16 %v1011
      %v1631 = vunpack.c.l.b16 %v1012
      %v1632 = vpack.c.b16 %v1631, %v1630
      %v1633 = vsel %vm1403, %v1397, 0
      %v1636 = vsel %vm1420, %v1632, 0
      %1638 = vmatprep.subr.bf16.mxu0 0
      %1639 = vmatpush1.bf16.msra.mxu0 0
      %1640 = vmatprep.subr.bf16.mxu0 0
      %1641 = vmatpush1.bf16.msra.mxu0 0
      %1642 = vmatprep.subr.bf16.mxu0 0
      %1643 = vmatpush1.bf16.msra.mxu0 0
      %1644 = vmatprep.subr.bf16.mxu0 0
      %1645 = vmatpush1.bf16.msra.mxu0 0
      %1646 = vmatprep.subr.bf16.mxu0 0
      %1647 = vmatpush1.bf16.msra.mxu0 0
      %1648 = vmatprep.subr.bf16.mxu0 0
      %1649 = vmatpush1.bf16.msra.mxu0 0
      %1650 = vmatprep.subr.bf16.mxu0 0
      %1651 = vmatpush1.bf16.msra.mxu0 0
      %1652 = vmatprep.subr.bf16.mxu0 0
      %1653 = vmatpush1.bf16.msra.mxu0 %v1636
      %1654 = vmatprep.subr.bf16.mxu0 0
      %1655 = vmatpush2.bf16.msra.mxu0 0
      %1656 = vmatprep.subr.bf16.mxu0 0
      %1657 = vmatpush2.bf16.msra.mxu0 0
      %1658 = vmatprep.subr.bf16.mxu0 0
      %1659 = vmatpush2.bf16.msra.mxu0 0
      %1660 = vmatprep.subr.bf16.mxu0 0
      %1661 = vmatpush2.bf16.msra.mxu0 0
      %1662 = vmatprep.subr.bf16.mxu0 0
      %1663 = vmatpush2.bf16.msra.mxu0 0
      %1664 = vmatprep.subr.bf16.mxu0 0
      %1665 = vmatpush2.bf16.msra.mxu0 0
      %1666 = vmatprep.subr.bf16.mxu0 0
      %1667 = vmatpush2.bf16.msra.mxu0 0
      %1668 = vmatprep.subr.bf16.mxu0 0
      %1669 = vmatpush2.bf16.msra.mxu0 0
      %1670 = vmatprep.mubr.bf16.mxu0 0
      %1671 = vmatmul.mubr.bf16.gmra.mxu0 %v1406
      %v1672 = vpop.f32.mrf.mxu0
      %v1673 = vadd.f32 0.0, %v1672
      %v1674 = vpop.f32.mrf.mxu0
      %v1675 = vpop.f32.mrf.mxu0
      %v1676 = vadd.f32 0.0, %v1675
      %v1677 = vpop.f32.mrf.mxu0
      %1678 = vmatprep.mubr.bf16.mxu0 0
      %1679 = vmatmul.mubr.bf16.gmra.mxu0 %v1408
      %v1680 = vpop.f32.mrf.mxu0
      %v1681 = vadd.f32 0.0, %v1680
      %v1682 = vpop.f32.mrf.mxu0
      %v1683 = vpop.f32.mrf.mxu0
      %v1684 = vadd.f32 0.0, %v1683
      %v1685 = vpop.f32.mrf.mxu0
      %1686 = vmatprep.mubr.bf16.mxu0 0
      %1687 = vmatmul.mubr.bf16.gmra.mxu0 %v1410
      %v1688 = vpop.f32.mrf.mxu0
      %v1689 = vadd.f32 0.0, %v1688
      %v1690 = vpop.f32.mrf.mxu0
      %v1691 = vpop.f32.mrf.mxu0
      %v1692 = vadd.f32 0.0, %v1691
      %v1693 = vpop.f32.mrf.mxu0
      %1694 = vmatprep.mubr.bf16.mxu0 0
      %1695 = vmatmul.mubr.bf16.gmra.mxu0 %v1412
      %v1696 = vpop.f32.mrf.mxu0
      %v1697 = vadd.f32 0.0, %v1696
      %v1698 = vpop.f32.mrf.mxu0
      %v1699 = vpop.f32.mrf.mxu0
      %v1700 = vadd.f32 0.0, %v1699
      %v1701 = vpop.f32.mrf.mxu0
      %1702 = vmatprep.mubr.bf16.mxu0 0
      %1703 = vmatmul.mubr.bf16.gmra.mxu0 %v1414
      %v1704 = vpop.f32.mrf.mxu0
      %v1705 = vadd.f32 0.0, %v1704
      %v1706 = vpop.f32.mrf.mxu0
      %v1707 = vpop.f32.mrf.mxu0
      %v1708 = vadd.f32 0.0, %v1707
      %v1709 = vpop.f32.mrf.mxu0
      %1710 = vmatprep.mubr.bf16.mxu0 0
      %1711 = vmatmul.mubr.bf16.gmra.mxu0 %v1416
      %v1712 = vpop.f32.mrf.mxu0
      %v1713 = vadd.f32 0.0, %v1712
      %v1714 = vpop.f32.mrf.mxu0
      %v1715 = vpop.f32.mrf.mxu0
      %v1716 = vadd.f32 0.0, %v1715
      %v1717 = vpop.f32.mrf.mxu0
      %1718 = vmatprep.mubr.bf16.mxu0 0
      %1719 = vmatmul.mubr.bf16.gmra.mxu0 %v1418
      %v1720 = vpop.f32.mrf.mxu0
      %v1721 = vadd.f32 0.0, %v1720
      %v1722 = vpop.f32.mrf.mxu0
      %v1723 = vpop.f32.mrf.mxu0
      %v1724 = vadd.f32 0.0, %v1723
      %v1725 = vpop.f32.mrf.mxu0
      %1726 = vmatprep.mubr.bf16.mxu0 0
      %1727 = vmatmul.mubr.bf16.gmra.mxu0 %v1633
      %v1728 = vpop.f32.mrf.mxu0
      %v1729 = vadd.f32 0.0, %v1728
      %v1730 = vpop.f32.mrf.mxu0
      %v1731 = vpop.f32.mrf.mxu0
      %v1732 = vadd.f32 0.0, %v1731
      %v1733 = vpop.f32.mrf.mxu0
      %1734 = vdwg.mxu0
      %v1735 = vadd.f32 %v1566, %v1673
      %v1736 = vadd.f32 %v1569, %v1676
      %v1737 = vadd.f32 %v1574, %v1681
      %v1738 = vadd.f32 %v1577, %v1684
      %v1739 = vadd.f32 %v1582, %v1689
      %v1740 = vadd.f32 %v1585, %v1692
      %v1741 = vadd.f32 %v1590, %v1697
      %v1742 = vadd.f32 %v1593, %v1700
      %v1743 = vadd.f32 %v1598, %v1705
      %v1744 = vadd.f32 %v1601, %v1708
      %v1745 = vadd.f32 %v1606, %v1713
      %v1746 = vadd.f32 %v1609, %v1716
      %v1747 = vadd.f32 %v1614, %v1721
      %v1748 = vadd.f32 %v1617, %v1724
      %v1749 = vadd.f32 %v1622, %v1729
      %v1750 = vadd.f32 %v1625, %v1732
      %v1752 = vlaneseq
      %v1753 = vshrl.u32 %v1752, 7
      %v1754 = vsub.s32 0, %v1753
      %v1755 = vrot.slane %v1013, %v1754
      %v1757 = vadd.f32 %v1735, %v1755
      %v1758 = vadd.f32 %v1736, %v1755
      %v1759 = vadd.f32 %v1737, %v1755
      %v1760 = vadd.f32 %v1738, %v1755
      %v1761 = vadd.f32 %v1739, %v1755
      %v1762 = vadd.f32 %v1740, %v1755
      %v1763 = vadd.f32 %v1741, %v1755
      %v1764 = vadd.f32 %v1742, %v1755
      %v1765 = vadd.f32 %v1743, %v1755
      %v1766 = vadd.f32 %v1744, %v1755
      %v1767 = vadd.f32 %v1745, %v1755
      %v1768 = vadd.f32 %v1746, %v1755
      %v1769 = vadd.f32 %v1747, %v1755
      %v1770 = vadd.f32 %v1748, %v1755
      %v1771 = vadd.f32 %v1749, %v1755
      %v1772 = vadd.f32 %v1750, %v1755
      %v1773 = vsel %vm1356, %v1757, 0.0
      %v1774 = vsel %vm1356, %v1758, 0.0
      %v1775 = vadd.f32 %v1773, %v1774
      %v1776 = vsel %vm1356, %v1759, 0.0
      %v1777 = vadd.f32 %v1775, %v1776
      %v1778 = vsel %vm1356, %v1760, 0.0
      %v1779 = vadd.f32 %v1777, %v1778
      %v1780 = vsel %vm1356, %v1761, 0.0
      %v1781 = vadd.f32 %v1779, %v1780
      %v1782 = vsel %vm1356, %v1762, 0.0
      %v1783 = vadd.f32 %v1781, %v1782
      %v1784 = vsel %vm1356, %v1763, 0.0
      %v1785 = vadd.f32 %v1783, %v1784
      %v1786 = vsel %vm1356, %v1764, 0.0
      %v1787 = vadd.f32 %v1785, %v1786
      %v1788 = vsel %vm1356, %v1765, 0.0
      %v1789 = vadd.f32 %v1787, %v1788
      %v1790 = vsel %vm1356, %v1766, 0.0
      %v1791 = vadd.f32 %v1789, %v1790
      %v1792 = vsel %vm1356, %v1767, 0.0
      %v1793 = vadd.f32 %v1791, %v1792
      %v1794 = vsel %vm1356, %v1768, 0.0
      %v1795 = vadd.f32 %v1793, %v1794
      %v1796 = vsel %vm1356, %v1769, 0.0
      %v1797 = vadd.f32 %v1795, %v1796
      %v1798 = vsel %vm1356, %v1770, 0.0
      %v1799 = vadd.f32 %v1797, %v1798
      %v1800 = vsel %vm1356, %v1771, 0.0
      %v1801 = vadd.f32 %v1799, %v1800
      %v1802 = vsel %vm1356, %v1772, 0.0
      %v1803 = vadd.f32 %v1801, %v1802
      %v1804 = vrot.slane %v1803, 4
      %v1805 = vadd.f32 %v1803, %v1804
      %v1806 = vrot.slane %v1805, 2
      %v1807 = vadd.f32 %v1805, %v1806
      %v1808 = vrot.slane %v1807, 1
      %v1809 = vadd.f32 %v1807, %v1808
      %v1810 = vadd.f32 %v1809, 0.0
      %v1811 = vmul.f32 %v1757, %v1757
      %v1812 = vmul.f32 %v1758, %v1758
      %v1813 = vmul.f32 %v1759, %v1759
      %v1814 = vmul.f32 %v1760, %v1760
      %v1815 = vmul.f32 %v1761, %v1761
      %v1816 = vmul.f32 %v1762, %v1762
      %v1817 = vmul.f32 %v1763, %v1763
      %v1818 = vmul.f32 %v1764, %v1764
      %v1819 = vmul.f32 %v1765, %v1765
      %v1820 = vmul.f32 %v1766, %v1766
      %v1821 = vmul.f32 %v1767, %v1767
      %v1822 = vmul.f32 %v1768, %v1768
      %v1823 = vmul.f32 %v1769, %v1769
      %v1824 = vmul.f32 %v1770, %v1770
      %v1825 = vmul.f32 %v1771, %v1771
      %v1826 = vmul.f32 %v1772, %v1772
      %v1827 = vsel %vm1356, %v1811, 0.0
      %v1828 = vsel %vm1356, %v1812, 0.0
      %v1829 = vadd.f32 %v1827, %v1828
      %v1830 = vsel %vm1356, %v1813, 0.0
      %v1831 = vadd.f32 %v1829, %v1830
      %v1832 = vsel %vm1356, %v1814, 0.0
      %v1833 = vadd.f32 %v1831, %v1832
      %v1834 = vsel %vm1356, %v1815, 0.0
      %v1835 = vadd.f32 %v1833, %v1834
      %v1836 = vsel %vm1356, %v1816, 0.0
      %v1837 = vadd.f32 %v1835, %v1836
      %v1838 = vsel %vm1356, %v1817, 0.0
      %v1839 = vadd.f32 %v1837, %v1838
      %v1840 = vsel %vm1356, %v1818, 0.0
      %v1841 = vadd.f32 %v1839, %v1840
      %v1842 = vsel %vm1356, %v1819, 0.0
      %v1843 = vadd.f32 %v1841, %v1842
      %v1844 = vsel %vm1356, %v1820, 0.0
      %v1845 = vadd.f32 %v1843, %v1844
      %v1846 = vsel %vm1356, %v1821, 0.0
      %v1847 = vadd.f32 %v1845, %v1846
      %v1848 = vsel %vm1356, %v1822, 0.0
      %v1849 = vadd.f32 %v1847, %v1848
      %v1850 = vsel %vm1356, %v1823, 0.0
      %v1851 = vadd.f32 %v1849, %v1850
      %v1852 = vsel %vm1356, %v1824, 0.0
      %v1853 = vadd.f32 %v1851, %v1852
      %v1854 = vsel %vm1356, %v1825, 0.0
      %v1855 = vadd.f32 %v1853, %v1854
      %v1856 = vsel %vm1356, %v1826, 0.0
      %v1857 = vadd.f32 %v1855, %v1856
      %v1858 = vrot.slane %v1857, 4
      %v1859 = vadd.f32 %v1857, %v1858
      %v1860 = vrot.slane %v1859, 2
      %v1861 = vadd.f32 %v1859, %v1860
      %v1862 = vrot.slane %v1861, 1
      %v1863 = vadd.f32 %v1861, %v1862
      %v1864 = vadd.f32 %v1863, 0.0
      %1865 = vst.msk [vmem:[#allocation3] sm:$0xff] %vm1356, %v1757
      %1866 = vst.msk [vmem:[#allocation3 + $0x8] sm:$0xff] %vm1356, %v1758
      %1867 = vst.msk [vmem:[#allocation3 + $0x10] sm:$0xff] %vm1356, %v1759
      %1868 = vst.msk [vmem:[#allocation3 + $0x18] sm:$0xff] %vm1356, %v1760
      %1869 = vst.msk [vmem:[#allocation3 + $0x20] sm:$0xff] %vm1356, %v1761
      %1870 = vst.msk [vmem:[#allocation3 + $0x28] sm:$0xff] %vm1356, %v1762
      %1871 = vst.msk [vmem:[#allocation3 + $0x30] sm:$0xff] %vm1356, %v1763
      %1872 = vst.msk [vmem:[#allocation3 + $0x38] sm:$0xff] %vm1356, %v1764
      %1873 = vst.msk [vmem:[#allocation3 + $0x40] sm:$0xff] %vm1356, %v1765
      %1874 = vst.msk [vmem:[#allocation3 + $0x48] sm:$0xff] %vm1356, %v1766
      %1875 = vst.msk [vmem:[#allocation3 + $0x50] sm:$0xff] %vm1356, %v1767
      %1876 = vst.msk [vmem:[#allocation3 + $0x58] sm:$0xff] %vm1356, %v1768
      %1877 = vst.msk [vmem:[#allocation3 + $0x60] sm:$0xff] %vm1356, %v1769
      %1878 = vst.msk [vmem:[#allocation3 + $0x68] sm:$0xff] %vm1356, %v1770
      %1879 = vst.msk [vmem:[#allocation3 + $0x70] sm:$0xff] %vm1356, %v1771
      %1880 = vst.msk [vmem:[#allocation3 + $0x78] sm:$0xff] %vm1356, %v1772
      %s1881 = scalar_lea.vmem [#allocation2], 96
      %v1882 = vld [vmem:[%s1881] sm:$0xf]
      %v1883 = vld [vmem:[%s1881 + $0x4] sm:$0xf]
      %v1884 = vld [vmem:[%s1881 + $0xc] sm:$0xf]
      %v1885 = vld [vmem:[%s1881 + $0x10] sm:$0xf]
      %v1886 = vld [vmem:[%s1881 + $0x18] sm:$0xf]
      %v1887 = vld [vmem:[%s1881 + $0x1c] sm:$0xf]
      %v1888 = vld [vmem:[%s1881 + $0x24] sm:$0xf]
      %v1889 = vld [vmem:[%s1881 + $0x28] sm:$0xf]
      %v1890 = vld [vmem:[%s1881 + $0x30] sm:$0xf]
      %v1891 = vld [vmem:[%s1881 + $0x34] sm:$0xf]
      %v1892 = vld [vmem:[%s1881 + $0x3c] sm:$0xf]
      %v1893 = vld [vmem:[%s1881 + $0x40] sm:$0xf]
      %v1894 = vld [vmem:[%s1881 + $0x48] sm:$0xf]
      %v1895 = vld [vmem:[%s1881 + $0x4c] sm:$0xf]
      %v1896 = vld [vmem:[%s1881 + $0x54] sm:$0xf]
      %v1897 = vld [vmem:[%s1881 + $0x58] sm:$0xf]
      %v1898 = vld [vmem:[%s1881 + $0x60] sm:$0xf]
      %v1899 = vld [vmem:[%s1881 + $0x64] sm:$0xf]
      %v1900 = vld [vmem:[%s1881 + $0x6c] sm:$0xf]
      %v1901 = vld [vmem:[%s1881 + $0x70] sm:$0xf]
      %v1902 = vld [vmem:[%s1881 + $0x8] sm:$0x1]
      %v1903 = vld [vmem:[%s1881 + $0x14] sm:$0x1]
      %v1904 = vld [vmem:[%s1881 + $0x20] sm:$0x1]
      %v1905 = vld [vmem:[%s1881 + $0x2c] sm:$0x1]
      %v1906 = vld [vmem:[%s1881 + $0x38] sm:$0x1]
      %v1907 = vld [vmem:[%s1881 + $0x44] sm:$0x1]
      %v1908 = vld [vmem:[%s1881 + $0x50] sm:$0x1]
      %v1909 = vld [vmem:[%s1881 + $0x5c] sm:$0x1]
      %v1910 = vld [vmem:[%s1881 + $0x68] sm:$0x1]
      %v1911 = vld [vmem:[%s1881 + $0x74] sm:$0x1]
      %v1912 = vld [vmem:[%s1881] sm:$0xe]
      %v1913 = vld [vmem:[%s1881 + $0xc] sm:$0xe]
      %v1914 = vld [vmem:[%s1881 + $0x18] sm:$0xe]
      %v1915 = vld [vmem:[%s1881 + $0x24] sm:$0xe]
      %v1916 = vld [vmem:[%s1881 + $0x30] sm:$0xe]
      %v1917 = vld [vmem:[%s1881 + $0x3c] sm:$0xe]
      %v1918 = vld [vmem:[%s1881 + $0x48] sm:$0xe]
      %v1919 = vld [vmem:[%s1881 + $0x54] sm:$0xe]
      %v1920 = vld [vmem:[%s1881 + $0x60] sm:$0xe]
      %v1921 = vld [vmem:[%s1881 + $0x6c] sm:$0xe]
      %v1942 = vunpack.c.l.b16 %v1882
      %v1943 = vunpack.c.l.b16 %v1883
      %v1944 = vunpack.c.l.b16 %v1884
      %v1945 = vunpack.c.l.b16 %v1885
      %v1946 = vunpack.c.l.b16 %v1886
      %v1947 = vunpack.c.l.b16 %v1887
      %v1948 = vunpack.c.l.b16 %v1888
      %v1949 = vunpack.c.l.b16 %v1889
      %v1950 = vunpack.c.l.b16 %v1890
      %v1951 = vunpack.c.l.b16 %v1891
      %v1952 = vunpack.c.l.b16 %v1892
      %v1953 = vunpack.c.l.b16 %v1893
      %v1954 = vunpack.c.l.b16 %v1894
      %v1955 = vunpack.c.l.b16 %v1895
      %v1956 = vunpack.c.l.b16 %v1896
      %v1957 = vunpack.c.l.b16 %v1897
      %v1958 = vunpack.c.l.b16 %v1898
      %v1959 = vunpack.c.l.b16 %v1899
      %v1960 = vunpack.c.l.b16 %v1900
      %v1961 = vunpack.c.l.b16 %v1901
      %v1962 = vpack.c.b16 %v1943, %v1942
      %v1963 = vpack.c.b16 %v1945, %v1944
      %v1964 = vpack.c.b16 %v1947, %v1946
      %v1965 = vpack.c.b16 %v1949, %v1948
      %v1966 = vpack.c.b16 %v1951, %v1950
      %v1967 = vpack.c.b16 %v1953, %v1952
      %v1968 = vpack.c.b16 %v1955, %v1954
      %v1969 = vpack.c.b16 %v1957, %v1956
      %v1970 = vpack.c.b16 %v1959, %v1958
      %v1971 = vpack.c.b16 %v1961, %v1960
      %v1982 = vunpack.c.l.b16 %v1902
      %v1983 = vunpack.c.l.b16 %v1903
      %v1984 = vunpack.c.l.b16 %v1904
      %v1985 = vunpack.c.l.b16 %v1905
      %v1986 = vunpack.c.l.b16 %v1906
      %v1987 = vunpack.c.l.b16 %v1907
      %v1988 = vunpack.c.l.b16 %v1908
      %v1989 = vunpack.c.l.b16 %v1909
      %v1990 = vunpack.c.l.b16 %v1910
      %v1991 = vunpack.c.l.b16 %v1911
      %v1992 = vpack.c.b16 %v1982, %v1982
      %v1993 = vpack.c.b16 %v1983, %v1983
      %v1994 = vpack.c.b16 %v1984, %v1984
      %v1995 = vpack.c.b16 %v1985, %v1985
      %v1996 = vpack.c.b16 %v1986, %v1986
      %v1997 = vpack.c.b16 %v1987, %v1987
      %v1998 = vpack.c.b16 %v1988, %v1988
      %v1999 = vpack.c.b16 %v1989, %v1989
      %v2000 = vpack.c.b16 %v1990, %v1990
      %v2001 = vpack.c.b16 %v1991, %v1991
      %v2003 = vshrl.u32 %v1962, 16
      %v2005 = vshll.u32 %v1962, 16
      %v2007 = vrot.slane %v2005, 1
      %v2008 = vor.u32 %v2003, %v2007
      %v2010 = vshll.u32 %v1992, 16
      %v2012 = vrot.slane %v2010, 1
      %v2013 = vsel %vm1134, %v2008, %v2012
      %v2015 = vshrl.u32 %v1963, 16
      %v2017 = vshll.u32 %v1963, 16
      %v2019 = vrot.slane %v2017, 1
      %v2020 = vor.u32 %v2015, %v2019
      %v2022 = vshll.u32 %v1993, 16
      %v2024 = vrot.slane %v2022, 1
      %v2025 = vsel %vm1134, %v2020, %v2024
      %v2027 = vshrl.u32 %v1964, 16
      %v2029 = vshll.u32 %v1964, 16
      %v2031 = vrot.slane %v2029, 1
      %v2032 = vor.u32 %v2027, %v2031
      %v2034 = vshll.u32 %v1994, 16
      %v2036 = vrot.slane %v2034, 1
      %v2037 = vsel %vm1134, %v2032, %v2036
      %v2039 = vshrl.u32 %v1965, 16
      %v2041 = vshll.u32 %v1965, 16
      %v2043 = vrot.slane %v2041, 1
      %v2044 = vor.u32 %v2039, %v2043
      %v2046 = vshll.u32 %v1995, 16
      %v2048 = vrot.slane %v2046, 1
      %v2049 = vsel %vm1134, %v2044, %v2048
      %v2051 = vshrl.u32 %v1966, 16
      %v2053 = vshll.u32 %v1966, 16
      %v2055 = vrot.slane %v2053, 1
      %v2056 = vor.u32 %v2051, %v2055
      %v2058 = vshll.u32 %v1996, 16
      %v2060 = vrot.slane %v2058, 1
      %v2061 = vsel %vm1134, %v2056, %v2060
      %v2063 = vshrl.u32 %v1967, 16
      %v2065 = vshll.u32 %v1967, 16
      %v2067 = vrot.slane %v2065, 1
      %v2068 = vor.u32 %v2063, %v2067
      %v2070 = vshll.u32 %v1997, 16
      %v2072 = vrot.slane %v2070, 1
      %v2073 = vsel %vm1134, %v2068, %v2072
      %v2075 = vshrl.u32 %v1968, 16
      %v2077 = vshll.u32 %v1968, 16
      %v2079 = vrot.slane %v2077, 1
      %v2080 = vor.u32 %v2075, %v2079
      %v2082 = vshll.u32 %v1998, 16
      %v2084 = vrot.slane %v2082, 1
      %v2085 = vsel %vm1134, %v2080, %v2084
      %v2087 = vshrl.u32 %v1969, 16
      %v2089 = vshll.u32 %v1969, 16
      %v2091 = vrot.slane %v2089, 1
      %v2092 = vor.u32 %v2087, %v2091
      %v2094 = vshll.u32 %v1999, 16
      %v2096 = vrot.slane %v2094, 1
      %v2097 = vsel %vm1134, %v2092, %v2096
      %v2099 = vshrl.u32 %v1970, 16
      %v2101 = vshll.u32 %v1970, 16
      %v2103 = vrot.slane %v2101, 1
      %v2104 = vor.u32 %v2099, %v2103
      %v2106 = vshll.u32 %v2000, 16
      %v2108 = vrot.slane %v2106, 1
      %v2109 = vsel %vm1134, %v2104, %v2108
      %v2111 = vshrl.u32 %v1971, 16
      %v2113 = vshll.u32 %v1971, 16
      %v2115 = vrot.slane %v2113, 1
      %v2116 = vor.u32 %v2111, %v2115
      %v2118 = vshll.u32 %v2001, 16
      %v2120 = vrot.slane %v2118, 1
      %v2121 = vsel %vm1134, %v2116, %v2120
      %2122 = vrot.lane.b32.xlu0 %v2013, 4
      %v2123 = vpop.permute.xlu0 %2122
      %2124 = vrot.lane.b32.xlu0 %v2025, 4
      %v2125 = vpop.permute.xlu0 %2124
      %2126 = vrot.lane.b32.xlu0 %v2037, 4
      %v2127 = vpop.permute.xlu0 %2126
      %2128 = vrot.lane.b32.xlu0 %v2049, 4
      %v2129 = vpop.permute.xlu0 %2128
      %2130 = vrot.lane.b32.xlu0 %v2061, 4
      %v2131 = vpop.permute.xlu0 %2130
      %2132 = vrot.lane.b32.xlu0 %v2073, 4
      %v2133 = vpop.permute.xlu0 %2132
      %2134 = vrot.lane.b32.xlu0 %v2085, 4
      %v2135 = vpop.permute.xlu0 %2134
      %2136 = vrot.lane.b32.xlu0 %v2097, 4
      %v2137 = vpop.permute.xlu0 %2136
      %2138 = vrot.lane.b32.xlu0 %v2109, 4
      %v2139 = vpop.permute.xlu0 %2138
      %2140 = vrot.lane.b32.xlu0 %v2121, 4
      %v2141 = vpop.permute.xlu0 %2140
      %v2152 = vunpack.c.l.b16 %v1912
      %v2153 = vunpack.c.l.b16 %v1913
      %v2154 = vunpack.c.l.b16 %v1914
      %v2155 = vunpack.c.l.b16 %v1915
      %v2156 = vunpack.c.l.b16 %v1916
      %v2157 = vunpack.c.l.b16 %v1917
      %v2158 = vunpack.c.l.b16 %v1918
      %v2159 = vunpack.c.l.b16 %v1919
      %v2160 = vunpack.c.l.b16 %v1920
      %v2161 = vunpack.c.l.b16 %v1921
      %v2162 = vpack.c.b16 %v1943, %v2152
      %v2163 = vpack.c.b16 %v1945, %v2153
      %v2164 = vpack.c.b16 %v1947, %v2154
      %v2165 = vpack.c.b16 %v1949, %v2155
      %v2166 = vpack.c.b16 %v1951, %v2156
      %v2167 = vpack.c.b16 %v1953, %v2157
      %v2168 = vpack.c.b16 %v1955, %v2158
      %v2169 = vpack.c.b16 %v1957, %v2159
      %v2170 = vpack.c.b16 %v1959, %v2160
      %v2171 = vpack.c.b16 %v1961, %v2161
      %v2172 = vrot.slane %v2162, 1
      %v2173 = vrot.slane %v1992, 1
      %v2174 = vsel %vm1305, %v2172, %v2173
      %v2175 = vrot.slane %v2163, 1
      %v2176 = vrot.slane %v1993, 1
      %v2177 = vsel %vm1305, %v2175, %v2176
      %v2178 = vrot.slane %v2164, 1
      %v2179 = vrot.slane %v1994, 1
      %v2180 = vsel %vm1305, %v2178, %v2179
      %v2181 = vrot.slane %v2165, 1
      %v2182 = vrot.slane %v1995, 1
      %v2183 = vsel %vm1305, %v2181, %v2182
      %v2184 = vrot.slane %v2166, 1
      %v2185 = vrot.slane %v1996, 1
      %v2186 = vsel %vm1305, %v2184, %v2185
      %v2187 = vrot.slane %v2167, 1
      %v2188 = vrot.slane %v1997, 1
      %v2189 = vsel %vm1305, %v2187, %v2188
      %v2190 = vrot.slane %v2168, 1
      %v2191 = vrot.slane %v1998, 1
      %v2192 = vsel %vm1305, %v2190, %v2191
      %v2193 = vrot.slane %v2169, 1
      %v2194 = vrot.slane %v1999, 1
      %v2195 = vsel %vm1305, %v2193, %v2194
      %v2196 = vrot.slane %v2170, 1
      %v2197 = vrot.slane %v2000, 1
      %v2198 = vsel %vm1305, %v2196, %v2197
      %v2199 = vrot.slane %v2171, 1
      %v2200 = vrot.slane %v2001, 1
      %v2201 = vsel %vm1305, %v2199, %v2200
      %2202 = vrot.lane.b32.xlu0 %v2174, 8
      %v2203 = vpop.permute.xlu0 %2202
      %2204 = vrot.lane.b32.xlu0 %v2177, 8
      %v2205 = vpop.permute.xlu0 %2204
      %2206 = vrot.lane.b32.xlu0 %v2180, 8
      %v2207 = vpop.permute.xlu0 %2206
      %2208 = vrot.lane.b32.xlu0 %v2183, 8
      %v2209 = vpop.permute.xlu0 %2208
      %2210 = vrot.lane.b32.xlu0 %v2186, 8
      %v2211 = vpop.permute.xlu0 %2210
      %2212 = vrot.lane.b32.xlu0 %v2189, 8
      %v2213 = vpop.permute.xlu0 %2212
      %2214 = vrot.lane.b32.xlu0 %v2192, 8
      %v2215 = vpop.permute.xlu0 %2214
      %2216 = vrot.lane.b32.xlu0 %v2195, 8
      %v2217 = vpop.permute.xlu0 %2216
      %2218 = vrot.lane.b32.xlu0 %v2198, 8
      %v2219 = vpop.permute.xlu0 %2218
      %2220 = vrot.lane.b32.xlu0 %v2201, 8
      %v2221 = vpop.permute.xlu0 %2220
      %v2223 = vsel %vm1356, %v1962, %v2123
      %v2225 = vsel %vm1356, %v1963, %v2125
      %v2227 = vsel %vm1356, %v1964, %v2127
      %v2229 = vsel %vm1356, %v1965, %v2129
      %v2231 = vsel %vm1356, %v1966, %v2131
      %v2233 = vsel %vm1356, %v1967, %v2133
      %v2235 = vsel %vm1356, %v1968, %v2135
      %v2237 = vsel %vm1356, %v1969, %v2137
      %v2239 = vsel %vm1356, %v1970, %v2139
      %v2241 = vsel %vm1356, %v1971, %v2141
      %v2243 = vsel %vm1377, %v2223, %v2203
      %v2245 = vsel %vm1377, %v2225, %v2205
      %v2247 = vsel %vm1377, %v2227, %v2207
      %v2249 = vsel %vm1377, %v2229, %v2209
      %v2251 = vsel %vm1377, %v2231, %v2211
      %v2253 = vsel %vm1377, %v2233, %v2213
      %v2255 = vsel %vm1377, %v2235, %v2215
      %v2257 = vsel %vm1377, %v2237, %v2217
      %v2259 = vsel %vm1377, %v2239, %v2219
      %v2261 = vsel %vm1377, %v2241, %v2221
      %v2262 = vsel %vm1403, %v2245, 0
      %v2264 = vsel %vm1403, %v2247, 0
      %v2266 = vsel %vm1403, %v2249, 0
      %v2268 = vsel %vm1403, %v2251, 0
      %v2270 = vsel %vm1403, %v2253, 0
      %v2272 = vsel %vm1403, %v2255, 0
      %v2274 = vsel %vm1403, %v2257, 0
      %v2276 = vsel %vm1403, %v2259, 0
      %2278 = vmatprep.subr.bf16.mxu0 0
      %2279 = vmatpush1.bf16.msra.mxu0 0
      %2280 = vmatprep.subr.bf16.mxu0 0
      %2281 = vmatpush1.bf16.msra.mxu0 0
      %2282 = vmatprep.subr.bf16.mxu0 0
      %2283 = vmatpush1.bf16.msra.mxu0 0
      %2284 = vmatprep.subr.bf16.mxu0 0
      %2285 = vmatpush1.bf16.msra.mxu0 0
      %2286 = vmatprep.subr.bf16.mxu0 0
      %2287 = vmatpush1.bf16.msra.mxu0 0
      %2288 = vmatprep.subr.bf16.mxu0 0
      %2289 = vmatpush1.bf16.msra.mxu0 0
      %2290 = vmatprep.subr.bf16.mxu0 0
      %2291 = vmatpush1.bf16.msra.mxu0 0
      %2292 = vmatprep.subr.bf16.mxu0 0
      %2293 = vmatpush1.bf16.msra.mxu0 %v1422
      %2294 = vmatprep.subr.bf16.mxu0 0
      %2295 = vmatpush2.bf16.msra.mxu0 0
      %2296 = vmatprep.subr.bf16.mxu0 0
      %2297 = vmatpush2.bf16.msra.mxu0 0
      %2298 = vmatprep.subr.bf16.mxu0 0
      %2299 = vmatpush2.bf16.msra.mxu0 0
      %2300 = vmatprep.subr.bf16.mxu0 0
      %2301 = vmatpush2.bf16.msra.mxu0 0
      %2302 = vmatprep.subr.bf16.mxu0 0
      %2303 = vmatpush2.bf16.msra.mxu0 0
      %2304 = vmatprep.subr.bf16.mxu0 0
      %2305 = vmatpush2.bf16.msra.mxu0 0
      %2306 = vmatprep.subr.bf16.mxu0 0
      %2307 = vmatpush2.bf16.msra.mxu0 0
      %2308 = vmatprep.subr.bf16.mxu0 0
      %2309 = vmatpush2.bf16.msra.mxu0 0
      %2310 = vmatprep.mubr.bf16.mxu0 0
      %2311 = vmatmul.mubr.bf16.gmra.mxu0 %v2262
      %v2312 = vpop.f32.mrf.mxu0
      %v2313 = vadd.f32 0.0, %v2312
      %v2314 = vpop.f32.mrf.mxu0
      %v2315 = vpop.f32.mrf.mxu0
      %v2316 = vadd.f32 0.0, %v2315
      %v2317 = vpop.f32.mrf.mxu0
      %2318 = vmatprep.mubr.bf16.mxu0 0
      %2319 = vmatmul.mubr.bf16.gmra.mxu0 %v2264
      %v2320 = vpop.f32.mrf.mxu0
      %v2321 = vadd.f32 0.0, %v2320
      %v2322 = vpop.f32.mrf.mxu0
      %v2323 = vpop.f32.mrf.mxu0
      %v2324 = vadd.f32 0.0, %v2323
      %v2325 = vpop.f32.mrf.mxu0
      %2326 = vmatprep.mubr.bf16.mxu0 0
      %2327 = vmatmul.mubr.bf16.gmra.mxu0 %v2266
      %v2328 = vpop.f32.mrf.mxu0
      %v2329 = vadd.f32 0.0, %v2328
      %v2330 = vpop.f32.mrf.mxu0
      %v2331 = vpop.f32.mrf.mxu0
      %v2332 = vadd.f32 0.0, %v2331
      %v2333 = vpop.f32.mrf.mxu0
      %2334 = vmatprep.mubr.bf16.mxu0 0
      %2335 = vmatmul.mubr.bf16.gmra.mxu0 %v2268
      %v2336 = vpop.f32.mrf.mxu0
      %v2337 = vadd.f32 0.0, %v2336
      %v2338 = vpop.f32.mrf.mxu0
      %v2339 = vpop.f32.mrf.mxu0
      %v2340 = vadd.f32 0.0, %v2339
      %v2341 = vpop.f32.mrf.mxu0
      %2342 = vmatprep.mubr.bf16.mxu0 0
      %2343 = vmatmul.mubr.bf16.gmra.mxu0 %v2270
      %v2344 = vpop.f32.mrf.mxu0
      %v2345 = vadd.f32 0.0, %v2344
      %v2346 = vpop.f32.mrf.mxu0
      %v2347 = vpop.f32.mrf.mxu0
      %v2348 = vadd.f32 0.0, %v2347
      %v2349 = vpop.f32.mrf.mxu0
      %2350 = vmatprep.mubr.bf16.mxu0 0
      %2351 = vmatmul.mubr.bf16.gmra.mxu0 %v2272
      %v2352 = vpop.f32.mrf.mxu0
      %v2353 = vadd.f32 0.0, %v2352
      %v2354 = vpop.f32.mrf.mxu0
      %v2355 = vpop.f32.mrf.mxu0
      %v2356 = vadd.f32 0.0, %v2355
      %v2357 = vpop.f32.mrf.mxu0
      %2358 = vmatprep.mubr.bf16.mxu0 0
      %2359 = vmatmul.mubr.bf16.gmra.mxu0 %v2274
      %v2360 = vpop.f32.mrf.mxu0
      %v2361 = vadd.f32 0.0, %v2360
      %v2362 = vpop.f32.mrf.mxu0
      %v2363 = vpop.f32.mrf.mxu0
      %v2364 = vadd.f32 0.0, %v2363
      %v2365 = vpop.f32.mrf.mxu0
      %2366 = vmatprep.mubr.bf16.mxu0 0
      %2367 = vmatmul.mubr.bf16.gmra.mxu0 %v2276
      %v2368 = vpop.f32.mrf.mxu0
      %v2369 = vadd.f32 0.0, %v2368
      %v2370 = vpop.f32.mrf.mxu0
      %v2371 = vpop.f32.mrf.mxu0
      %v2372 = vadd.f32 0.0, %v2371
      %v2373 = vpop.f32.mrf.mxu0
      %2374 = vdwg.mxu0
      %v2375 = vsel %vm1403, %v2243, 0
      %2377 = vmatprep.subr.bf16.mxu0 0
      %2378 = vmatpush1.bf16.msra.mxu0 0
      %2379 = vmatprep.subr.bf16.mxu0 0
      %2380 = vmatpush1.bf16.msra.mxu0 0
      %2381 = vmatprep.subr.bf16.mxu0 0
      %2382 = vmatpush1.bf16.msra.mxu0 0
      %2383 = vmatprep.subr.bf16.mxu0 0
      %2384 = vmatpush1.bf16.msra.mxu0 0
      %2385 = vmatprep.subr.bf16.mxu0 0
      %2386 = vmatpush1.bf16.msra.mxu0 0
      %2387 = vmatprep.subr.bf16.mxu0 0
      %2388 = vmatpush1.bf16.msra.mxu0 0
      %2389 = vmatprep.subr.bf16.mxu0 0
      %2390 = vmatpush1.bf16.msra.mxu0 0
      %2391 = vmatprep.subr.bf16.mxu0 0
      %2392 = vmatpush1.bf16.msra.mxu0 %v1529
      %2393 = vmatprep.subr.bf16.mxu0 0
      %2394 = vmatpush2.bf16.msra.mxu0 0
      %2395 = vmatprep.subr.bf16.mxu0 0
      %2396 = vmatpush2.bf16.msra.mxu0 0
      %2397 = vmatprep.subr.bf16.mxu0 0
      %2398 = vmatpush2.bf16.msra.mxu0 0
      %2399 = vmatprep.subr.bf16.mxu0 0
      %2400 = vmatpush2.bf16.msra.mxu0 0
      %2401 = vmatprep.subr.bf16.mxu0 0
      %2402 = vmatpush2.bf16.msra.mxu0 0
      %2403 = vmatprep.subr.bf16.mxu0 0
      %2404 = vmatpush2.bf16.msra.mxu0 0
      %2405 = vmatprep.subr.bf16.mxu0 0
      %2406 = vmatpush2.bf16.msra.mxu0 0
      %2407 = vmatprep.subr.bf16.mxu0 0
      %2408 = vmatpush2.bf16.msra.mxu0 0
      %2409 = vmatprep.mubr.bf16.mxu0 0
      %2410 = vmatmul.mubr.bf16.gmra.mxu0 %v2375
      %v2411 = vpop.f32.mrf.mxu0
      %v2412 = vadd.f32 %v2313, %v2411
      %v2413 = vpop.f32.mrf.mxu0
      %v2414 = vpop.f32.mrf.mxu0
      %v2415 = vadd.f32 %v2316, %v2414
      %v2416 = vpop.f32.mrf.mxu0
      %2417 = vmatprep.mubr.bf16.mxu0 0
      %2418 = vmatmul.mubr.bf16.gmra.mxu0 %v2262
      %v2419 = vpop.f32.mrf.mxu0
      %v2420 = vadd.f32 %v2321, %v2419
      %v2421 = vpop.f32.mrf.mxu0
      %v2422 = vpop.f32.mrf.mxu0
      %v2423 = vadd.f32 %v2324, %v2422
      %v2424 = vpop.f32.mrf.mxu0
      %2425 = vmatprep.mubr.bf16.mxu0 0
      %2426 = vmatmul.mubr.bf16.gmra.mxu0 %v2264
      %v2427 = vpop.f32.mrf.mxu0
      %v2428 = vadd.f32 %v2329, %v2427
      %v2429 = vpop.f32.mrf.mxu0
      %v2430 = vpop.f32.mrf.mxu0
      %v2431 = vadd.f32 %v2332, %v2430
      %v2432 = vpop.f32.mrf.mxu0
      %2433 = vmatprep.mubr.bf16.mxu0 0
      %2434 = vmatmul.mubr.bf16.gmra.mxu0 %v2266
      %v2435 = vpop.f32.mrf.mxu0
      %v2436 = vadd.f32 %v2337, %v2435
      %v2437 = vpop.f32.mrf.mxu0
      %v2438 = vpop.f32.mrf.mxu0
      %v2439 = vadd.f32 %v2340, %v2438
      %v2440 = vpop.f32.mrf.mxu0
      %2441 = vmatprep.mubr.bf16.mxu0 0
      %2442 = vmatmul.mubr.bf16.gmra.mxu0 %v2268
      %v2443 = vpop.f32.mrf.mxu0
      %v2444 = vadd.f32 %v2345, %v2443
      %v2445 = vpop.f32.mrf.mxu0
      %v2446 = vpop.f32.mrf.mxu0
      %v2447 = vadd.f32 %v2348, %v2446
      %v2448 = vpop.f32.mrf.mxu0
      %2449 = vmatprep.mubr.bf16.mxu0 0
      %2450 = vmatmul.mubr.bf16.gmra.mxu0 %v2270
      %v2451 = vpop.f32.mrf.mxu0
      %v2452 = vadd.f32 %v2353, %v2451
      %v2453 = vpop.f32.mrf.mxu0
      %v2454 = vpop.f32.mrf.mxu0
      %v2455 = vadd.f32 %v2356, %v2454
      %v2456 = vpop.f32.mrf.mxu0
      %2457 = vmatprep.mubr.bf16.mxu0 0
      %2458 = vmatmul.mubr.bf16.gmra.mxu0 %v2272
      %v2459 = vpop.f32.mrf.mxu0
      %v2460 = vadd.f32 %v2361, %v2459
      %v2461 = vpop.f32.mrf.mxu0
      %v2462 = vpop.f32.mrf.mxu0
      %v2463 = vadd.f32 %v2364, %v2462
      %v2464 = vpop.f32.mrf.mxu0
      %2465 = vmatprep.mubr.bf16.mxu0 0
      %2466 = vmatmul.mubr.bf16.gmra.mxu0 %v2274
      %v2467 = vpop.f32.mrf.mxu0
      %v2468 = vadd.f32 %v2369, %v2467
      %v2469 = vpop.f32.mrf.mxu0
      %v2470 = vpop.f32.mrf.mxu0
      %v2471 = vadd.f32 %v2372, %v2470
      %v2472 = vpop.f32.mrf.mxu0
      %2473 = vdwg.mxu0
      %v2474 = vsel %vm1403, %v2261, 0
      %2476 = vmatprep.subr.bf16.mxu0 0
      %2477 = vmatpush1.bf16.msra.mxu0 0
      %2478 = vmatprep.subr.bf16.mxu0 0
      %2479 = vmatpush1.bf16.msra.mxu0 0
      %2480 = vmatprep.subr.bf16.mxu0 0
      %2481 = vmatpush1.bf16.msra.mxu0 0
      %2482 = vmatprep.subr.bf16.mxu0 0
      %2483 = vmatpush1.bf16.msra.mxu0 0
      %2484 = vmatprep.subr.bf16.mxu0 0
      %2485 = vmatpush1.bf16.msra.mxu0 0
      %2486 = vmatprep.subr.bf16.mxu0 0
      %2487 = vmatpush1.bf16.msra.mxu0 0
      %2488 = vmatprep.subr.bf16.mxu0 0
      %2489 = vmatpush1.bf16.msra.mxu0 0
      %2490 = vmatprep.subr.bf16.mxu0 0
      %2491 = vmatpush1.bf16.msra.mxu0 %v1636
      %2492 = vmatprep.subr.bf16.mxu0 0
      %2493 = vmatpush2.bf16.msra.mxu0 0
      %2494 = vmatprep.subr.bf16.mxu0 0
      %2495 = vmatpush2.bf16.msra.mxu0 0
      %2496 = vmatprep.subr.bf16.mxu0 0
      %2497 = vmatpush2.bf16.msra.mxu0 0
      %2498 = vmatprep.subr.bf16.mxu0 0
      %2499 = vmatpush2.bf16.msra.mxu0 0
      %2500 = vmatprep.subr.bf16.mxu0 0
      %2501 = vmatpush2.bf16.msra.mxu0 0
      %2502 = vmatprep.subr.bf16.mxu0 0
      %2503 = vmatpush2.bf16.msra.mxu0 0
      %2504 = vmatprep.subr.bf16.mxu0 0
      %2505 = vmatpush2.bf16.msra.mxu0 0
      %2506 = vmatprep.subr.bf16.mxu0 0
      %2507 = vmatpush2.bf16.msra.mxu0 0
      %2508 = vmatprep.mubr.bf16.mxu0 0
      %2509 = vmatmul.mubr.bf16.gmra.mxu0 %v2264
      %v2510 = vpop.f32.mrf.mxu0
      %v2511 = vadd.f32 0.0, %v2510
      %v2512 = vpop.f32.mrf.mxu0
      %v2513 = vpop.f32.mrf.mxu0
      %v2514 = vadd.f32 0.0, %v2513
      %v2515 = vpop.f32.mrf.mxu0
      %2516 = vmatprep.mubr.bf16.mxu0 0
      %2517 = vmatmul.mubr.bf16.gmra.mxu0 %v2266
      %v2518 = vpop.f32.mrf.mxu0
      %v2519 = vadd.f32 0.0, %v2518
      %v2520 = vpop.f32.mrf.mxu0
      %v2521 = vpop.f32.mrf.mxu0
      %v2522 = vadd.f32 0.0, %v2521
      %v2523 = vpop.f32.mrf.mxu0
      %2524 = vmatprep.mubr.bf16.mxu0 0
      %2525 = vmatmul.mubr.bf16.gmra.mxu0 %v2268
      %v2526 = vpop.f32.mrf.mxu0
      %v2527 = vadd.f32 0.0, %v2526
      %v2528 = vpop.f32.mrf.mxu0
      %v2529 = vpop.f32.mrf.mxu0
      %v2530 = vadd.f32 0.0, %v2529
      %v2531 = vpop.f32.mrf.mxu0
      %2532 = vmatprep.mubr.bf16.mxu0 0
      %2533 = vmatmul.mubr.bf16.gmra.mxu0 %v2270
      %v2534 = vpop.f32.mrf.mxu0
      %v2535 = vadd.f32 0.0, %v2534
      %v2536 = vpop.f32.mrf.mxu0
      %v2537 = vpop.f32.mrf.mxu0
      %v2538 = vadd.f32 0.0, %v2537
      %v2539 = vpop.f32.mrf.mxu0
      %2540 = vmatprep.mubr.bf16.mxu0 0
      %2541 = vmatmul.mubr.bf16.gmra.mxu0 %v2272
      %v2542 = vpop.f32.mrf.mxu0
      %v2543 = vadd.f32 0.0, %v2542
      %v2544 = vpop.f32.mrf.mxu0
      %v2545 = vpop.f32.mrf.mxu0
      %v2546 = vadd.f32 0.0, %v2545
      %v2547 = vpop.f32.mrf.mxu0
      %2548 = vmatprep.mubr.bf16.mxu0 0
      %2549 = vmatmul.mubr.bf16.gmra.mxu0 %v2274
      %v2550 = vpop.f32.mrf.mxu0
      %v2551 = vadd.f32 0.0, %v2550
      %v2552 = vpop.f32.mrf.mxu0
      %v2553 = vpop.f32.mrf.mxu0
      %v2554 = vadd.f32 0.0, %v2553
      %v2555 = vpop.f32.mrf.mxu0
      %2556 = vmatprep.mubr.bf16.mxu0 0
      %2557 = vmatmul.mubr.bf16.gmra.mxu0 %v2276
      %v2558 = vpop.f32.mrf.mxu0
      %v2559 = vadd.f32 0.0, %v2558
      %v2560 = vpop.f32.mrf.mxu0
      %v2561 = vpop.f32.mrf.mxu0
      %v2562 = vadd.f32 0.0, %v2561
      %v2563 = vpop.f32.mrf.mxu0
      %2564 = vmatprep.mubr.bf16.mxu0 0
      %2565 = vmatmul.mubr.bf16.gmra.mxu0 %v2474
      %v2566 = vpop.f32.mrf.mxu0
      %v2567 = vadd.f32 0.0, %v2566
      %v2568 = vpop.f32.mrf.mxu0
      %v2569 = vpop.f32.mrf.mxu0
      %v2570 = vadd.f32 0.0, %v2569
      %v2571 = vpop.f32.mrf.mxu0
      %2572 = vdwg.mxu0
      %v2573 = vadd.f32 %v2412, %v2511
      %v2574 = vadd.f32 %v2415, %v2514
      %v2575 = vadd.f32 %v2420, %v2519
      %v2576 = vadd.f32 %v2423, %v2522
      %v2577 = vadd.f32 %v2428, %v2527
      %v2578 = vadd.f32 %v2431, %v2530
      %v2579 = vadd.f32 %v2436, %v2535
      %v2580 = vadd.f32 %v2439, %v2538
      %v2581 = vadd.f32 %v2444, %v2543
      %v2582 = vadd.f32 %v2447, %v2546
      %v2583 = vadd.f32 %v2452, %v2551
      %v2584 = vadd.f32 %v2455, %v2554
      %v2585 = vadd.f32 %v2460, %v2559
      %v2586 = vadd.f32 %v2463, %v2562
      %v2587 = vadd.f32 %v2468, %v2567
      %v2588 = vadd.f32 %v2471, %v2570
      %v2589 = vadd.f32 %v2573, %v1755
      %v2590 = vadd.f32 %v2574, %v1755
      %v2591 = vadd.f32 %v2575, %v1755
      %v2592 = vadd.f32 %v2576, %v1755
      %v2593 = vadd.f32 %v2577, %v1755
      %v2594 = vadd.f32 %v2578, %v1755
      %v2595 = vadd.f32 %v2579, %v1755
      %v2596 = vadd.f32 %v2580, %v1755
      %v2597 = vadd.f32 %v2581, %v1755
      %v2598 = vadd.f32 %v2582, %v1755
      %v2599 = vadd.f32 %v2583, %v1755
      %v2600 = vadd.f32 %v2584, %v1755
      %v2601 = vadd.f32 %v2585, %v1755
      %v2602 = vadd.f32 %v2586, %v1755
      %v2603 = vadd.f32 %v2587, %v1755
      %v2604 = vadd.f32 %v2588, %v1755
      %v2605 = vsel %vm1356, %v2589, 0.0
      %v2606 = vsel %vm1356, %v2590, 0.0
      %v2607 = vadd.f32 %v2605, %v2606
      %v2608 = vsel %vm1356, %v2591, 0.0
      %v2609 = vadd.f32 %v2607, %v2608
      %v2610 = vsel %vm1356, %v2592, 0.0
      %v2611 = vadd.f32 %v2609, %v2610
      %v2612 = vsel %vm1356, %v2593, 0.0
      %v2613 = vadd.f32 %v2611, %v2612
      %v2614 = vsel %vm1356, %v2594, 0.0
      %v2615 = vadd.f32 %v2613, %v2614
      %v2616 = vsel %vm1356, %v2595, 0.0
      %v2617 = vadd.f32 %v2615, %v2616
      %v2618 = vsel %vm1356, %v2596, 0.0
      %v2619 = vadd.f32 %v2617, %v2618
      %v2620 = vsel %vm1356, %v2597, 0.0
      %v2621 = vadd.f32 %v2619, %v2620
      %v2622 = vsel %vm1356, %v2598, 0.0
      %v2623 = vadd.f32 %v2621, %v2622
      %v2624 = vsel %vm1356, %v2599, 0.0
      %v2625 = vadd.f32 %v2623, %v2624
      %v2626 = vsel %vm1356, %v2600, 0.0
      %v2627 = vadd.f32 %v2625, %v2626
      %v2628 = vsel %vm1356, %v2601, 0.0
      %v2629 = vadd.f32 %v2627, %v2628
      %v2630 = vsel %vm1356, %v2602, 0.0
      %v2631 = vadd.f32 %v2629, %v2630
      %v2632 = vsel %vm1356, %v2603, 0.0
      %v2633 = vadd.f32 %v2631, %v2632
      %v2634 = vsel %vm1356, %v2604, 0.0
      %v2635 = vadd.f32 %v2633, %v2634
      %v2636 = vrot.slane %v2635, 4
      %v2637 = vadd.f32 %v2635, %v2636
      %v2638 = vrot.slane %v2637, 2
      %v2639 = vadd.f32 %v2637, %v2638
      %v2640 = vrot.slane %v2639, 1
      %v2641 = vadd.f32 %v2639, %v2640
      %v2642 = vadd.f32 %v1810, %v2641
      %v2643 = vmul.f32 %v2589, %v2589
      %v2644 = vmul.f32 %v2590, %v2590
      %v2645 = vmul.f32 %v2591, %v2591
      %v2646 = vmul.f32 %v2592, %v2592
      %v2647 = vmul.f32 %v2593, %v2593
      %v2648 = vmul.f32 %v2594, %v2594
      %v2649 = vmul.f32 %v2595, %v2595
      %v2650 = vmul.f32 %v2596, %v2596
      %v2651 = vmul.f32 %v2597, %v2597
      %v2652 = vmul.f32 %v2598, %v2598
      %v2653 = vmul.f32 %v2599, %v2599
      %v2654 = vmul.f32 %v2600, %v2600
      %v2655 = vmul.f32 %v2601, %v2601
      %v2656 = vmul.f32 %v2602, %v2602
      %v2657 = vmul.f32 %v2603, %v2603
      %v2658 = vmul.f32 %v2604, %v2604
      %v2659 = vsel %vm1356, %v2643, 0.0
      %v2660 = vsel %vm1356, %v2644, 0.0
      %v2661 = vadd.f32 %v2659, %v2660
      %v2662 = vsel %vm1356, %v2645, 0.0
      %v2663 = vadd.f32 %v2661, %v2662
      %v2664 = vsel %vm1356, %v2646, 0.0
      %v2665 = vadd.f32 %v2663, %v2664
      %v2666 = vsel %vm1356, %v2647, 0.0
      %v2667 = vadd.f32 %v2665, %v2666
      %v2668 = vsel %vm1356, %v2648, 0.0
      %v2669 = vadd.f32 %v2667, %v2668
      %v2670 = vsel %vm1356, %v2649, 0.0
      %v2671 = vadd.f32 %v2669, %v2670
      %v2672 = vsel %vm1356, %v2650, 0.0
      %v2673 = vadd.f32 %v2671, %v2672
      %v2674 = vsel %vm1356, %v2651, 0.0
      %v2675 = vadd.f32 %v2673, %v2674
      %v2676 = vsel %vm1356, %v2652, 0.0
      %v2677 = vadd.f32 %v2675, %v2676
      %v2678 = vsel %vm1356, %v2653, 0.0
      %v2679 = vadd.f32 %v2677, %v2678
      %v2680 = vsel %vm1356, %v2654, 0.0
      %v2681 = vadd.f32 %v2679, %v2680
      %v2682 = vsel %vm1356, %v2655, 0.0
      %v2683 = vadd.f32 %v2681, %v2682
      %v2684 = vsel %vm1356, %v2656, 0.0
      %v2685 = vadd.f32 %v2683, %v2684
      %v2686 = vsel %vm1356, %v2657, 0.0
      %v2687 = vadd.f32 %v2685, %v2686
      %v2688 = vsel %vm1356, %v2658, 0.0
      %v2689 = vadd.f32 %v2687, %v2688
      %v2690 = vrot.slane %v2689, 4
      %v2691 = vadd.f32 %v2689, %v2690
      %v2692 = vrot.slane %v2691, 2
      %v2693 = vadd.f32 %v2691, %v2692
      %v2694 = vrot.slane %v2693, 1
      %v2695 = vadd.f32 %v2693, %v2694
      %v2696 = vadd.f32 %v1864, %v2695
      %s2697 = scalar_lea.vmem [#allocation3], 128
      %2698 = vst.msk [vmem:[%s2697] sm:$0xff] %vm1356, %v2589
      %2699 = vst.msk [vmem:[%s2697 + $0x8] sm:$0xff] %vm1356, %v2590
      %2700 = vst.msk [vmem:[%s2697 + $0x10] sm:$0xff] %vm1356, %v2591
      %2701 = vst.msk [vmem:[%s2697 + $0x18] sm:$0xff] %vm1356, %v2592
      %2702 = vst.msk [vmem:[%s2697 + $0x20] sm:$0xff] %vm1356, %v2593
      %2703 = vst.msk [vmem:[%s2697 + $0x28] sm:$0xff] %vm1356, %v2594
      %2704 = vst.msk [vmem:[%s2697 + $0x30] sm:$0xff] %vm1356, %v2595
      %2705 = vst.msk [vmem:[%s2697 + $0x38] sm:$0xff] %vm1356, %v2596
      %2706 = vst.msk [vmem:[%s2697 + $0x40] sm:$0xff] %vm1356, %v2597
      %2707 = vst.msk [vmem:[%s2697 + $0x48] sm:$0xff] %vm1356, %v2598
      %2708 = vst.msk [vmem:[%s2697 + $0x50] sm:$0xff] %vm1356, %v2599
      %2709 = vst.msk [vmem:[%s2697 + $0x58] sm:$0xff] %vm1356, %v2600
      %2710 = vst.msk [vmem:[%s2697 + $0x60] sm:$0xff] %vm1356, %v2601
      %2711 = vst.msk [vmem:[%s2697 + $0x68] sm:$0xff] %vm1356, %v2602
      %2712 = vst.msk [vmem:[%s2697 + $0x70] sm:$0xff] %vm1356, %v2603
      %2713 = vst.msk [vmem:[%s2697 + $0x78] sm:$0xff] %vm1356, %v2604
      %v2714 = vmul.f32 %v2642, 0.00390625
      %v2715 = vmul.f32 %v2696, 0.00390625
      %v2716 = vmul.f32 %v2714, %v2714
      %v2717 = vsub.f32 %v2715, %v2716
      %v2718 = vmax.f32 %v2717, 0.0
      %v2719 = vadd.f32 %v2718, 1e-05
      %v2720 = vrsqrt.pop %v2719
      %v2721 = vld [vmem:[#allocation3] sm:$0xff]
      %v2722 = vld [vmem:[#allocation3 + $0x8] sm:$0xff]
      %v2723 = vld [vmem:[#allocation3 + $0x10] sm:$0xff]
      %v2724 = vld [vmem:[#allocation3 + $0x18] sm:$0xff]
      %v2725 = vld [vmem:[#allocation3 + $0x20] sm:$0xff]
      %v2726 = vld [vmem:[#allocation3 + $0x28] sm:$0xff]
      %v2727 = vld [vmem:[#allocation3 + $0x30] sm:$0xff]
      %v2728 = vld [vmem:[#allocation3 + $0x38] sm:$0xff]
      %v2729 = vld [vmem:[#allocation3 + $0x40] sm:$0xff]
      %v2730 = vld [vmem:[#allocation3 + $0x48] sm:$0xff]
      %v2731 = vld [vmem:[#allocation3 + $0x50] sm:$0xff]
      %v2732 = vld [vmem:[#allocation3 + $0x58] sm:$0xff]
      %v2733 = vld [vmem:[#allocation3 + $0x60] sm:$0xff]
      %v2734 = vld [vmem:[#allocation3 + $0x68] sm:$0xff]
      %v2735 = vld [vmem:[#allocation3 + $0x70] sm:$0xff]
      %v2736 = vld [vmem:[#allocation3 + $0x78] sm:$0xff]
      %v2737 = vld [vmem:[#allocation3 + $0x80] sm:$0xff]
      %v2738 = vld [vmem:[#allocation3 + $0x88] sm:$0xff]
      %v2739 = vld [vmem:[#allocation3 + $0x90] sm:$0xff]
      %v2740 = vld [vmem:[#allocation3 + $0x98] sm:$0xff]
      %v2741 = vld [vmem:[#allocation3 + $0xa0] sm:$0xff]
      %v2742 = vld [vmem:[#allocation3 + $0xa8] sm:$0xff]
      %v2743 = vld [vmem:[#allocation3 + $0xb0] sm:$0xff]
      %v2744 = vld [vmem:[#allocation3 + $0xb8] sm:$0xff]
      %v2745 = vld [vmem:[#allocation3 + $0xc0] sm:$0xff]
      %v2746 = vld [vmem:[#allocation3 + $0xc8] sm:$0xff]
      %v2747 = vld [vmem:[#allocation3 + $0xd0] sm:$0xff]
      %v2748 = vld [vmem:[#allocation3 + $0xd8] sm:$0xff]
      %v2749 = vld [vmem:[#allocation3 + $0xe0] sm:$0xff]
      %v2750 = vld [vmem:[#allocation3 + $0xe8] sm:$0xff]
      %v2751 = vld [vmem:[#allocation3 + $0xf0] sm:$0xff]
      %v2752 = vld [vmem:[#allocation3 + $0xf8] sm:$0xff]
      %v2753 = vsub.f32 %v2721, %v2714
      %v2754 = vsub.f32 %v2722, %v2714
      %v2755 = vsub.f32 %v2723, %v2714
      %v2756 = vsub.f32 %v2724, %v2714
      %v2757 = vsub.f32 %v2725, %v2714
      %v2758 = vsub.f32 %v2726, %v2714
      %v2759 = vsub.f32 %v2727, %v2714
      %v2760 = vsub.f32 %v2728, %v2714
      %v2761 = vsub.f32 %v2729, %v2714
      %v2762 = vsub.f32 %v2730, %v2714
      %v2763 = vsub.f32 %v2731, %v2714
      %v2764 = vsub.f32 %v2732, %v2714
      %v2765 = vsub.f32 %v2733, %v2714
      %v2766 = vsub.f32 %v2734, %v2714
      %v2767 = vsub.f32 %v2735, %v2714
      %v2768 = vsub.f32 %v2736, %v2714
      %v2769 = vsub.f32 %v2737, %v2714
      %v2770 = vsub.f32 %v2738, %v2714
      %v2771 = vsub.f32 %v2739, %v2714
      %v2772 = vsub.f32 %v2740, %v2714
      %v2773 = vsub.f32 %v2741, %v2714
      %v2774 = vsub.f32 %v2742, %v2714
      %v2775 = vsub.f32 %v2743, %v2714
      %v2776 = vsub.f32 %v2744, %v2714
      %v2777 = vsub.f32 %v2745, %v2714
      %v2778 = vsub.f32 %v2746, %v2714
      %v2779 = vsub.f32 %v2747, %v2714
      %v2780 = vsub.f32 %v2748, %v2714
      %v2781 = vsub.f32 %v2749, %v2714
      %v2782 = vsub.f32 %v2750, %v2714
      %v2783 = vsub.f32 %v2751, %v2714
      %v2784 = vsub.f32 %v2752, %v2714
      %v2785 = vmul.f32 %v2753, %v2720
      %v2786 = vmul.f32 %v2754, %v2720
      %v2787 = vmul.f32 %v2755, %v2720
      %v2788 = vmul.f32 %v2756, %v2720
      %v2789 = vmul.f32 %v2757, %v2720
      %v2790 = vmul.f32 %v2758, %v2720
      %v2791 = vmul.f32 %v2759, %v2720
      %v2792 = vmul.f32 %v2760, %v2720
      %v2793 = vmul.f32 %v2761, %v2720
      %v2794 = vmul.f32 %v2762, %v2720
      %v2795 = vmul.f32 %v2763, %v2720
      %v2796 = vmul.f32 %v2764, %v2720
      %v2797 = vmul.f32 %v2765, %v2720
      %v2798 = vmul.f32 %v2766, %v2720
      %v2799 = vmul.f32 %v2767, %v2720
      %v2800 = vmul.f32 %v2768, %v2720
      %v2801 = vmul.f32 %v2769, %v2720
      %v2802 = vmul.f32 %v2770, %v2720
      %v2803 = vmul.f32 %v2771, %v2720
      %v2804 = vmul.f32 %v2772, %v2720
      %v2805 = vmul.f32 %v2773, %v2720
      %v2806 = vmul.f32 %v2774, %v2720
      %v2807 = vmul.f32 %v2775, %v2720
      %v2808 = vmul.f32 %v2776, %v2720
      %v2809 = vmul.f32 %v2777, %v2720
      %v2810 = vmul.f32 %v2778, %v2720
      %v2811 = vmul.f32 %v2779, %v2720
      %v2812 = vmul.f32 %v2780, %v2720
      %v2813 = vmul.f32 %v2781, %v2720
      %v2814 = vmul.f32 %v2782, %v2720
      %v2815 = vmul.f32 %v2783, %v2720
      %v2816 = vmul.f32 %v2784, %v2720
      %v2817 = vmax.f32 %v2785, 0.0
      %v2818 = vmax.f32 %v2786, 0.0
      %v2819 = vmax.f32 %v2787, 0.0
      %v2820 = vmax.f32 %v2788, 0.0
      %v2821 = vmax.f32 %v2789, 0.0
      %v2822 = vmax.f32 %v2790, 0.0
      %v2823 = vmax.f32 %v2791, 0.0
      %v2824 = vmax.f32 %v2792, 0.0
      %v2825 = vmax.f32 %v2793, 0.0
      %v2826 = vmax.f32 %v2794, 0.0
      %v2827 = vmax.f32 %v2795, 0.0
      %v2828 = vmax.f32 %v2796, 0.0
      %v2829 = vmax.f32 %v2797, 0.0
      %v2830 = vmax.f32 %v2798, 0.0
      %v2831 = vmax.f32 %v2799, 0.0
      %v2832 = vmax.f32 %v2800, 0.0
      %v2833 = vmax.f32 %v2801, 0.0
      %v2834 = vmax.f32 %v2802, 0.0
      %v2835 = vmax.f32 %v2803, 0.0
      %v2836 = vmax.f32 %v2804, 0.0
      %v2837 = vmax.f32 %v2805, 0.0
      %v2838 = vmax.f32 %v2806, 0.0
      %v2839 = vmax.f32 %v2807, 0.0
      %v2840 = vmax.f32 %v2808, 0.0
      %v2841 = vmax.f32 %v2809, 0.0
      %v2842 = vmax.f32 %v2810, 0.0
      %v2843 = vmax.f32 %v2811, 0.0
      %v2844 = vmax.f32 %v2812, 0.0
      %v2845 = vmax.f32 %v2813, 0.0
      %v2846 = vmax.f32 %v2814, 0.0
      %v2847 = vmax.f32 %v2815, 0.0
      %v2848 = vmax.f32 %v2816, 0.0
      %v2849 = vpack.c.bf16 %v2818, %v2817
      %v2850 = vpack.c.bf16 %v2820, %v2819
      %v2851 = vpack.c.bf16 %v2822, %v2821
      %v2852 = vpack.c.bf16 %v2824, %v2823
      %v2853 = vpack.c.bf16 %v2826, %v2825
      %v2854 = vpack.c.bf16 %v2828, %v2827
      %v2855 = vpack.c.bf16 %v2830, %v2829
      %v2856 = vpack.c.bf16 %v2832, %v2831
      %v2857 = vpack.c.bf16 %v2834, %v2833
      %v2858 = vpack.c.bf16 %v2836, %v2835
      %v2859 = vpack.c.bf16 %v2838, %v2837
      %v2860 = vpack.c.bf16 %v2840, %v2839
      %v2861 = vpack.c.bf16 %v2842, %v2841
      %v2862 = vpack.c.bf16 %v2844, %v2843
      %v2863 = vpack.c.bf16 %v2846, %v2845
      %v2864 = vpack.c.bf16 %v2848, %v2847
      %v2881 = vunpack.c.l.b16 %v2849
      %v2882 = vunpack.c.h.b16 %v2849
      %v2883 = vunpack.c.l.b16 %v2850
      %v2884 = vunpack.c.h.b16 %v2850
      %v2885 = vunpack.c.l.b16 %v2851
      %v2886 = vunpack.c.h.b16 %v2851
      %v2887 = vunpack.c.l.b16 %v2852
      %v2888 = vunpack.c.h.b16 %v2852
      %v2889 = vunpack.c.l.b16 %v2853
      %v2890 = vunpack.c.h.b16 %v2853
      %v2891 = vunpack.c.l.b16 %v2854
      %v2892 = vunpack.c.h.b16 %v2854
      %v2893 = vunpack.c.l.b16 %v2855
      %v2894 = vunpack.c.h.b16 %v2855
      %v2895 = vunpack.c.l.b16 %v2856
      %v2896 = vunpack.c.h.b16 %v2856
      %v2897 = vunpack.c.l.b16 %v2857
      %v2898 = vunpack.c.h.b16 %v2857
      %v2899 = vunpack.c.l.b16 %v2858
      %v2900 = vunpack.c.h.b16 %v2858
      %v2901 = vunpack.c.l.b16 %v2859
      %v2902 = vunpack.c.h.b16 %v2859
      %v2903 = vunpack.c.l.b16 %v2860
      %v2904 = vunpack.c.h.b16 %v2860
      %v2905 = vunpack.c.l.b16 %v2861
      %v2906 = vunpack.c.h.b16 %v2861
      %v2907 = vunpack.c.l.b16 %v2862
      %v2908 = vunpack.c.h.b16 %v2862
      %v2909 = vunpack.c.l.b16 %v2863
      %v2910 = vunpack.c.h.b16 %v2863
      %v2911 = vunpack.c.l.b16 %v2864
      %v2912 = vunpack.c.h.b16 %v2864
      %v2913 = vpack.c.b16 %v2881, %v2881
      %v2914 = vpack.c.b16 %v2882, %v2882
      %v2915 = vpack.c.b16 %v2883, %v2883
      %v2916 = vpack.c.b16 %v2884, %v2884
      %v2917 = vpack.c.b16 %v2885, %v2885
      %v2918 = vpack.c.b16 %v2886, %v2886
      %v2919 = vpack.c.b16 %v2887, %v2887
      %v2920 = vpack.c.b16 %v2888, %v2888
      %v2921 = vpack.c.b16 %v2889, %v2889
      %v2922 = vpack.c.b16 %v2890, %v2890
      %v2923 = vpack.c.b16 %v2891, %v2891
      %v2924 = vpack.c.b16 %v2892, %v2892
      %v2925 = vpack.c.b16 %v2893, %v2893
      %v2926 = vpack.c.b16 %v2894, %v2894
      %v2927 = vpack.c.b16 %v2895, %v2895
      %v2928 = vpack.c.b16 %v2896, %v2896
      %v2929 = vpack.c.b16 %v2897, %v2897
      %v2930 = vpack.c.b16 %v2898, %v2898
      %v2931 = vpack.c.b16 %v2899, %v2899
      %v2932 = vpack.c.b16 %v2900, %v2900
      %v2933 = vpack.c.b16 %v2901, %v2901
      %v2934 = vpack.c.b16 %v2902, %v2902
      %v2935 = vpack.c.b16 %v2903, %v2903
      %v2936 = vpack.c.b16 %v2904, %v2904
      %v2937 = vpack.c.b16 %v2905, %v2905
      %v2938 = vpack.c.b16 %v2906, %v2906
      %v2939 = vpack.c.b16 %v2907, %v2907
      %v2940 = vpack.c.b16 %v2908, %v2908
      %v2941 = vpack.c.b16 %v2909, %v2909
      %v2942 = vpack.c.b16 %v2910, %v2910
      %v2943 = vpack.c.b16 %v2911, %v2911
      %v2944 = vpack.c.b16 %v2912, %v2912
      %v2946 = vshrl.u32 %v2913, 16
      %v2948 = vrot.slane %v2946, 7
      %v2949 = vshll.u32 %v2913, 16
      %v2951 = vor.u32 %v2948, %v2949
      %v2952 = vrot.slane %v2948, 4
      %v2954 = vshrl.u32 %v2914, 16
      %v2956 = vrot.slane %v2954, 7
      %v2957 = vshll.u32 %v2914, 16
      %v2959 = vor.u32 %v2956, %v2957
      %v2960 = vsel %vm356, %v2952, %v2959
      %v2961 = vrot.slane %v2956, 4
      %v2963 = vshrl.u32 %v2915, 16
      %v2965 = vrot.slane %v2963, 7
      %v2966 = vshll.u32 %v2915, 16
      %v2968 = vor.u32 %v2965, %v2966
      %v2969 = vrot.slane %v2965, 4
      %v2971 = vshrl.u32 %v2916, 16
      %v2973 = vrot.slane %v2971, 7
      %v2974 = vshll.u32 %v2916, 16
      %v2976 = vor.u32 %v2973, %v2974
      %v2977 = vsel %vm356, %v2969, %v2976
      %v2978 = vrot.slane %v2973, 4
      %v2980 = vshrl.u32 %v2917, 16
      %v2982 = vrot.slane %v2980, 7
      %v2983 = vshll.u32 %v2917, 16
      %v2985 = vor.u32 %v2982, %v2983
      %v2986 = vrot.slane %v2982, 4
      %v2988 = vshrl.u32 %v2918, 16
      %v2990 = vrot.slane %v2988, 7
      %v2991 = vshll.u32 %v2918, 16
      %v2993 = vor.u32 %v2990, %v2991
      %v2994 = vsel %vm356, %v2986, %v2993
      %v2995 = vrot.slane %v2990, 4
      %v2997 = vshrl.u32 %v2919, 16
      %v2999 = vrot.slane %v2997, 7
      %v3000 = vshll.u32 %v2919, 16
      %v3002 = vor.u32 %v2999, %v3000
      %v3003 = vrot.slane %v2999, 4
      %v3005 = vshrl.u32 %v2920, 16
      %v3007 = vrot.slane %v3005, 7
      %v3008 = vshll.u32 %v2920, 16
      %v3010 = vor.u32 %v3007, %v3008
      %v3011 = vsel %vm356, %v3003, %v3010
      %v3012 = vrot.slane %v3007, 4
      %v3014 = vshrl.u32 %v2921, 16
      %v3016 = vrot.slane %v3014, 7
      %v3017 = vshll.u32 %v2921, 16
      %v3019 = vor.u32 %v3016, %v3017
      %v3020 = vrot.slane %v3016, 4
      %v3022 = vshrl.u32 %v2922, 16
      %v3024 = vrot.slane %v3022, 7
      %v3025 = vshll.u32 %v2922, 16
      %v3027 = vor.u32 %v3024, %v3025
      %v3028 = vsel %vm356, %v3020, %v3027
      %v3029 = vrot.slane %v3024, 4
      %v3031 = vshrl.u32 %v2923, 16
      %v3033 = vrot.slane %v3031, 7
      %v3034 = vshll.u32 %v2923, 16
      %v3036 = vor.u32 %v3033, %v3034
      %v3037 = vrot.slane %v3033, 4
      %v3039 = vshrl.u32 %v2924, 16
      %v3041 = vrot.slane %v3039, 7
      %v3042 = vshll.u32 %v2924, 16
      %v3044 = vor.u32 %v3041, %v3042
      %v3045 = vsel %vm356, %v3037, %v3044
      %v3046 = vrot.slane %v3041, 4
      %v3048 = vshrl.u32 %v2925, 16
      %v3050 = vrot.slane %v3048, 7
      %v3051 = vshll.u32 %v2925, 16
      %v3053 = vor.u32 %v3050, %v3051
      %v3054 = vrot.slane %v3050, 4
      %v3056 = vshrl.u32 %v2926, 16
      %v3058 = vrot.slane %v3056, 7
      %v3059 = vshll.u32 %v2926, 16
      %v3061 = vor.u32 %v3058, %v3059
      %v3062 = vsel %vm356, %v3054, %v3061
      %v3063 = vrot.slane %v3058, 4
      %v3065 = vshrl.u32 %v2927, 16
      %v3067 = vrot.slane %v3065, 7
      %v3068 = vshll.u32 %v2927, 16
      %v3070 = vor.u32 %v3067, %v3068
      %v3071 = vrot.slane %v3067, 4
      %v3073 = vshrl.u32 %v2928, 16
      %v3075 = vrot.slane %v3073, 7
      %v3076 = vshll.u32 %v2928, 16
      %v3078 = vor.u32 %v3075, %v3076
      %v3079 = vsel %vm356, %v3071, %v3078
      %v3080 = vrot.slane %v3075, 4
      %v3082 = vshrl.u32 %v2929, 16
      %v3084 = vrot.slane %v3082, 7
      %v3085 = vshll.u32 %v2929, 16
      %v3087 = vor.u32 %v3084, %v3085
      %v3088 = vrot.slane %v3084, 4
      %v3090 = vshrl.u32 %v2930, 16
      %v3092 = vrot.slane %v3090, 7
      %v3093 = vshll.u32 %v2930, 16
      %v3095 = vor.u32 %v3092, %v3093
      %v3096 = vsel %vm356, %v3088, %v3095
      %v3097 = vrot.slane %v3092, 4
      %v3099 = vshrl.u32 %v2931, 16
      %v3101 = vrot.slane %v3099, 7
      %v3102 = vshll.u32 %v2931, 16
      %v3104 = vor.u32 %v3101, %v3102
      %v3105 = vrot.slane %v3101, 4
      %v3107 = vshrl.u32 %v2932, 16
      %v3109 = vrot.slane %v3107, 7
      %v3110 = vshll.u32 %v2932, 16
      %v3112 = vor.u32 %v3109, %v3110
      %v3113 = vsel %vm356, %v3105, %v3112
      %v3114 = vrot.slane %v3109, 4
      %v3116 = vshrl.u32 %v2933, 16
      %v3118 = vrot.slane %v3116, 7
      %v3119 = vshll.u32 %v2933, 16
      %v3121 = vor.u32 %v3118, %v3119
      %v3122 = vrot.slane %v3118, 4
      %v3124 = vshrl.u32 %v2934, 16
      %v3126 = vrot.slane %v3124, 7
      %v3127 = vshll.u32 %v2934, 16
      %v3129 = vor.u32 %v3126, %v3127
      %v3130 = vsel %vm356, %v3122, %v3129
      %v3131 = vrot.slane %v3126, 4
      %v3133 = vshrl.u32 %v2935, 16
      %v3135 = vrot.slane %v3133, 7
      %v3136 = vshll.u32 %v2935, 16
      %v3138 = vor.u32 %v3135, %v3136
      %v3139 = vrot.slane %v3135, 4
      %v3141 = vshrl.u32 %v2936, 16
      %v3143 = vrot.slane %v3141, 7
      %v3144 = vshll.u32 %v2936, 16
      %v3146 = vor.u32 %v3143, %v3144
      %v3147 = vsel %vm356, %v3139, %v3146
      %v3148 = vrot.slane %v3143, 4
      %v3150 = vshrl.u32 %v2937, 16
      %v3152 = vrot.slane %v3150, 7
      %v3153 = vshll.u32 %v2937, 16
      %v3155 = vor.u32 %v3152, %v3153
      %v3156 = vrot.slane %v3152, 4
      %v3158 = vshrl.u32 %v2938, 16
      %v3160 = vrot.slane %v3158, 7
      %v3161 = vshll.u32 %v2938, 16
      %v3163 = vor.u32 %v3160, %v3161
      %v3164 = vsel %vm356, %v3156, %v3163
      %v3165 = vrot.slane %v3160, 4
      %v3167 = vshrl.u32 %v2939, 16
      %v3169 = vrot.slane %v3167, 7
      %v3170 = vshll.u32 %v2939, 16
      %v3172 = vor.u32 %v3169, %v3170
      %v3173 = vrot.slane %v3169, 4
      %v3175 = vshrl.u32 %v2940, 16
      %v3177 = vrot.slane %v3175, 7
      %v3178 = vshll.u32 %v2940, 16
      %v3180 = vor.u32 %v3177, %v3178
      %v3181 = vsel %vm356, %v3173, %v3180
      %v3182 = vrot.slane %v3177, 4
      %v3184 = vshrl.u32 %v2941, 16
      %v3186 = vrot.slane %v3184, 7
      %v3187 = vshll.u32 %v2941, 16
      %v3189 = vor.u32 %v3186, %v3187
      %v3190 = vrot.slane %v3186, 4
      %v3192 = vshrl.u32 %v2942, 16
      %v3194 = vrot.slane %v3192, 7
      %v3195 = vshll.u32 %v2942, 16
      %v3197 = vor.u32 %v3194, %v3195
      %v3198 = vsel %vm356, %v3190, %v3197
      %v3199 = vrot.slane %v3194, 4
      %v3201 = vshrl.u32 %v2943, 16
      %v3203 = vrot.slane %v3201, 7
      %v3204 = vshll.u32 %v2943, 16
      %v3206 = vor.u32 %v3203, %v3204
      %v3207 = vrot.slane %v3203, 4
      %v3209 = vshrl.u32 %v2944, 16
      %v3211 = vrot.slane %v3209, 7
      %v3212 = vshll.u32 %v2944, 16
      %v3214 = vor.u32 %v3211, %v3212
      %v3215 = vsel %vm356, %v3207, %v3214
      %v3216 = vrot.slane %v3211, 4
      %v3265 = vld [vmem:[%s677] sm:$0xf]
      %v3266 = vsel %vm680, %v2951, %v3265
      %3267 = vst [vmem:[%s677] sm:$0xf] %v3266
      %3268 = vst.msk [vmem:[%s677 + $0x4] sm:$0xf] %vm684, %v2960
      %v3269 = vld [vmem:[%s677 + $0x8] sm:$0x1]
      %v3270 = vsel %vm687, %v2961, %v3269
      %3271 = vst [vmem:[%s677 + $0x8] sm:$0x1] %v3270
      %v3272 = vld [vmem:[%s677 + $0xc] sm:$0xf]
      %v3273 = vsel %vm680, %v2968, %v3272
      %3274 = vst [vmem:[%s677 + $0xc] sm:$0xf] %v3273
      %3275 = vst.msk [vmem:[%s677 + $0x10] sm:$0xf] %vm684, %v2977
      %v3276 = vld [vmem:[%s677 + $0x14] sm:$0x1]
      %v3277 = vsel %vm687, %v2978, %v3276
      %3278 = vst [vmem:[%s677 + $0x14] sm:$0x1] %v3277
      %v3279 = vld [vmem:[%s677 + $0x18] sm:$0xf]
      %v3280 = vsel %vm680, %v2985, %v3279
      %3281 = vst [vmem:[%s677 + $0x18] sm:$0xf] %v3280
      %3282 = vst.msk [vmem:[%s677 + $0x1c] sm:$0xf] %vm684, %v2994
      %v3283 = vld [vmem:[%s677 + $0x20] sm:$0x1]
      %v3284 = vsel %vm687, %v2995, %v3283
      %3285 = vst [vmem:[%s677 + $0x20] sm:$0x1] %v3284
      %v3286 = vld [vmem:[%s677 + $0x24] sm:$0xf]
      %v3287 = vsel %vm680, %v3002, %v3286
      %3288 = vst [vmem:[%s677 + $0x24] sm:$0xf] %v3287
      %3289 = vst.msk [vmem:[%s677 + $0x28] sm:$0xf] %vm684, %v3011
      %v3290 = vld [vmem:[%s677 + $0x2c] sm:$0x1]
      %v3291 = vsel %vm687, %v3012, %v3290
      %3292 = vst [vmem:[%s677 + $0x2c] sm:$0x1] %v3291
      %v3293 = vld [vmem:[%s677 + $0x30] sm:$0xf]
      %v3294 = vsel %vm680, %v3019, %v3293
      %3295 = vst [vmem:[%s677 + $0x30] sm:$0xf] %v3294
      %3296 = vst.msk [vmem:[%s677 + $0x34] sm:$0xf] %vm684, %v3028
      %v3297 = vld [vmem:[%s677 + $0x38] sm:$0x1]
      %v3298 = vsel %vm687, %v3029, %v3297
      %3299 = vst [vmem:[%s677 + $0x38] sm:$0x1] %v3298
      %v3300 = vld [vmem:[%s677 + $0x3c] sm:$0xf]
      %v3301 = vsel %vm680, %v3036, %v3300
      %3302 = vst [vmem:[%s677 + $0x3c] sm:$0xf] %v3301
      %3303 = vst.msk [vmem:[%s677 + $0x40] sm:$0xf] %vm684, %v3045
      %v3304 = vld [vmem:[%s677 + $0x44] sm:$0x1]
      %v3305 = vsel %vm687, %v3046, %v3304
      %3306 = vst [vmem:[%s677 + $0x44] sm:$0x1] %v3305
      %v3307 = vld [vmem:[%s677 + $0x48] sm:$0xf]
      %v3308 = vsel %vm680, %v3053, %v3307
      %3309 = vst [vmem:[%s677 + $0x48] sm:$0xf] %v3308
      %3310 = vst.msk [vmem:[%s677 + $0x4c] sm:$0xf] %vm684, %v3062
      %v3311 = vld [vmem:[%s677 + $0x50] sm:$0x1]
      %v3312 = vsel %vm687, %v3063, %v3311
      %3313 = vst [vmem:[%s677 + $0x50] sm:$0x1] %v3312
      %v3314 = vld [vmem:[%s677 + $0x54] sm:$0xf]
      %v3315 = vsel %vm680, %v3070, %v3314
      %3316 = vst [vmem:[%s677 + $0x54] sm:$0xf] %v3315
      %3317 = vst.msk [vmem:[%s677 + $0x58] sm:$0xf] %vm684, %v3079
      %v3318 = vld [vmem:[%s677 + $0x5c] sm:$0x1]
      %v3319 = vsel %vm687, %v3080, %v3318
      %3320 = vst [vmem:[%s677 + $0x5c] sm:$0x1] %v3319
      %v3321 = vld [vmem:[%s677 + $0x60] sm:$0xf]
      %v3322 = vsel %vm680, %v3087, %v3321
      %3323 = vst [vmem:[%s677 + $0x60] sm:$0xf] %v3322
      %3324 = vst.msk [vmem:[%s677 + $0x64] sm:$0xf] %vm684, %v3096
      %v3325 = vld [vmem:[%s677 + $0x68] sm:$0x1]
      %v3326 = vsel %vm687, %v3097, %v3325
      %3327 = vst [vmem:[%s677 + $0x68] sm:$0x1] %v3326
      %v3328 = vld [vmem:[%s677 + $0x6c] sm:$0xf]
      %v3329 = vsel %vm680, %v3104, %v3328
      %3330 = vst [vmem:[%s677 + $0x6c] sm:$0xf] %v3329
      %3331 = vst.msk [vmem:[%s677 + $0x70] sm:$0xf] %vm684, %v3113
      %v3332 = vld [vmem:[%s677 + $0x74] sm:$0x1]
      %v3333 = vsel %vm687, %v3114, %v3332
      %3334 = vst [vmem:[%s677 + $0x74] sm:$0x1] %v3333
      %v3335 = vld [vmem:[%s677 + $0x78] sm:$0xf]
      %v3336 = vsel %vm680, %v3121, %v3335
      %3337 = vst [vmem:[%s677 + $0x78] sm:$0xf] %v3336
      %3338 = vst.msk [vmem:[%s677 + $0x7c] sm:$0xf] %vm684, %v3130
      %v3339 = vld [vmem:[%s677 + $0x80] sm:$0x1]
      %v3340 = vsel %vm687, %v3131, %v3339
      %3341 = vst [vmem:[%s677 + $0x80] sm:$0x1] %v3340
      %v3342 = vld [vmem:[%s677 + $0x84] sm:$0xf]
      %v3343 = vsel %vm680, %v3138, %v3342
      %3344 = vst [vmem:[%s677 + $0x84] sm:$0xf] %v3343
      %3345 = vst.msk [vmem:[%s677 + $0x88] sm:$0xf] %vm684, %v3147
      %v3346 = vld [vmem:[%s677 + $0x8c] sm:$0x1]
      %v3347 = vsel %vm687, %v3148, %v3346
      %3348 = vst [vmem:[%s677 + $0x8c] sm:$0x1] %v3347
      %v3349 = vld [vmem:[%s677 + $0x90] sm:$0xf]
      %v3350 = vsel %vm680, %v3155, %v3349
      %3351 = vst [vmem:[%s677 + $0x90] sm:$0xf] %v3350
      %3352 = vst.msk [vmem:[%s677 + $0x94] sm:$0xf] %vm684, %v3164
      %v3353 = vld [vmem:[%s677 + $0x98] sm:$0x1]
      %v3354 = vsel %vm687, %v3165, %v3353
      %3355 = vst [vmem:[%s677 + $0x98] sm:$0x1] %v3354
      %v3356 = vld [vmem:[%s677 + $0x9c] sm:$0xf]
      %v3357 = vsel %vm680, %v3172, %v3356
      %3358 = vst [vmem:[%s677 + $0x9c] sm:$0xf] %v3357
      %3359 = vst.msk [vmem:[%s677 + $0xa0] sm:$0xf] %vm684, %v3181
      %v3360 = vld [vmem:[%s677 + $0xa4] sm:$0x1]
      %v3361 = vsel %vm687, %v3182, %v3360
      %3362 = vst [vmem:[%s677 + $0xa4] sm:$0x1] %v3361
      %v3363 = vld [vmem:[%s677 + $0xa8] sm:$0xf]
      %v3364 = vsel %vm680, %v3189, %v3363
      %3365 = vst [vmem:[%s677 + $0xa8] sm:$0xf] %v3364
      %3366 = vst.msk [vmem:[%s677 + $0xac] sm:$0xf] %vm684, %v3198
      %v3367 = vld [vmem:[%s677 + $0xb0] sm:$0x1]
      %v3368 = vsel %vm687, %v3199, %v3367
      %3369 = vst [vmem:[%s677 + $0xb0] sm:$0x1] %v3368
      %v3370 = vld [vmem:[%s677 + $0xb4] sm:$0xf]
      %v3371 = vsel %vm680, %v3206, %v3370
      %3372 = vst [vmem:[%s677 + $0xb4] sm:$0xf] %v3371
      %3373 = vst.msk [vmem:[%s677 + $0xb8] sm:$0xf] %vm684, %v3215
      %v3374 = vld [vmem:[%s677 + $0xbc] sm:$0x1]
      %v3375 = vsel %vm687, %v3216, %v3374
      %3376 = vst [vmem:[%s677 + $0xbc] sm:$0x1] %v3375
      %v3377 = vrot.slane %v2946, 4
      %v3378 = vrot.slane %v3377, 4
      %v3379 = vrot.slane %v2963, 4
      %v3380 = vrot.slane %v3379, 4
      %v3381 = vrot.slane %v2980, 4
      %v3382 = vrot.slane %v3381, 4
      %v3383 = vrot.slane %v2997, 4
      %v3384 = vrot.slane %v3383, 4
      %v3385 = vrot.slane %v3014, 4
      %v3386 = vrot.slane %v3385, 4
      %v3387 = vrot.slane %v3031, 4
      %v3388 = vrot.slane %v3387, 4
      %v3389 = vrot.slane %v3048, 4
      %v3390 = vrot.slane %v3389, 4
      %v3391 = vrot.slane %v3065, 4
      %v3392 = vrot.slane %v3391, 4
      %v3393 = vrot.slane %v3082, 4
      %v3394 = vrot.slane %v3393, 4
      %v3395 = vrot.slane %v3099, 4
      %v3396 = vrot.slane %v3395, 4
      %v3397 = vrot.slane %v3116, 4
      %v3398 = vrot.slane %v3397, 4
      %v3399 = vrot.slane %v3133, 4
      %v3400 = vrot.slane %v3399, 4
      %v3401 = vrot.slane %v3150, 4
      %v3402 = vrot.slane %v3401, 4
      %v3403 = vrot.slane %v3167, 4
      %v3404 = vrot.slane %v3403, 4
      %v3405 = vrot.slane %v3184, 4
      %v3406 = vrot.slane %v3405, 4
      %v3407 = vrot.slane %v3201, 4
      %v3408 = vrot.slane %v3407, 4
      %v3425 = vld [vmem:[%s677] sm:$0x1]
      %v3426 = vsel %vm687, %v3378, %v3425
      %3427 = vst [vmem:[%s677] sm:$0x1] %v3426
      %v3428 = vld [vmem:[%s677 + $0xc] sm:$0x1]
      %v3429 = vsel %vm687, %v3380, %v3428
      %3430 = vst [vmem:[%s677 + $0xc] sm:$0x1] %v3429
      %v3431 = vld [vmem:[%s677 + $0x18] sm:$0x1]
      %v3432 = vsel %vm687, %v3382, %v3431
      %3433 = vst [vmem:[%s677 + $0x18] sm:$0x1] %v3432
      %v3434 = vld [vmem:[%s677 + $0x24] sm:$0x1]
      %v3435 = vsel %vm687, %v3384, %v3434
      %3436 = vst [vmem:[%s677 + $0x24] sm:$0x1] %v3435
      %v3437 = vld [vmem:[%s677 + $0x30] sm:$0x1]
      %v3438 = vsel %vm687, %v3386, %v3437
      %3439 = vst [vmem:[%s677 + $0x30] sm:$0x1] %v3438
      %v3440 = vld [vmem:[%s677 + $0x3c] sm:$0x1]
      %v3441 = vsel %vm687, %v3388, %v3440
      %3442 = vst [vmem:[%s677 + $0x3c] sm:$0x1] %v3441
      %v3443 = vld [vmem:[%s677 + $0x48] sm:$0x1]
      %v3444 = vsel %vm687, %v3390, %v3443
      %3445 = vst [vmem:[%s677 + $0x48] sm:$0x1] %v3444
      %v3446 = vld [vmem:[%s677 + $0x54] sm:$0x1]
      %v3447 = vsel %vm687, %v3392, %v3446
      %3448 = vst [vmem:[%s677 + $0x54] sm:$0x1] %v3447
      %v3449 = vld [vmem:[%s677 + $0x60] sm:$0x1]
      %v3450 = vsel %vm687, %v3394, %v3449
      %3451 = vst [vmem:[%s677 + $0x60] sm:$0x1] %v3450
      %v3452 = vld [vmem:[%s677 + $0x6c] sm:$0x1]
      %v3453 = vsel %vm687, %v3396, %v3452
      %3454 = vst [vmem:[%s677 + $0x6c] sm:$0x1] %v3453
      %v3455 = vld [vmem:[%s677 + $0x78] sm:$0x1]
      %v3456 = vsel %vm687, %v3398, %v3455
      %3457 = vst [vmem:[%s677 + $0x78] sm:$0x1] %v3456
      %v3458 = vld [vmem:[%s677 + $0x84] sm:$0x1]
      %v3459 = vsel %vm687, %v3400, %v3458
      %3460 = vst [vmem:[%s677 + $0x84] sm:$0x1] %v3459
      %v3461 = vld [vmem:[%s677 + $0x90] sm:$0x1]
      %v3462 = vsel %vm687, %v3402, %v3461
      %3463 = vst [vmem:[%s677 + $0x90] sm:$0x1] %v3462
      %v3464 = vld [vmem:[%s677 + $0x9c] sm:$0x1]
      %v3465 = vsel %vm687, %v3404, %v3464
      %3466 = vst [vmem:[%s677 + $0x9c] sm:$0x1] %v3465
      %v3467 = vld [vmem:[%s677 + $0xa8] sm:$0x1]
      %v3468 = vsel %vm687, %v3406, %v3467
      %3469 = vst [vmem:[%s677 + $0xa8] sm:$0x1] %v3468
      %v3470 = vld [vmem:[%s677 + $0xb4] sm:$0x1]
      %v3471 = vsel %vm687, %v3408, %v3470
      %3472 = vst [vmem:[%s677 + $0xb4] sm:$0x1] %v3471
      %v3473 = vrot.slane %v2957, 7
      %v3474 = vrot.slane %v3473, 4
      %v3475 = vrot.slane %v2974, 7
      %v3476 = vrot.slane %v3475, 4
      %v3477 = vrot.slane %v2991, 7
      %v3478 = vrot.slane %v3477, 4
      %v3479 = vrot.slane %v3008, 7
      %v3480 = vrot.slane %v3479, 4
      %v3481 = vrot.slane %v3025, 7
      %v3482 = vrot.slane %v3481, 4
      %v3483 = vrot.slane %v3042, 7
      %v3484 = vrot.slane %v3483, 4
      %v3485 = vrot.slane %v3059, 7
      %v3486 = vrot.slane %v3485, 4
      %v3487 = vrot.slane %v3076, 7
      %v3488 = vrot.slane %v3487, 4
      %v3489 = vrot.slane %v3093, 7
      %v3490 = vrot.slane %v3489, 4
      %v3491 = vrot.slane %v3110, 7
      %v3492 = vrot.slane %v3491, 4
      %v3493 = vrot.slane %v3127, 7
      %v3494 = vrot.slane %v3493, 4
      %v3495 = vrot.slane %v3144, 7
      %v3496 = vrot.slane %v3495, 4
      %v3497 = vrot.slane %v3161, 7
      %v3498 = vrot.slane %v3497, 4
      %v3499 = vrot.slane %v3178, 7
      %v3500 = vrot.slane %v3499, 4
      %v3501 = vrot.slane %v3195, 7
      %v3502 = vrot.slane %v3501, 4
      %v3503 = vrot.slane %v3212, 7
      %v3504 = vrot.slane %v3503, 4
      %v3521 = vld [vmem:[%s677 + $0x8] sm:$0x1]
      %v3522 = vsel %vm940, %v3474, %v3521
      %3523 = vst [vmem:[%s677 + $0x8] sm:$0x1] %v3522
      %v3524 = vld [vmem:[%s677 + $0x14] sm:$0x1]
      %v3525 = vsel %vm940, %v3476, %v3524
      %3526 = vst [vmem:[%s677 + $0x14] sm:$0x1] %v3525
      %v3527 = vld [vmem:[%s677 + $0x20] sm:$0x1]
      %v3528 = vsel %vm940, %v3478, %v3527
      %3529 = vst [vmem:[%s677 + $0x20] sm:$0x1] %v3528
      %v3530 = vld [vmem:[%s677 + $0x2c] sm:$0x1]
      %v3531 = vsel %vm940, %v3480, %v3530
      %3532 = vst [vmem:[%s677 + $0x2c] sm:$0x1] %v3531
      %v3533 = vld [vmem:[%s677 + $0x38] sm:$0x1]
      %v3534 = vsel %vm940, %v3482, %v3533
      %3535 = vst [vmem:[%s677 + $0x38] sm:$0x1] %v3534
      %v3536 = vld [vmem:[%s677 + $0x44] sm:$0x1]
      %v3537 = vsel %vm940, %v3484, %v3536
      %3538 = vst [vmem:[%s677 + $0x44] sm:$0x1] %v3537
      %v3539 = vld [vmem:[%s677 + $0x50] sm:$0x1]
      %v3540 = vsel %vm940, %v3486, %v3539
      %3541 = vst [vmem:[%s677 + $0x50] sm:$0x1] %v3540
      %v3542 = vld [vmem:[%s677 + $0x5c] sm:$0x1]
      %v3543 = vsel %vm940, %v3488, %v3542
      %3544 = vst [vmem:[%s677 + $0x5c] sm:$0x1] %v3543
      %v3545 = vld [vmem:[%s677 + $0x68] sm:$0x1]
      %v3546 = vsel %vm940, %v3490, %v3545
      %3547 = vst [vmem:[%s677 + $0x68] sm:$0x1] %v3546
      %v3548 = vld [vmem:[%s677 + $0x74] sm:$0x1]
      %v3549 = vsel %vm940, %v3492, %v3548
      %3550 = vst [vmem:[%s677 + $0x74] sm:$0x1] %v3549
      %v3551 = vld [vmem:[%s677 + $0x80] sm:$0x1]
      %v3552 = vsel %vm940, %v3494, %v3551
      %3553 = vst [vmem:[%s677 + $0x80] sm:$0x1] %v3552
      %v3554 = vld [vmem:[%s677 + $0x8c] sm:$0x1]
      %v3555 = vsel %vm940, %v3496, %v3554
      %3556 = vst [vmem:[%s677 + $0x8c] sm:$0x1] %v3555
      %v3557 = vld [vmem:[%s677 + $0x98] sm:$0x1]
      %v3558 = vsel %vm940, %v3498, %v3557
      %3559 = vst [vmem:[%s677 + $0x98] sm:$0x1] %v3558
      %v3560 = vld [vmem:[%s677 + $0xa4] sm:$0x1]
      %v3561 = vsel %vm940, %v3500, %v3560
      %3562 = vst [vmem:[%s677 + $0xa4] sm:$0x1] %v3561
      %v3563 = vld [vmem:[%s677 + $0xb0] sm:$0x1]
      %v3564 = vsel %vm940, %v3502, %v3563
      %3565 = vst [vmem:[%s677 + $0xb0] sm:$0x1] %v3564
      %v3566 = vld [vmem:[%s677 + $0xbc] sm:$0x1]
      %v3567 = vsel %vm940, %v3504, %v3566
      %3568 = vst [vmem:[%s677 + $0xbc] sm:$0x1] %v3567
      %v3569 = vld [vmem:[%s989] sm:$0xf]
      %v3570 = vld [vmem:[%s989 + $0x4] sm:$0xf]
      %v3571 = vld [vmem:[%s989 + $0x8] sm:$0x1]
      %3572 = vst.msk [vmem:[#allocation2] sm:$0xf] %vm684, %v3569
      %3573 = vst.msk [vmem:[#allocation2 + $0x4] sm:$0xf] %vm684, %v3570
      %3574 = vst.msk [vmem:[#allocation2 + $0x8] sm:$0x1] %vm995, %v3571
      %v3575 = vld [vmem:[%s997] sm:$0xf]
      %v3576 = vld [vmem:[%s997 + $0x4] sm:$0xf]
      %v3577 = vld [vmem:[%s997 + $0x8] sm:$0x1]
      %3578 = vst.msk [vmem:[%s1001] sm:$0xf] %vm684, %v3575
      %3579 = vst.msk [vmem:[%s1001 + $0x4] sm:$0xf] %vm684, %v3576
      %3580 = vst.msk [vmem:[%s1001 + $0x8] sm:$0x1] %vm995, %v3577
      %v3581 = vld [vmem:[%s3] sm:$0xf]
      %v3582 = vld [vmem:[%s3 + $0x4] sm:$0x3]
      %s3583 = scalar_lea.vmem %s3, 8
      %v3584 = vld [vmem:[%s3583] sm:$0xf]
      %v3585 = vld [vmem:[%s3583 + $0x4] sm:$0x3]
      %s3586 = scalar_lea.vmem %s3, 16
      %v3587 = vld [vmem:[%s3586] sm:$0xf]
      %v3588 = vld [vmem:[%s3586 + $0x4] sm:$0x3]
      %v3589 = vld [vmem:[%s4] sm:$0x1]
      %v3590 = vld [vmem:[#allocation2] sm:$0xf]
      %v3591 = vld [vmem:[#allocation2 + $0x4] sm:$0xf]
      %v3592 = vld [vmem:[#allocation2 + $0xc] sm:$0xf]
      %v3593 = vld [vmem:[#allocation2 + $0x10] sm:$0xf]
      %v3594 = vld [vmem:[#allocation2 + $0x18] sm:$0xf]
      %v3595 = vld [vmem:[#allocation2 + $0x1c] sm:$0xf]
      %v3596 = vld [vmem:[#allocation2 + $0x24] sm:$0xf]
      %v3597 = vld [vmem:[#allocation2 + $0x28] sm:$0xf]
      %v3598 = vld [vmem:[#allocation2 + $0x30] sm:$0xf]
      %v3599 = vld [vmem:[#allocation2 + $0x34] sm:$0xf]
      %v3600 = vld [vmem:[#allocation2 + $0x3c] sm:$0xf]
      %v3601 = vld [vmem:[#allocation2 + $0x40] sm:$0xf]
      %v3602 = vld [vmem:[#allocation2 + $0x48] sm:$0xf]
      %v3603 = vld [vmem:[#allocation2 + $0x4c] sm:$0xf]
      %v3604 = vld [vmem:[#allocation2 + $0x54] sm:$0xf]
      %v3605 = vld [vmem:[#allocation2 + $0x58] sm:$0xf]
      %v3606 = vld [vmem:[#allocation2 + $0x60] sm:$0xf]
      %v3607 = vld [vmem:[#allocation2 + $0x64] sm:$0xf]
      %v3608 = vld [vmem:[#allocation2 + $0x6c] sm:$0xf]
      %v3609 = vld [vmem:[#allocation2 + $0x70] sm:$0xf]
      %v3610 = vld [vmem:[#allocation2 + $0x8] sm:$0x1]
      %v3611 = vld [vmem:[#allocation2 + $0x14] sm:$0x1]
      %v3612 = vld [vmem:[#allocation2 + $0x20] sm:$0x1]
      %v3613 = vld [vmem:[#allocation2 + $0x2c] sm:$0x1]
      %v3614 = vld [vmem:[#allocation2 + $0x38] sm:$0x1]
      %v3615 = vld [vmem:[#allocation2 + $0x44] sm:$0x1]
      %v3616 = vld [vmem:[#allocation2 + $0x50] sm:$0x1]
      %v3617 = vld [vmem:[#allocation2 + $0x5c] sm:$0x1]
      %v3618 = vld [vmem:[#allocation2 + $0x68] sm:$0x1]
      %v3619 = vld [vmem:[#allocation2 + $0x74] sm:$0x1]
      %v3620 = vld [vmem:[#allocation2] sm:$0xe]
      %v3621 = vld [vmem:[#allocation2 + $0xc] sm:$0xe]
      %v3622 = vld [vmem:[#allocation2 + $0x18] sm:$0xe]
      %v3623 = vld [vmem:[#allocation2 + $0x24] sm:$0xe]
      %v3624 = vld [vmem:[#allocation2 + $0x30] sm:$0xe]
      %v3625 = vld [vmem:[#allocation2 + $0x3c] sm:$0xe]
      %v3626 = vld [vmem:[#allocation2 + $0x48] sm:$0xe]
      %v3627 = vld [vmem:[#allocation2 + $0x54] sm:$0xe]
      %v3628 = vld [vmem:[#allocation2 + $0x60] sm:$0xe]
      %v3629 = vld [vmem:[#allocation2 + $0x6c] sm:$0xe]
      %v3650 = vunpack.c.l.b16 %v3590
      %v3651 = vunpack.c.l.b16 %v3591
      %v3652 = vunpack.c.l.b16 %v3592
      %v3653 = vunpack.c.l.b16 %v3593
      %v3654 = vunpack.c.l.b16 %v3594
      %v3655 = vunpack.c.l.b16 %v3595
      %v3656 = vunpack.c.l.b16 %v3596
      %v3657 = vunpack.c.l.b16 %v3597
      %v3658 = vunpack.c.l.b16 %v3598
      %v3659 = vunpack.c.l.b16 %v3599
      %v3660 = vunpack.c.l.b16 %v3600
      %v3661 = vunpack.c.l.b16 %v3601
      %v3662 = vunpack.c.l.b16 %v3602
      %v3663 = vunpack.c.l.b16 %v3603
      %v3664 = vunpack.c.l.b16 %v3604
      %v3665 = vunpack.c.l.b16 %v3605
      %v3666 = vunpack.c.l.b16 %v3606
      %v3667 = vunpack.c.l.b16 %v3607
      %v3668 = vunpack.c.l.b16 %v3608
      %v3669 = vunpack.c.l.b16 %v3609
      %v3670 = vpack.c.b16 %v3651, %v3650
      %v3671 = vpack.c.b16 %v3653, %v3652
      %v3672 = vpack.c.b16 %v3655, %v3654
      %v3673 = vpack.c.b16 %v3657, %v3656
      %v3674 = vpack.c.b16 %v3659, %v3658
      %v3675 = vpack.c.b16 %v3661, %v3660
      %v3676 = vpack.c.b16 %v3663, %v3662
      %v3677 = vpack.c.b16 %v3665, %v3664
      %v3678 = vpack.c.b16 %v3667, %v3666
      %v3679 = vpack.c.b16 %v3669, %v3668
      %v3690 = vunpack.c.l.b16 %v3610
      %v3691 = vunpack.c.l.b16 %v3611
      %v3692 = vunpack.c.l.b16 %v3612
      %v3693 = vunpack.c.l.b16 %v3613
      %v3694 = vunpack.c.l.b16 %v3614
      %v3695 = vunpack.c.l.b16 %v3615
      %v3696 = vunpack.c.l.b16 %v3616
      %v3697 = vunpack.c.l.b16 %v3617
      %v3698 = vunpack.c.l.b16 %v3618
      %v3699 = vunpack.c.l.b16 %v3619
      %v3700 = vpack.c.b16 %v3690, %v3690
      %v3701 = vpack.c.b16 %v3691, %v3691
      %v3702 = vpack.c.b16 %v3692, %v3692
      %v3703 = vpack.c.b16 %v3693, %v3693
      %v3704 = vpack.c.b16 %v3694, %v3694
      %v3705 = vpack.c.b16 %v3695, %v3695
      %v3706 = vpack.c.b16 %v3696, %v3696
      %v3707 = vpack.c.b16 %v3697, %v3697
      %v3708 = vpack.c.b16 %v3698, %v3698
      %v3709 = vpack.c.b16 %v3699, %v3699
      %v3711 = vshrl.u32 %v3670, 16
      %v3713 = vshll.u32 %v3670, 16
      %v3715 = vrot.slane %v3713, 1
      %v3716 = vor.u32 %v3711, %v3715
      %v3718 = vshll.u32 %v3700, 16
      %v3720 = vrot.slane %v3718, 1
      %v3721 = vsel %vm1134, %v3716, %v3720
      %v3723 = vshrl.u32 %v3671, 16
      %v3725 = vshll.u32 %v3671, 16
      %v3727 = vrot.slane %v3725, 1
      %v3728 = vor.u32 %v3723, %v3727
      %v3730 = vshll.u32 %v3701, 16
      %v3732 = vrot.slane %v3730, 1
      %v3733 = vsel %vm1134, %v3728, %v3732
      %v3735 = vshrl.u32 %v3672, 16
      %v3737 = vshll.u32 %v3672, 16
      %v3739 = vrot.slane %v3737, 1
      %v3740 = vor.u32 %v3735, %v3739
      %v3742 = vshll.u32 %v3702, 16
      %v3744 = vrot.slane %v3742, 1
      %v3745 = vsel %vm1134, %v3740, %v3744
      %v3747 = vshrl.u32 %v3673, 16
      %v3749 = vshll.u32 %v3673, 16
      %v3751 = vrot.slane %v3749, 1
      %v3752 = vor.u32 %v3747, %v3751
      %v3754 = vshll.u32 %v3703, 16
      %v3756 = vrot.slane %v3754, 1
      %v3757 = vsel %vm1134, %v3752, %v3756
      %v3759 = vshrl.u32 %v3674, 16
      %v3761 = vshll.u32 %v3674, 16
      %v3763 = vrot.slane %v3761, 1
      %v3764 = vor.u32 %v3759, %v3763
      %v3766 = vshll.u32 %v3704, 16
      %v3768 = vrot.slane %v3766, 1
      %v3769 = vsel %vm1134, %v3764, %v3768
      %v3771 = vshrl.u32 %v3675, 16
      %v3773 = vshll.u32 %v3675, 16
      %v3775 = vrot.slane %v3773, 1
      %v3776 = vor.u32 %v3771, %v3775
      %v3778 = vshll.u32 %v3705, 16
      %v3780 = vrot.slane %v3778, 1
      %v3781 = vsel %vm1134, %v3776, %v3780
      %v3783 = vshrl.u32 %v3676, 16
      %v3785 = vshll.u32 %v3676, 16
      %v3787 = vrot.slane %v3785, 1
      %v3788 = vor.u32 %v3783, %v3787
      %v3790 = vshll.u32 %v3706, 16
      %v3792 = vrot.slane %v3790, 1
      %v3793 = vsel %vm1134, %v3788, %v3792
      %v3795 = vshrl.u32 %v3677, 16
      %v3797 = vshll.u32 %v3677, 16
      %v3799 = vrot.slane %v3797, 1
      %v3800 = vor.u32 %v3795, %v3799
      %v3802 = vshll.u32 %v3707, 16
      %v3804 = vrot.slane %v3802, 1
      %v3805 = vsel %vm1134, %v3800, %v3804
      %v3807 = vshrl.u32 %v3678, 16
      %v3809 = vshll.u32 %v3678, 16
      %v3811 = vrot.slane %v3809, 1
      %v3812 = vor.u32 %v3807, %v3811
      %v3814 = vshll.u32 %v3708, 16
      %v3816 = vrot.slane %v3814, 1
      %v3817 = vsel %vm1134, %v3812, %v3816
      %v3819 = vshrl.u32 %v3679, 16
      %v3821 = vshll.u32 %v3679, 16
      %v3823 = vrot.slane %v3821, 1
      %v3824 = vor.u32 %v3819, %v3823
      %v3826 = vshll.u32 %v3709, 16
      %v3828 = vrot.slane %v3826, 1
      %v3829 = vsel %vm1134, %v3824, %v3828
      %3830 = vrot.lane.b32.xlu0 %v3721, 4
      %v3831 = vpop.permute.xlu0 %3830
      %3832 = vrot.lane.b32.xlu0 %v3733, 4
      %v3833 = vpop.permute.xlu0 %3832
      %3834 = vrot.lane.b32.xlu0 %v3745, 4
      %v3835 = vpop.permute.xlu0 %3834
      %3836 = vrot.lane.b32.xlu0 %v3757, 4
      %v3837 = vpop.permute.xlu0 %3836
      %3838 = vrot.lane.b32.xlu0 %v3769, 4
      %v3839 = vpop.permute.xlu0 %3838
      %3840 = vrot.lane.b32.xlu0 %v3781, 4
      %v3841 = vpop.permute.xlu0 %3840
      %3842 = vrot.lane.b32.xlu0 %v3793, 4
      %v3843 = vpop.permute.xlu0 %3842
      %3844 = vrot.lane.b32.xlu0 %v3805, 4
      %v3845 = vpop.permute.xlu0 %3844
      %3846 = vrot.lane.b32.xlu0 %v3817, 4
      %v3847 = vpop.permute.xlu0 %3846
      %3848 = vrot.lane.b32.xlu0 %v3829, 4
      %v3849 = vpop.permute.xlu0 %3848
      %v3860 = vunpack.c.l.b16 %v3620
      %v3861 = vunpack.c.l.b16 %v3621
      %v3862 = vunpack.c.l.b16 %v3622
      %v3863 = vunpack.c.l.b16 %v3623
      %v3864 = vunpack.c.l.b16 %v3624
      %v3865 = vunpack.c.l.b16 %v3625
      %v3866 = vunpack.c.l.b16 %v3626
      %v3867 = vunpack.c.l.b16 %v3627
      %v3868 = vunpack.c.l.b16 %v3628
      %v3869 = vunpack.c.l.b16 %v3629
      %v3870 = vpack.c.b16 %v3651, %v3860
      %v3871 = vpack.c.b16 %v3653, %v3861
      %v3872 = vpack.c.b16 %v3655, %v3862
      %v3873 = vpack.c.b16 %v3657, %v3863
      %v3874 = vpack.c.b16 %v3659, %v3864
      %v3875 = vpack.c.b16 %v3661, %v3865
      %v3876 = vpack.c.b16 %v3663, %v3866
      %v3877 = vpack.c.b16 %v3665, %v3867
      %v3878 = vpack.c.b16 %v3667, %v3868
      %v3879 = vpack.c.b16 %v3669, %v3869
      %v3880 = vrot.slane %v3870, 1
      %v3881 = vrot.slane %v3700, 1
      %v3882 = vsel %vm1305, %v3880, %v3881
      %v3883 = vrot.slane %v3871, 1
      %v3884 = vrot.slane %v3701, 1
      %v3885 = vsel %vm1305, %v3883, %v3884
      %v3886 = vrot.slane %v3872, 1
      %v3887 = vrot.slane %v3702, 1
      %v3888 = vsel %vm1305, %v3886, %v3887
      %v3889 = vrot.slane %v3873, 1
      %v3890 = vrot.slane %v3703, 1
      %v3891 = vsel %vm1305, %v3889, %v3890
      %v3892 = vrot.slane %v3874, 1
      %v3893 = vrot.slane %v3704, 1
      %v3894 = vsel %vm1305, %v3892, %v3893
      %v3895 = vrot.slane %v3875, 1
      %v3896 = vrot.slane %v3705, 1
      %v3897 = vsel %vm1305, %v3895, %v3896
      %v3898 = vrot.slane %v3876, 1
      %v3899 = vrot.slane %v3706, 1
      %v3900 = vsel %vm1305, %v3898, %v3899
      %v3901 = vrot.slane %v3877, 1
      %v3902 = vrot.slane %v3707, 1
      %v3903 = vsel %vm1305, %v3901, %v3902
      %v3904 = vrot.slane %v3878, 1
      %v3905 = vrot.slane %v3708, 1
      %v3906 = vsel %vm1305, %v3904, %v3905
      %v3907 = vrot.slane %v3879, 1
      %v3908 = vrot.slane %v3709, 1
      %v3909 = vsel %vm1305, %v3907, %v3908
      %3910 = vrot.lane.b32.xlu0 %v3882, 8
      %v3911 = vpop.permute.xlu0 %3910
      %3912 = vrot.lane.b32.xlu0 %v3885, 8
      %v3913 = vpop.permute.xlu0 %3912
      %3914 = vrot.lane.b32.xlu0 %v3888, 8
      %v3915 = vpop.permute.xlu0 %3914
      %3916 = vrot.lane.b32.xlu0 %v3891, 8
      %v3917 = vpop.permute.xlu0 %3916
      %3918 = vrot.lane.b32.xlu0 %v3894, 8
      %v3919 = vpop.permute.xlu0 %3918
      %3920 = vrot.lane.b32.xlu0 %v3897, 8
      %v3921 = vpop.permute.xlu0 %3920
      %3922 = vrot.lane.b32.xlu0 %v3900, 8
      %v3923 = vpop.permute.xlu0 %3922
      %3924 = vrot.lane.b32.xlu0 %v3903, 8
      %v3925 = vpop.permute.xlu0 %3924
      %3926 = vrot.lane.b32.xlu0 %v3906, 8
      %v3927 = vpop.permute.xlu0 %3926
      %3928 = vrot.lane.b32.xlu0 %v3909, 8
      %v3929 = vpop.permute.xlu0 %3928
      %v3931 = vsel %vm1356, %v3670, %v3831
      %v3933 = vsel %vm1356, %v3671, %v3833
      %v3935 = vsel %vm1356, %v3672, %v3835
      %v3937 = vsel %vm1356, %v3673, %v3837
      %v3939 = vsel %vm1356, %v3674, %v3839
      %v3941 = vsel %vm1356, %v3675, %v3841
      %v3943 = vsel %vm1356, %v3676, %v3843
      %v3945 = vsel %vm1356, %v3677, %v3845
      %v3947 = vsel %vm1356, %v3678, %v3847
      %v3949 = vsel %vm1356, %v3679, %v3849
      %v3951 = vsel %vm1377, %v3931, %v3911
      %v3953 = vsel %vm1377, %v3933, %v3913
      %v3955 = vsel %vm1377, %v3935, %v3915
      %v3957 = vsel %vm1377, %v3937, %v3917
      %v3959 = vsel %vm1377, %v3939, %v3919
      %v3961 = vsel %vm1377, %v3941, %v3921
      %v3963 = vsel %vm1377, %v3943, %v3923
      %v3965 = vsel %vm1377, %v3945, %v3925
      %v3967 = vsel %vm1377, %v3947, %v3927
      %v3969 = vsel %vm1377, %v3949, %v3929
      %v3972 = vunpack.c.l.b16 %v3584
      %v3973 = vunpack.c.l.b16 %v3585
      %v3974 = vpack.c.b16 %v3973, %v3972
      %v3975 = vsel %vm1403, %v3953, 0
      %v3977 = vsel %vm1403, %v3955, 0
      %v3979 = vsel %vm1403, %v3957, 0
      %v3981 = vsel %vm1403, %v3959, 0
      %v3983 = vsel %vm1403, %v3961, 0
      %v3985 = vsel %vm1403, %v3963, 0
      %v3987 = vsel %vm1403, %v3965, 0
      %v3989 = vsel %vm1403, %v3967, 0
      %v3992 = vsel %vm1420, %v3974, 0
      %3994 = vmatprep.subr.bf16.mxu0 0
      %3995 = vmatpush1.bf16.msra.mxu0 0
      %3996 = vmatprep.subr.bf16.mxu0 0
      %3997 = vmatpush1.bf16.msra.mxu0 0
      %3998 = vmatprep.subr.bf16.mxu0 0
      %3999 = vmatpush1.bf16.msra.mxu0 0
      %4000 = vmatprep.subr.bf16.mxu0 0
      %4001 = vmatpush1.bf16.msra.mxu0 0
      %4002 = vmatprep.subr.bf16.mxu0 0
      %4003 = vmatpush1.bf16.msra.mxu0 0
      %4004 = vmatprep.subr.bf16.mxu0 0
      %4005 = vmatpush1.bf16.msra.mxu0 0
      %4006 = vmatprep.subr.bf16.mxu0 0
      %4007 = vmatpush1.bf16.msra.mxu0 0
      %4008 = vmatprep.subr.bf16.mxu0 0
      %4009 = vmatpush1.bf16.msra.mxu0 %v3992
      %4010 = vmatprep.subr.bf16.mxu0 0
      %4011 = vmatpush2.bf16.msra.mxu0 0
      %4012 = vmatprep.subr.bf16.mxu0 0
      %4013 = vmatpush2.bf16.msra.mxu0 0
      %4014 = vmatprep.subr.bf16.mxu0 0
      %4015 = vmatpush2.bf16.msra.mxu0 0
      %4016 = vmatprep.subr.bf16.mxu0 0
      %4017 = vmatpush2.bf16.msra.mxu0 0
      %4018 = vmatprep.subr.bf16.mxu0 0
      %4019 = vmatpush2.bf16.msra.mxu0 0
      %4020 = vmatprep.subr.bf16.mxu0 0
      %4021 = vmatpush2.bf16.msra.mxu0 0
      %4022 = vmatprep.subr.bf16.mxu0 0
      %4023 = vmatpush2.bf16.msra.mxu0 0
      %4024 = vmatprep.subr.bf16.mxu0 0
      %4025 = vmatpush2.bf16.msra.mxu0 0
      %4026 = vmatprep.mubr.bf16.mxu0 0
      %4027 = vmatmul.mubr.bf16.gmra.mxu0 %v3975
      %v4028 = vpop.f32.mrf.mxu0
      %v4029 = vadd.f32 0.0, %v4028
      %v4030 = vpop.f32.mrf.mxu0
      %v4031 = vpop.f32.mrf.mxu0
      %v4032 = vadd.f32 0.0, %v4031
      %v4033 = vpop.f32.mrf.mxu0
      %4034 = vmatprep.mubr.bf16.mxu0 0
      %4035 = vmatmul.mubr.bf16.gmra.mxu0 %v3977
      %v4036 = vpop.f32.mrf.mxu0
      %v4037 = vadd.f32 0.0, %v4036
      %v4038 = vpop.f32.mrf.mxu0
      %v4039 = vpop.f32.mrf.mxu0
      %v4040 = vadd.f32 0.0, %v4039
      %v4041 = vpop.f32.mrf.mxu0
      %4042 = vmatprep.mubr.bf16.mxu0 0
      %4043 = vmatmul.mubr.bf16.gmra.mxu0 %v3979
      %v4044 = vpop.f32.mrf.mxu0
      %v4045 = vadd.f32 0.0, %v4044
      %v4046 = vpop.f32.mrf.mxu0
      %v4047 = vpop.f32.mrf.mxu0
      %v4048 = vadd.f32 0.0, %v4047
      %v4049 = vpop.f32.mrf.mxu0
      %4050 = vmatprep.mubr.bf16.mxu0 0
      %4051 = vmatmul.mubr.bf16.gmra.mxu0 %v3981
      %v4052 = vpop.f32.mrf.mxu0
      %v4053 = vadd.f32 0.0, %v4052
      %v4054 = vpop.f32.mrf.mxu0
      %v4055 = vpop.f32.mrf.mxu0
      %v4056 = vadd.f32 0.0, %v4055
      %v4057 = vpop.f32.mrf.mxu0
      %4058 = vmatprep.mubr.bf16.mxu0 0
      %4059 = vmatmul.mubr.bf16.gmra.mxu0 %v3983
      %v4060 = vpop.f32.mrf.mxu0
      %v4061 = vadd.f32 0.0, %v4060
      %v4062 = vpop.f32.mrf.mxu0
      %v4063 = vpop.f32.mrf.mxu0
      %v4064 = vadd.f32 0.0, %v4063
      %v4065 = vpop.f32.mrf.mxu0
      %4066 = vmatprep.mubr.bf16.mxu0 0
      %4067 = vmatmul.mubr.bf16.gmra.mxu0 %v3985
      %v4068 = vpop.f32.mrf.mxu0
      %v4069 = vadd.f32 0.0, %v4068
      %v4070 = vpop.f32.mrf.mxu0
      %v4071 = vpop.f32.mrf.mxu0
      %v4072 = vadd.f32 0.0, %v4071
      %v4073 = vpop.f32.mrf.mxu0
      %4074 = vmatprep.mubr.bf16.mxu0 0
      %4075 = vmatmul.mubr.bf16.gmra.mxu0 %v3987
      %v4076 = vpop.f32.mrf.mxu0
      %v4077 = vadd.f32 0.0, %v4076
      %v4078 = vpop.f32.mrf.mxu0
      %v4079 = vpop.f32.mrf.mxu0
      %v4080 = vadd.f32 0.0, %v4079
      %v4081 = vpop.f32.mrf.mxu0
      %4082 = vmatprep.mubr.bf16.mxu0 0
      %4083 = vmatmul.mubr.bf16.gmra.mxu0 %v3989
      %v4084 = vpop.f32.mrf.mxu0
      %v4085 = vadd.f32 0.0, %v4084
      %v4086 = vpop.f32.mrf.mxu0
      %v4087 = vpop.f32.mrf.mxu0
      %v4088 = vadd.f32 0.0, %v4087
      %v4089 = vpop.f32.mrf.mxu0
      %4090 = vdwg.mxu0
      %v4093 = vunpack.c.l.b16 %v3581
      %v4094 = vunpack.c.l.b16 %v3582
      %v4095 = vpack.c.b16 %v4094, %v4093
      %v4096 = vsel %vm1403, %v3951, 0
      %v4099 = vsel %vm1420, %v4095, 0
      %4101 = vmatprep.subr.bf16.mxu0 0
      %4102 = vmatpush1.bf16.msra.mxu0 0
      %4103 = vmatprep.subr.bf16.mxu0 0
      %4104 = vmatpush1.bf16.msra.mxu0 0
      %4105 = vmatprep.subr.bf16.mxu0 0
      %4106 = vmatpush1.bf16.msra.mxu0 0
      %4107 = vmatprep.subr.bf16.mxu0 0
      %4108 = vmatpush1.bf16.msra.mxu0 0
      %4109 = vmatprep.subr.bf16.mxu0 0
      %4110 = vmatpush1.bf16.msra.mxu0 0
      %4111 = vmatprep.subr.bf16.mxu0 0
      %4112 = vmatpush1.bf16.msra.mxu0 0
      %4113 = vmatprep.subr.bf16.mxu0 0
      %4114 = vmatpush1.bf16.msra.mxu0 0
      %4115 = vmatprep.subr.bf16.mxu0 0
      %4116 = vmatpush1.bf16.msra.mxu0 %v4099
      %4117 = vmatprep.subr.bf16.mxu0 0
      %4118 = vmatpush2.bf16.msra.mxu0 0
      %4119 = vmatprep.subr.bf16.mxu0 0
      %4120 = vmatpush2.bf16.msra.mxu0 0
      %4121 = vmatprep.subr.bf16.mxu0 0
      %4122 = vmatpush2.bf16.msra.mxu0 0
      %4123 = vmatprep.subr.bf16.mxu0 0
      %4124 = vmatpush2.bf16.msra.mxu0 0
      %4125 = vmatprep.subr.bf16.mxu0 0
      %4126 = vmatpush2.bf16.msra.mxu0 0
      %4127 = vmatprep.subr.bf16.mxu0 0
      %4128 = vmatpush2.bf16.msra.mxu0 0
      %4129 = vmatprep.subr.bf16.mxu0 0
      %4130 = vmatpush2.bf16.msra.mxu0 0
      %4131 = vmatprep.subr.bf16.mxu0 0
      %4132 = vmatpush2.bf16.msra.mxu0 0
      %4133 = vmatprep.mubr.bf16.mxu0 0
      %4134 = vmatmul.mubr.bf16.gmra.mxu0 %v4096
      %v4135 = vpop.f32.mrf.mxu0
      %v4136 = vadd.f32 %v4029, %v4135
      %v4137 = vpop.f32.mrf.mxu0
      %v4138 = vpop.f32.mrf.mxu0
      %v4139 = vadd.f32 %v4032, %v4138
      %v4140 = vpop.f32.mrf.mxu0
      %4141 = vmatprep.mubr.bf16.mxu0 0
      %4142 = vmatmul.mubr.bf16.gmra.mxu0 %v3975
      %v4143 = vpop.f32.mrf.mxu0
      %v4144 = vadd.f32 %v4037, %v4143
      %v4145 = vpop.f32.mrf.mxu0
      %v4146 = vpop.f32.mrf.mxu0
      %v4147 = vadd.f32 %v4040, %v4146
      %v4148 = vpop.f32.mrf.mxu0
      %4149 = vmatprep.mubr.bf16.mxu0 0
      %4150 = vmatmul.mubr.bf16.gmra.mxu0 %v3977
      %v4151 = vpop.f32.mrf.mxu0
      %v4152 = vadd.f32 %v4045, %v4151
      %v4153 = vpop.f32.mrf.mxu0
      %v4154 = vpop.f32.mrf.mxu0
      %v4155 = vadd.f32 %v4048, %v4154
      %v4156 = vpop.f32.mrf.mxu0
      %4157 = vmatprep.mubr.bf16.mxu0 0
      %4158 = vmatmul.mubr.bf16.gmra.mxu0 %v3979
      %v4159 = vpop.f32.mrf.mxu0
      %v4160 = vadd.f32 %v4053, %v4159
      %v4161 = vpop.f32.mrf.mxu0
      %v4162 = vpop.f32.mrf.mxu0
      %v4163 = vadd.f32 %v4056, %v4162
      %v4164 = vpop.f32.mrf.mxu0
      %4165 = vmatprep.mubr.bf16.mxu0 0
      %4166 = vmatmul.mubr.bf16.gmra.mxu0 %v3981
      %v4167 = vpop.f32.mrf.mxu0
      %v4168 = vadd.f32 %v4061, %v4167
      %v4169 = vpop.f32.mrf.mxu0
      %v4170 = vpop.f32.mrf.mxu0
      %v4171 = vadd.f32 %v4064, %v4170
      %v4172 = vpop.f32.mrf.mxu0
      %4173 = vmatprep.mubr.bf16.mxu0 0
      %4174 = vmatmul.mubr.bf16.gmra.mxu0 %v3983
      %v4175 = vpop.f32.mrf.mxu0
      %v4176 = vadd.f32 %v4069, %v4175
      %v4177 = vpop.f32.mrf.mxu0
      %v4178 = vpop.f32.mrf.mxu0
      %v4179 = vadd.f32 %v4072, %v4178
      %v4180 = vpop.f32.mrf.mxu0
      %4181 = vmatprep.mubr.bf16.mxu0 0
      %4182 = vmatmul.mubr.bf16.gmra.mxu0 %v3985
      %v4183 = vpop.f32.mrf.mxu0
      %v4184 = vadd.f32 %v4077, %v4183
      %v4185 = vpop.f32.mrf.mxu0
      %v4186 = vpop.f32.mrf.mxu0
      %v4187 = vadd.f32 %v4080, %v4186
      %v4188 = vpop.f32.mrf.mxu0
      %4189 = vmatprep.mubr.bf16.mxu0 0
      %4190 = vmatmul.mubr.bf16.gmra.mxu0 %v3987
      %v4191 = vpop.f32.mrf.mxu0
      %v4192 = vadd.f32 %v4085, %v4191
      %v4193 = vpop.f32.mrf.mxu0
      %v4194 = vpop.f32.mrf.mxu0
      %v4195 = vadd.f32 %v4088, %v4194
      %v4196 = vpop.f32.mrf.mxu0
      %4197 = vdwg.mxu0
      %v4200 = vunpack.c.l.b16 %v3587
      %v4201 = vunpack.c.l.b16 %v3588
      %v4202 = vpack.c.b16 %v4201, %v4200
      %v4203 = vsel %vm1403, %v3969, 0
      %v4206 = vsel %vm1420, %v4202, 0
      %4208 = vmatprep.subr.bf16.mxu0 0
      %4209 = vmatpush1.bf16.msra.mxu0 0
      %4210 = vmatprep.subr.bf16.mxu0 0
      %4211 = vmatpush1.bf16.msra.mxu0 0
      %4212 = vmatprep.subr.bf16.mxu0 0
      %4213 = vmatpush1.bf16.msra.mxu0 0
      %4214 = vmatprep.subr.bf16.mxu0 0
      %4215 = vmatpush1.bf16.msra.mxu0 0
      %4216 = vmatprep.subr.bf16.mxu0 0
      %4217 = vmatpush1.bf16.msra.mxu0 0
      %4218 = vmatprep.subr.bf16.mxu0 0
      %4219 = vmatpush1.bf16.msra.mxu0 0
      %4220 = vmatprep.subr.bf16.mxu0 0
      %4221 = vmatpush1.bf16.msra.mxu0 0
      %4222 = vmatprep.subr.bf16.mxu0 0
      %4223 = vmatpush1.bf16.msra.mxu0 %v4206
      %4224 = vmatprep.subr.bf16.mxu0 0
      %4225 = vmatpush2.bf16.msra.mxu0 0
      %4226 = vmatprep.subr.bf16.mxu0 0
      %4227 = vmatpush2.bf16.msra.mxu0 0
      %4228 = vmatprep.subr.bf16.mxu0 0
      %4229 = vmatpush2.bf16.msra.mxu0 0
      %4230 = vmatprep.subr.bf16.mxu0 0
      %4231 = vmatpush2.bf16.msra.mxu0 0
      %4232 = vmatprep.subr.bf16.mxu0 0
      %4233 = vmatpush2.bf16.msra.mxu0 0
      %4234 = vmatprep.subr.bf16.mxu0 0
      %4235 = vmatpush2.bf16.msra.mxu0 0
      %4236 = vmatprep.subr.bf16.mxu0 0
      %4237 = vmatpush2.bf16.msra.mxu0 0
      %4238 = vmatprep.subr.bf16.mxu0 0
      %4239 = vmatpush2.bf16.msra.mxu0 0
      %4240 = vmatprep.mubr.bf16.mxu0 0
      %4241 = vmatmul.mubr.bf16.gmra.mxu0 %v3977
      %v4242 = vpop.f32.mrf.mxu0
      %v4243 = vadd.f32 0.0, %v4242
      %v4244 = vpop.f32.mrf.mxu0
      %v4245 = vpop.f32.mrf.mxu0
      %v4246 = vadd.f32 0.0, %v4245
      %v4247 = vpop.f32.mrf.mxu0
      %4248 = vmatprep.mubr.bf16.mxu0 0
      %4249 = vmatmul.mubr.bf16.gmra.mxu0 %v3979
      %v4250 = vpop.f32.mrf.mxu0
      %v4251 = vadd.f32 0.0, %v4250
      %v4252 = vpop.f32.mrf.mxu0
      %v4253 = vpop.f32.mrf.mxu0
      %v4254 = vadd.f32 0.0, %v4253
      %v4255 = vpop.f32.mrf.mxu0
      %4256 = vmatprep.mubr.bf16.mxu0 0
      %4257 = vmatmul.mubr.bf16.gmra.mxu0 %v3981
      %v4258 = vpop.f32.mrf.mxu0
      %v4259 = vadd.f32 0.0, %v4258
      %v4260 = vpop.f32.mrf.mxu0
      %v4261 = vpop.f32.mrf.mxu0
      %v4262 = vadd.f32 0.0, %v4261
      %v4263 = vpop.f32.mrf.mxu0
      %4264 = vmatprep.mubr.bf16.mxu0 0
      %4265 = vmatmul.mubr.bf16.gmra.mxu0 %v3983
      %v4266 = vpop.f32.mrf.mxu0
      %v4267 = vadd.f32 0.0, %v4266
      %v4268 = vpop.f32.mrf.mxu0
      %v4269 = vpop.f32.mrf.mxu0
      %v4270 = vadd.f32 0.0, %v4269
      %v4271 = vpop.f32.mrf.mxu0
      %4272 = vmatprep.mubr.bf16.mxu0 0
      %4273 = vmatmul.mubr.bf16.gmra.mxu0 %v3985
      %v4274 = vpop.f32.mrf.mxu0
      %v4275 = vadd.f32 0.0, %v4274
      %v4276 = vpop.f32.mrf.mxu0
      %v4277 = vpop.f32.mrf.mxu0
      %v4278 = vadd.f32 0.0, %v4277
      %v4279 = vpop.f32.mrf.mxu0
      %4280 = vmatprep.mubr.bf16.mxu0 0
      %4281 = vmatmul.mubr.bf16.gmra.mxu0 %v3987
      %v4282 = vpop.f32.mrf.mxu0
      %v4283 = vadd.f32 0.0, %v4282
      %v4284 = vpop.f32.mrf.mxu0
      %v4285 = vpop.f32.mrf.mxu0
      %v4286 = vadd.f32 0.0, %v4285
      %v4287 = vpop.f32.mrf.mxu0
      %4288 = vmatprep.mubr.bf16.mxu0 0
      %4289 = vmatmul.mubr.bf16.gmra.mxu0 %v3989
      %v4290 = vpop.f32.mrf.mxu0
      %v4291 = vadd.f32 0.0, %v4290
      %v4292 = vpop.f32.mrf.mxu0
      %v4293 = vpop.f32.mrf.mxu0
      %v4294 = vadd.f32 0.0, %v4293
      %v4295 = vpop.f32.mrf.mxu0
      %4296 = vmatprep.mubr.bf16.mxu0 0
      %4297 = vmatmul.mubr.bf16.gmra.mxu0 %v4203
      %v4298 = vpop.f32.mrf.mxu0
      %v4299 = vadd.f32 0.0, %v4298
      %v4300 = vpop.f32.mrf.mxu0
      %v4301 = vpop.f32.mrf.mxu0
      %v4302 = vadd.f32 0.0, %v4301
      %v4303 = vpop.f32.mrf.mxu0
      %4304 = vdwg.mxu0
      %v4305 = vadd.f32 %v4136, %v4243
      %v4306 = vadd.f32 %v4139, %v4246
      %v4307 = vadd.f32 %v4144, %v4251
      %v4308 = vadd.f32 %v4147, %v4254
      %v4309 = vadd.f32 %v4152, %v4259
      %v4310 = vadd.f32 %v4155, %v4262
      %v4311 = vadd.f32 %v4160, %v4267
      %v4312 = vadd.f32 %v4163, %v4270
      %v4313 = vadd.f32 %v4168, %v4275
      %v4314 = vadd.f32 %v4171, %v4278
      %v4315 = vadd.f32 %v4176, %v4283
      %v4316 = vadd.f32 %v4179, %v4286
      %v4317 = vadd.f32 %v4184, %v4291
      %v4318 = vadd.f32 %v4187, %v4294
      %v4319 = vadd.f32 %v4192, %v4299
      %v4320 = vadd.f32 %v4195, %v4302
      %v4322 = vlaneseq
      %v4323 = vshrl.u32 %v4322, 7
      %v4324 = vsub.s32 0, %v4323
      %v4325 = vrot.slane %v3589, %v4324
      %v4327 = vadd.f32 %v4305, %v4325
      %v4328 = vadd.f32 %v4306, %v4325
      %v4329 = vadd.f32 %v4307, %v4325
      %v4330 = vadd.f32 %v4308, %v4325
      %v4331 = vadd.f32 %v4309, %v4325
      %v4332 = vadd.f32 %v4310, %v4325
      %v4333 = vadd.f32 %v4311, %v4325
      %v4334 = vadd.f32 %v4312, %v4325
      %v4335 = vadd.f32 %v4313, %v4325
      %v4336 = vadd.f32 %v4314, %v4325
      %v4337 = vadd.f32 %v4315, %v4325
      %v4338 = vadd.f32 %v4316, %v4325
      %v4339 = vadd.f32 %v4317, %v4325
      %v4340 = vadd.f32 %v4318, %v4325
      %v4341 = vadd.f32 %v4319, %v4325
      %v4342 = vadd.f32 %v4320, %v4325
      %v4343 = vsel %vm1356, %v4327, 0.0
      %v4344 = vsel %vm1356, %v4328, 0.0
      %v4345 = vadd.f32 %v4343, %v4344
      %v4346 = vsel %vm1356, %v4329, 0.0
      %v4347 = vadd.f32 %v4345, %v4346
      %v4348 = vsel %vm1356, %v4330, 0.0
      %v4349 = vadd.f32 %v4347, %v4348
      %v4350 = vsel %vm1356, %v4331, 0.0
      %v4351 = vadd.f32 %v4349, %v4350
      %v4352 = vsel %vm1356, %v4332, 0.0
      %v4353 = vadd.f32 %v4351, %v4352
      %v4354 = vsel %vm1356, %v4333, 0.0
      %v4355 = vadd.f32 %v4353, %v4354
      %v4356 = vsel %vm1356, %v4334, 0.0
      %v4357 = vadd.f32 %v4355, %v4356
      %v4358 = vsel %vm1356, %v4335, 0.0
      %v4359 = vadd.f32 %v4357, %v4358
      %v4360 = vsel %vm1356, %v4336, 0.0
      %v4361 = vadd.f32 %v4359, %v4360
      %v4362 = vsel %vm1356, %v4337, 0.0
      %v4363 = vadd.f32 %v4361, %v4362
      %v4364 = vsel %vm1356, %v4338, 0.0
      %v4365 = vadd.f32 %v4363, %v4364
      %v4366 = vsel %vm1356, %v4339, 0.0
      %v4367 = vadd.f32 %v4365, %v4366
      %v4368 = vsel %vm1356, %v4340, 0.0
      %v4369 = vadd.f32 %v4367, %v4368
      %v4370 = vsel %vm1356, %v4341, 0.0
      %v4371 = vadd.f32 %v4369, %v4370
      %v4372 = vsel %vm1356, %v4342, 0.0
      %v4373 = vadd.f32 %v4371, %v4372
      %v4374 = vrot.slane %v4373, 4
      %v4375 = vadd.f32 %v4373, %v4374
      %v4376 = vrot.slane %v4375, 2
      %v4377 = vadd.f32 %v4375, %v4376
      %v4378 = vrot.slane %v4377, 1
      %v4379 = vadd.f32 %v4377, %v4378
      %v4380 = vadd.f32 %v4379, 0.0
      %v4381 = vmul.f32 %v4327, %v4327
      %v4382 = vmul.f32 %v4328, %v4328
      %v4383 = vmul.f32 %v4329, %v4329
      %v4384 = vmul.f32 %v4330, %v4330
      %v4385 = vmul.f32 %v4331, %v4331
      %v4386 = vmul.f32 %v4332, %v4332
      %v4387 = vmul.f32 %v4333, %v4333
      %v4388 = vmul.f32 %v4334, %v4334
      %v4389 = vmul.f32 %v4335, %v4335
      %v4390 = vmul.f32 %v4336, %v4336
      %v4391 = vmul.f32 %v4337, %v4337
      %v4392 = vmul.f32 %v4338, %v4338
      %v4393 = vmul.f32 %v4339, %v4339
      %v4394 = vmul.f32 %v4340, %v4340
      %v4395 = vmul.f32 %v4341, %v4341
      %v4396 = vmul.f32 %v4342, %v4342
      %v4397 = vsel %vm1356, %v4381, 0.0
      %v4398 = vsel %vm1356, %v4382, 0.0
      %v4399 = vadd.f32 %v4397, %v4398
      %v4400 = vsel %vm1356, %v4383, 0.0
      %v4401 = vadd.f32 %v4399, %v4400
      %v4402 = vsel %vm1356, %v4384, 0.0
      %v4403 = vadd.f32 %v4401, %v4402
      %v4404 = vsel %vm1356, %v4385, 0.0
      %v4405 = vadd.f32 %v4403, %v4404
      %v4406 = vsel %vm1356, %v4386, 0.0
      %v4407 = vadd.f32 %v4405, %v4406
      %v4408 = vsel %vm1356, %v4387, 0.0
      %v4409 = vadd.f32 %v4407, %v4408
      %v4410 = vsel %vm1356, %v4388, 0.0
      %v4411 = vadd.f32 %v4409, %v4410
      %v4412 = vsel %vm1356, %v4389, 0.0
      %v4413 = vadd.f32 %v4411, %v4412
      %v4414 = vsel %vm1356, %v4390, 0.0
      %v4415 = vadd.f32 %v4413, %v4414
      %v4416 = vsel %vm1356, %v4391, 0.0
      %v4417 = vadd.f32 %v4415, %v4416
      %v4418 = vsel %vm1356, %v4392, 0.0
      %v4419 = vadd.f32 %v4417, %v4418
      %v4420 = vsel %vm1356, %v4393, 0.0
      %v4421 = vadd.f32 %v4419, %v4420
      %v4422 = vsel %vm1356, %v4394, 0.0
      %v4423 = vadd.f32 %v4421, %v4422
      %v4424 = vsel %vm1356, %v4395, 0.0
      %v4425 = vadd.f32 %v4423, %v4424
      %v4426 = vsel %vm1356, %v4396, 0.0
      %v4427 = vadd.f32 %v4425, %v4426
      %v4428 = vrot.slane %v4427, 4
      %v4429 = vadd.f32 %v4427, %v4428
      %v4430 = vrot.slane %v4429, 2
      %v4431 = vadd.f32 %v4429, %v4430
      %v4432 = vrot.slane %v4431, 1
      %v4433 = vadd.f32 %v4431, %v4432
      %v4434 = vadd.f32 %v4433, 0.0
      %4435 = vst.msk [vmem:[#allocation3] sm:$0xff] %vm1356, %v4327
      %4436 = vst.msk [vmem:[#allocation3 + $0x8] sm:$0xff] %vm1356, %v4328
      %4437 = vst.msk [vmem:[#allocation3 + $0x10] sm:$0xff] %vm1356, %v4329
      %4438 = vst.msk [vmem:[#allocation3 + $0x18] sm:$0xff] %vm1356, %v4330
      %4439 = vst.msk [vmem:[#allocation3 + $0x20] sm:$0xff] %vm1356, %v4331
      %4440 = vst.msk [vmem:[#allocation3 + $0x28] sm:$0xff] %vm1356, %v4332
      %4441 = vst.msk [vmem:[#allocation3 + $0x30] sm:$0xff] %vm1356, %v4333
      %4442 = vst.msk [vmem:[#allocation3 + $0x38] sm:$0xff] %vm1356, %v4334
      %4443 = vst.msk [vmem:[#allocation3 + $0x40] sm:$0xff] %vm1356, %v4335
      %4444 = vst.msk [vmem:[#allocation3 + $0x48] sm:$0xff] %vm1356, %v4336
      %4445 = vst.msk [vmem:[#allocation3 + $0x50] sm:$0xff] %vm1356, %v4337
      %4446 = vst.msk [vmem:[#allocation3 + $0x58] sm:$0xff] %vm1356, %v4338
      %4447 = vst.msk [vmem:[#allocation3 + $0x60] sm:$0xff] %vm1356, %v4339
      %4448 = vst.msk [vmem:[#allocation3 + $0x68] sm:$0xff] %vm1356, %v4340
      %4449 = vst.msk [vmem:[#allocation3 + $0x70] sm:$0xff] %vm1356, %v4341
      %4450 = vst.msk [vmem:[#allocation3 + $0x78] sm:$0xff] %vm1356, %v4342
      %v4451 = vld [vmem:[%s1881] sm:$0xf]
      %v4452 = vld [vmem:[%s1881 + $0x4] sm:$0xf]
      %v4453 = vld [vmem:[%s1881 + $0xc] sm:$0xf]
      %v4454 = vld [vmem:[%s1881 + $0x10] sm:$0xf]
      %v4455 = vld [vmem:[%s1881 + $0x18] sm:$0xf]
      %v4456 = vld [vmem:[%s1881 + $0x1c] sm:$0xf]
      %v4457 = vld [vmem:[%s1881 + $0x24] sm:$0xf]
      %v4458 = vld [vmem:[%s1881 + $0x28] sm:$0xf]
      %v4459 = vld [vmem:[%s1881 + $0x30] sm:$0xf]
      %v4460 = vld [vmem:[%s1881 + $0x34] sm:$0xf]
      %v4461 = vld [vmem:[%s1881 + $0x3c] sm:$0xf]
      %v4462 = vld [vmem:[%s1881 + $0x40] sm:$0xf]
      %v4463 = vld [vmem:[%s1881 + $0x48] sm:$0xf]
      %v4464 = vld [vmem:[%s1881 + $0x4c] sm:$0xf]
      %v4465 = vld [vmem:[%s1881 + $0x54] sm:$0xf]
      %v4466 = vld [vmem:[%s1881 + $0x58] sm:$0xf]
      %v4467 = vld [vmem:[%s1881 + $0x60] sm:$0xf]
      %v4468 = vld [vmem:[%s1881 + $0x64] sm:$0xf]
      %v4469 = vld [vmem:[%s1881 + $0x6c] sm:$0xf]
      %v4470 = vld [vmem:[%s1881 + $0x70] sm:$0xf]
      %v4471 = vld [vmem:[%s1881 + $0x8] sm:$0x1]
      %v4472 = vld [vmem:[%s1881 + $0x14] sm:$0x1]
      %v4473 = vld [vmem:[%s1881 + $0x20] sm:$0x1]
      %v4474 = vld [vmem:[%s1881 + $0x2c] sm:$0x1]
      %v4475 = vld [vmem:[%s1881 + $0x38] sm:$0x1]
      %v4476 = vld [vmem:[%s1881 + $0x44] sm:$0x1]
      %v4477 = vld [vmem:[%s1881 + $0x50] sm:$0x1]
      %v4478 = vld [vmem:[%s1881 + $0x5c] sm:$0x1]
      %v4479 = vld [vmem:[%s1881 + $0x68] sm:$0x1]
      %v4480 = vld [vmem:[%s1881 + $0x74] sm:$0x1]
      %v4481 = vld [vmem:[%s1881] sm:$0xe]
      %v4482 = vld [vmem:[%s1881 + $0xc] sm:$0xe]
      %v4483 = vld [vmem:[%s1881 + $0x18] sm:$0xe]
      %v4484 = vld [vmem:[%s1881 + $0x24] sm:$0xe]
      %v4485 = vld [vmem:[%s1881 + $0x30] sm:$0xe]
      %v4486 = vld [vmem:[%s1881 + $0x3c] sm:$0xe]
      %v4487 = vld [vmem:[%s1881 + $0x48] sm:$0xe]
      %v4488 = vld [vmem:[%s1881 + $0x54] sm:$0xe]
      %v4489 = vld [vmem:[%s1881 + $0x60] sm:$0xe]
      %v4490 = vld [vmem:[%s1881 + $0x6c] sm:$0xe]
      %v4511 = vunpack.c.l.b16 %v4451
      %v4512 = vunpack.c.l.b16 %v4452
      %v4513 = vunpack.c.l.b16 %v4453
      %v4514 = vunpack.c.l.b16 %v4454
      %v4515 = vunpack.c.l.b16 %v4455
      %v4516 = vunpack.c.l.b16 %v4456
      %v4517 = vunpack.c.l.b16 %v4457
      %v4518 = vunpack.c.l.b16 %v4458
      %v4519 = vunpack.c.l.b16 %v4459
      %v4520 = vunpack.c.l.b16 %v4460
      %v4521 = vunpack.c.l.b16 %v4461
      %v4522 = vunpack.c.l.b16 %v4462
      %v4523 = vunpack.c.l.b16 %v4463
      %v4524 = vunpack.c.l.b16 %v4464
      %v4525 = vunpack.c.l.b16 %v4465
      %v4526 = vunpack.c.l.b16 %v4466
      %v4527 = vunpack.c.l.b16 %v4467
      %v4528 = vunpack.c.l.b16 %v4468
      %v4529 = vunpack.c.l.b16 %v4469
      %v4530 = vunpack.c.l.b16 %v4470
      %v4531 = vpack.c.b16 %v4512, %v4511
      %v4532 = vpack.c.b16 %v4514, %v4513
      %v4533 = vpack.c.b16 %v4516, %v4515
      %v4534 = vpack.c.b16 %v4518, %v4517
      %v4535 = vpack.c.b16 %v4520, %v4519
      %v4536 = vpack.c.b16 %v4522, %v4521
      %v4537 = vpack.c.b16 %v4524, %v4523
      %v4538 = vpack.c.b16 %v4526, %v4525
      %v4539 = vpack.c.b16 %v4528, %v4527
      %v4540 = vpack.c.b16 %v4530, %v4529
      %v4551 = vunpack.c.l.b16 %v4471
      %v4552 = vunpack.c.l.b16 %v4472
      %v4553 = vunpack.c.l.b16 %v4473
      %v4554 = vunpack.c.l.b16 %v4474
      %v4555 = vunpack.c.l.b16 %v4475
      %v4556 = vunpack.c.l.b16 %v4476
      %v4557 = vunpack.c.l.b16 %v4477
      %v4558 = vunpack.c.l.b16 %v4478
      %v4559 = vunpack.c.l.b16 %v4479
      %v4560 = vunpack.c.l.b16 %v4480
      %v4561 = vpack.c.b16 %v4551, %v4551
      %v4562 = vpack.c.b16 %v4552, %v4552
      %v4563 = vpack.c.b16 %v4553, %v4553
      %v4564 = vpack.c.b16 %v4554, %v4554
      %v4565 = vpack.c.b16 %v4555, %v4555
      %v4566 = vpack.c.b16 %v4556, %v4556
      %v4567 = vpack.c.b16 %v4557, %v4557
      %v4568 = vpack.c.b16 %v4558, %v4558
      %v4569 = vpack.c.b16 %v4559, %v4559
      %v4570 = vpack.c.b16 %v4560, %v4560
      %v4572 = vshrl.u32 %v4531, 16
      %v4574 = vshll.u32 %v4531, 16
      %v4576 = vrot.slane %v4574, 1
      %v4577 = vor.u32 %v4572, %v4576
      %v4579 = vshll.u32 %v4561, 16
      %v4581 = vrot.slane %v4579, 1
      %v4582 = vsel %vm1134, %v4577, %v4581
      %v4584 = vshrl.u32 %v4532, 16
      %v4586 = vshll.u32 %v4532, 16
      %v4588 = vrot.slane %v4586, 1
      %v4589 = vor.u32 %v4584, %v4588
      %v4591 = vshll.u32 %v4562, 16
      %v4593 = vrot.slane %v4591, 1
      %v4594 = vsel %vm1134, %v4589, %v4593
      %v4596 = vshrl.u32 %v4533, 16
      %v4598 = vshll.u32 %v4533, 16
      %v4600 = vrot.slane %v4598, 1
      %v4601 = vor.u32 %v4596, %v4600
      %v4603 = vshll.u32 %v4563, 16
      %v4605 = vrot.slane %v4603, 1
      %v4606 = vsel %vm1134, %v4601, %v4605
      %v4608 = vshrl.u32 %v4534, 16
      %v4610 = vshll.u32 %v4534, 16
      %v4612 = vrot.slane %v4610, 1
      %v4613 = vor.u32 %v4608, %v4612
      %v4615 = vshll.u32 %v4564, 16
      %v4617 = vrot.slane %v4615, 1
      %v4618 = vsel %vm1134, %v4613, %v4617
      %v4620 = vshrl.u32 %v4535, 16
      %v4622 = vshll.u32 %v4535, 16
      %v4624 = vrot.slane %v4622, 1
      %v4625 = vor.u32 %v4620, %v4624
      %v4627 = vshll.u32 %v4565, 16
      %v4629 = vrot.slane %v4627, 1
      %v4630 = vsel %vm1134, %v4625, %v4629
      %v4632 = vshrl.u32 %v4536, 16
      %v4634 = vshll.u32 %v4536, 16
      %v4636 = vrot.slane %v4634, 1
      %v4637 = vor.u32 %v4632, %v4636
      %v4639 = vshll.u32 %v4566, 16
      %v4641 = vrot.slane %v4639, 1
      %v4642 = vsel %vm1134, %v4637, %v4641
      %v4644 = vshrl.u32 %v4537, 16
      %v4646 = vshll.u32 %v4537, 16
      %v4648 = vrot.slane %v4646, 1
      %v4649 = vor.u32 %v4644, %v4648
      %v4651 = vshll.u32 %v4567, 16
      %v4653 = vrot.slane %v4651, 1
      %v4654 = vsel %vm1134, %v4649, %v4653
      %v4656 = vshrl.u32 %v4538, 16
      %v4658 = vshll.u32 %v4538, 16
      %v4660 = vrot.slane %v4658, 1
      %v4661 = vor.u32 %v4656, %v4660
      %v4663 = vshll.u32 %v4568, 16
      %v4665 = vrot.slane %v4663, 1
      %v4666 = vsel %vm1134, %v4661, %v4665
      %v4668 = vshrl.u32 %v4539, 16
      %v4670 = vshll.u32 %v4539, 16
      %v4672 = vrot.slane %v4670, 1
      %v4673 = vor.u32 %v4668, %v4672
      %v4675 = vshll.u32 %v4569, 16
      %v4677 = vrot.slane %v4675, 1
      %v4678 = vsel %vm1134, %v4673, %v4677
      %v4680 = vshrl.u32 %v4540, 16
      %v4682 = vshll.u32 %v4540, 16
      %v4684 = vrot.slane %v4682, 1
      %v4685 = vor.u32 %v4680, %v4684
      %v4687 = vshll.u32 %v4570, 16
      %v4689 = vrot.slane %v4687, 1
      %v4690 = vsel %vm1134, %v4685, %v4689
      %4691 = vrot.lane.b32.xlu0 %v4582, 4
      %v4692 = vpop.permute.xlu0 %4691
      %4693 = vrot.lane.b32.xlu0 %v4594, 4
      %v4694 = vpop.permute.xlu0 %4693
      %4695 = vrot.lane.b32.xlu0 %v4606, 4
      %v4696 = vpop.permute.xlu0 %4695
      %4697 = vrot.lane.b32.xlu0 %v4618, 4
      %v4698 = vpop.permute.xlu0 %4697
      %4699 = vrot.lane.b32.xlu0 %v4630, 4
      %v4700 = vpop.permute.xlu0 %4699
      %4701 = vrot.lane.b32.xlu0 %v4642, 4
      %v4702 = vpop.permute.xlu0 %4701
      %4703 = vrot.lane.b32.xlu0 %v4654, 4
      %v4704 = vpop.permute.xlu0 %4703
      %4705 = vrot.lane.b32.xlu0 %v4666, 4
      %v4706 = vpop.permute.xlu0 %4705
      %4707 = vrot.lane.b32.xlu0 %v4678, 4
      %v4708 = vpop.permute.xlu0 %4707
      %4709 = vrot.lane.b32.xlu0 %v4690, 4
      %v4710 = vpop.permute.xlu0 %4709
      %v4721 = vunpack.c.l.b16 %v4481
      %v4722 = vunpack.c.l.b16 %v4482
      %v4723 = vunpack.c.l.b16 %v4483
      %v4724 = vunpack.c.l.b16 %v4484
      %v4725 = vunpack.c.l.b16 %v4485
      %v4726 = vunpack.c.l.b16 %v4486
      %v4727 = vunpack.c.l.b16 %v4487
      %v4728 = vunpack.c.l.b16 %v4488
      %v4729 = vunpack.c.l.b16 %v4489
      %v4730 = vunpack.c.l.b16 %v4490
      %v4731 = vpack.c.b16 %v4512, %v4721
      %v4732 = vpack.c.b16 %v4514, %v4722
      %v4733 = vpack.c.b16 %v4516, %v4723
      %v4734 = vpack.c.b16 %v4518, %v4724
      %v4735 = vpack.c.b16 %v4520, %v4725
      %v4736 = vpack.c.b16 %v4522, %v4726
      %v4737 = vpack.c.b16 %v4524, %v4727
      %v4738 = vpack.c.b16 %v4526, %v4728
      %v4739 = vpack.c.b16 %v4528, %v4729
      %v4740 = vpack.c.b16 %v4530, %v4730
      %v4741 = vrot.slane %v4731, 1
      %v4742 = vrot.slane %v4561, 1
      %v4743 = vsel %vm1305, %v4741, %v4742
      %v4744 = vrot.slane %v4732, 1
      %v4745 = vrot.slane %v4562, 1
      %v4746 = vsel %vm1305, %v4744, %v4745
      %v4747 = vrot.slane %v4733, 1
      %v4748 = vrot.slane %v4563, 1
      %v4749 = vsel %vm1305, %v4747, %v4748
      %v4750 = vrot.slane %v4734, 1
      %v4751 = vrot.slane %v4564, 1
      %v4752 = vsel %vm1305, %v4750, %v4751
      %v4753 = vrot.slane %v4735, 1
      %v4754 = vrot.slane %v4565, 1
      %v4755 = vsel %vm1305, %v4753, %v4754
      %v4756 = vrot.slane %v4736, 1
      %v4757 = vrot.slane %v4566, 1
      %v4758 = vsel %vm1305, %v4756, %v4757
      %v4759 = vrot.slane %v4737, 1
      %v4760 = vrot.slane %v4567, 1
      %v4761 = vsel %vm1305, %v4759, %v4760
      %v4762 = vrot.slane %v4738, 1
      %v4763 = vrot.slane %v4568, 1
      %v4764 = vsel %vm1305, %v4762, %v4763
      %v4765 = vrot.slane %v4739, 1
      %v4766 = vrot.slane %v4569, 1
      %v4767 = vsel %vm1305, %v4765, %v4766
      %v4768 = vrot.slane %v4740, 1
      %v4769 = vrot.slane %v4570, 1
      %v4770 = vsel %vm1305, %v4768, %v4769
      %4771 = vrot.lane.b32.xlu0 %v4743, 8
      %v4772 = vpop.permute.xlu0 %4771
      %4773 = vrot.lane.b32.xlu0 %v4746, 8
      %v4774 = vpop.permute.xlu0 %4773
      %4775 = vrot.lane.b32.xlu0 %v4749, 8
      %v4776 = vpop.permute.xlu0 %4775
      %4777 = vrot.lane.b32.xlu0 %v4752, 8
      %v4778 = vpop.permute.xlu0 %4777
      %4779 = vrot.lane.b32.xlu0 %v4755, 8
      %v4780 = vpop.permute.xlu0 %4779
      %4781 = vrot.lane.b32.xlu0 %v4758, 8
      %v4782 = vpop.permute.xlu0 %4781
      %4783 = vrot.lane.b32.xlu0 %v4761, 8
      %v4784 = vpop.permute.xlu0 %4783
      %4785 = vrot.lane.b32.xlu0 %v4764, 8
      %v4786 = vpop.permute.xlu0 %4785
      %4787 = vrot.lane.b32.xlu0 %v4767, 8
      %v4788 = vpop.permute.xlu0 %4787
      %4789 = vrot.lane.b32.xlu0 %v4770, 8
      %v4790 = vpop.permute.xlu0 %4789
      %v4792 = vsel %vm1356, %v4531, %v4692
      %v4794 = vsel %vm1356, %v4532, %v4694
      %v4796 = vsel %vm1356, %v4533, %v4696
      %v4798 = vsel %vm1356, %v4534, %v4698
      %v4800 = vsel %vm1356, %v4535, %v4700
      %v4802 = vsel %vm1356, %v4536, %v4702
      %v4804 = vsel %vm1356, %v4537, %v4704
      %v4806 = vsel %vm1356, %v4538, %v4706
      %v4808 = vsel %vm1356, %v4539, %v4708
      %v4810 = vsel %vm1356, %v4540, %v4710
      %v4812 = vsel %vm1377, %v4792, %v4772
      %v4814 = vsel %vm1377, %v4794, %v4774
      %v4816 = vsel %vm1377, %v4796, %v4776
      %v4818 = vsel %vm1377, %v4798, %v4778
      %v4820 = vsel %vm1377, %v4800, %v4780
      %v4822 = vsel %vm1377, %v4802, %v4782
      %v4824 = vsel %vm1377, %v4804, %v4784
      %v4826 = vsel %vm1377, %v4806, %v4786
      %v4828 = vsel %vm1377, %v4808, %v4788
      %v4830 = vsel %vm1377, %v4810, %v4790
      %v4831 = vsel %vm1403, %v4814, 0
      %v4833 = vsel %vm1403, %v4816, 0
      %v4835 = vsel %vm1403, %v4818, 0
      %v4837 = vsel %vm1403, %v4820, 0
      %v4839 = vsel %vm1403, %v4822, 0
      %v4841 = vsel %vm1403, %v4824, 0
      %v4843 = vsel %vm1403, %v4826, 0
      %v4845 = vsel %vm1403, %v4828, 0
      %4847 = vmatprep.subr.bf16.mxu0 0
      %4848 = vmatpush1.bf16.msra.mxu0 0
      %4849 = vmatprep.subr.bf16.mxu0 0
      %4850 = vmatpush1.bf16.msra.mxu0 0
      %4851 = vmatprep.subr.bf16.mxu0 0
      %4852 = vmatpush1.bf16.msra.mxu0 0
      %4853 = vmatprep.subr.bf16.mxu0 0
      %4854 = vmatpush1.bf16.msra.mxu0 0
      %4855 = vmatprep.subr.bf16.mxu0 0
      %4856 = vmatpush1.bf16.msra.mxu0 0
      %4857 = vmatprep.subr.bf16.mxu0 0
      %4858 = vmatpush1.bf16.msra.mxu0 0
      %4859 = vmatprep.subr.bf16.mxu0 0
      %4860 = vmatpush1.bf16.msra.mxu0 0
      %4861 = vmatprep.subr.bf16.mxu0 0
      %4862 = vmatpush1.bf16.msra.mxu0 %v3992
      %4863 = vmatprep.subr.bf16.mxu0 0
      %4864 = vmatpush2.bf16.msra.mxu0 0
      %4865 = vmatprep.subr.bf16.mxu0 0
      %4866 = vmatpush2.bf16.msra.mxu0 0
      %4867 = vmatprep.subr.bf16.mxu0 0
      %4868 = vmatpush2.bf16.msra.mxu0 0
      %4869 = vmatprep.subr.bf16.mxu0 0
      %4870 = vmatpush2.bf16.msra.mxu0 0
      %4871 = vmatprep.subr.bf16.mxu0 0
      %4872 = vmatpush2.bf16.msra.mxu0 0
      %4873 = vmatprep.subr.bf16.mxu0 0
      %4874 = vmatpush2.bf16.msra.mxu0 0
      %4875 = vmatprep.subr.bf16.mxu0 0
      %4876 = vmatpush2.bf16.msra.mxu0 0
      %4877 = vmatprep.subr.bf16.mxu0 0
      %4878 = vmatpush2.bf16.msra.mxu0 0
      %4879 = vmatprep.mubr.bf16.mxu0 0
      %4880 = vmatmul.mubr.bf16.gmra.mxu0 %v4831
      %v4881 = vpop.f32.mrf.mxu0
      %v4882 = vadd.f32 0.0, %v4881
      %v4883 = vpop.f32.mrf.mxu0
      %v4884 = vpop.f32.mrf.mxu0
      %v4885 = vadd.f32 0.0, %v4884
      %v4886 = vpop.f32.mrf.mxu0
      %4887 = vmatprep.mubr.bf16.mxu0 0
      %4888 = vmatmul.mubr.bf16.gmra.mxu0 %v4833
      %v4889 = vpop.f32.mrf.mxu0
      %v4890 = vadd.f32 0.0, %v4889
      %v4891 = vpop.f32.mrf.mxu0
      %v4892 = vpop.f32.mrf.mxu0
      %v4893 = vadd.f32 0.0, %v4892
      %v4894 = vpop.f32.mrf.mxu0
      %4895 = vmatprep.mubr.bf16.mxu0 0
      %4896 = vmatmul.mubr.bf16.gmra.mxu0 %v4835
      %v4897 = vpop.f32.mrf.mxu0
      %v4898 = vadd.f32 0.0, %v4897
      %v4899 = vpop.f32.mrf.mxu0
      %v4900 = vpop.f32.mrf.mxu0
      %v4901 = vadd.f32 0.0, %v4900
      %v4902 = vpop.f32.mrf.mxu0
      %4903 = vmatprep.mubr.bf16.mxu0 0
      %4904 = vmatmul.mubr.bf16.gmra.mxu0 %v4837
      %v4905 = vpop.f32.mrf.mxu0
      %v4906 = vadd.f32 0.0, %v4905
      %v4907 = vpop.f32.mrf.mxu0
      %v4908 = vpop.f32.mrf.mxu0
      %v4909 = vadd.f32 0.0, %v4908
      %v4910 = vpop.f32.mrf.mxu0
      %4911 = vmatprep.mubr.bf16.mxu0 0
      %4912 = vmatmul.mubr.bf16.gmra.mxu0 %v4839
      %v4913 = vpop.f32.mrf.mxu0
      %v4914 = vadd.f32 0.0, %v4913
      %v4915 = vpop.f32.mrf.mxu0
      %v4916 = vpop.f32.mrf.mxu0
      %v4917 = vadd.f32 0.0, %v4916
      %v4918 = vpop.f32.mrf.mxu0
      %4919 = vmatprep.mubr.bf16.mxu0 0
      %4920 = vmatmul.mubr.bf16.gmra.mxu0 %v4841
      %v4921 = vpop.f32.mrf.mxu0
      %v4922 = vadd.f32 0.0, %v4921
      %v4923 = vpop.f32.mrf.mxu0
      %v4924 = vpop.f32.mrf.mxu0
      %v4925 = vadd.f32 0.0, %v4924
      %v4926 = vpop.f32.mrf.mxu0
      %4927 = vmatprep.mubr.bf16.mxu0 0
      %4928 = vmatmul.mubr.bf16.gmra.mxu0 %v4843
      %v4929 = vpop.f32.mrf.mxu0
      %v4930 = vadd.f32 0.0, %v4929
      %v4931 = vpop.f32.mrf.mxu0
      %v4932 = vpop.f32.mrf.mxu0
      %v4933 = vadd.f32 0.0, %v4932
      %v4934 = vpop.f32.mrf.mxu0
      %4935 = vmatprep.mubr.bf16.mxu0 0
      %4936 = vmatmul.mubr.bf16.gmra.mxu0 %v4845
      %v4937 = vpop.f32.mrf.mxu0
      %v4938 = vadd.f32 0.0, %v4937
      %v4939 = vpop.f32.mrf.mxu0
      %v4940 = vpop.f32.mrf.mxu0
      %v4941 = vadd.f32 0.0, %v4940
      %v4942 = vpop.f32.mrf.mxu0
      %4943 = vdwg.mxu0
      %v4944 = vsel %vm1403, %v4812, 0
      %4946 = vmatprep.subr.bf16.mxu0 0
      %4947 = vmatpush1.bf16.msra.mxu0 0
      %4948 = vmatprep.subr.bf16.mxu0 0
      %4949 = vmatpush1.bf16.msra.mxu0 0
      %4950 = vmatprep.subr.bf16.mxu0 0
      %4951 = vmatpush1.bf16.msra.mxu0 0
      %4952 = vmatprep.subr.bf16.mxu0 0
      %4953 = vmatpush1.bf16.msra.mxu0 0
      %4954 = vmatprep.subr.bf16.mxu0 0
      %4955 = vmatpush1.bf16.msra.mxu0 0
      %4956 = vmatprep.subr.bf16.mxu0 0
      %4957 = vmatpush1.bf16.msra.mxu0 0
      %4958 = vmatprep.subr.bf16.mxu0 0
      %4959 = vmatpush1.bf16.msra.mxu0 0
      %4960 = vmatprep.subr.bf16.mxu0 0
      %4961 = vmatpush1.bf16.msra.mxu0 %v4099
      %4962 = vmatprep.subr.bf16.mxu0 0
      %4963 = vmatpush2.bf16.msra.mxu0 0
      %4964 = vmatprep.subr.bf16.mxu0 0
      %4965 = vmatpush2.bf16.msra.mxu0 0
      %4966 = vmatprep.subr.bf16.mxu0 0
      %4967 = vmatpush2.bf16.msra.mxu0 0
      %4968 = vmatprep.subr.bf16.mxu0 0
      %4969 = vmatpush2.bf16.msra.mxu0 0
      %4970 = vmatprep.subr.bf16.mxu0 0
      %4971 = vmatpush2.bf16.msra.mxu0 0
      %4972 = vmatprep.subr.bf16.mxu0 0
      %4973 = vmatpush2.bf16.msra.mxu0 0
      %4974 = vmatprep.subr.bf16.mxu0 0
      %4975 = vmatpush2.bf16.msra.mxu0 0
      %4976 = vmatprep.subr.bf16.mxu0 0
      %4977 = vmatpush2.bf16.msra.mxu0 0
      %4978 = vmatprep.mubr.bf16.mxu0 0
      %4979 = vmatmul.mubr.bf16.gmra.mxu0 %v4944
      %v4980 = vpop.f32.mrf.mxu0
      %v4981 = vadd.f32 %v4882, %v4980
      %v4982 = vpop.f32.mrf.mxu0
      %v4983 = vpop.f32.mrf.mxu0
      %v4984 = vadd.f32 %v4885, %v4983
      %v4985 = vpop.f32.mrf.mxu0
      %4986 = vmatprep.mubr.bf16.mxu0 0
      %4987 = vmatmul.mubr.bf16.gmra.mxu0 %v4831
      %v4988 = vpop.f32.mrf.mxu0
      %v4989 = vadd.f32 %v4890, %v4988
      %v4990 = vpop.f32.mrf.mxu0
      %v4991 = vpop.f32.mrf.mxu0
      %v4992 = vadd.f32 %v4893, %v4991
      %v4993 = vpop.f32.mrf.mxu0
      %4994 = vmatprep.mubr.bf16.mxu0 0
      %4995 = vmatmul.mubr.bf16.gmra.mxu0 %v4833
      %v4996 = vpop.f32.mrf.mxu0
      %v4997 = vadd.f32 %v4898, %v4996
      %v4998 = vpop.f32.mrf.mxu0
      %v4999 = vpop.f32.mrf.mxu0
      %v5000 = vadd.f32 %v4901, %v4999
      %v5001 = vpop.f32.mrf.mxu0
      %5002 = vmatprep.mubr.bf16.mxu0 0
      %5003 = vmatmul.mubr.bf16.gmra.mxu0 %v4835
      %v5004 = vpop.f32.mrf.mxu0
      %v5005 = vadd.f32 %v4906, %v5004
      %v5006 = vpop.f32.mrf.mxu0
      %v5007 = vpop.f32.mrf.mxu0
      %v5008 = vadd.f32 %v4909, %v5007
      %v5009 = vpop.f32.mrf.mxu0
      %5010 = vmatprep.mubr.bf16.mxu0 0
      %5011 = vmatmul.mubr.bf16.gmra.mxu0 %v4837
      %v5012 = vpop.f32.mrf.mxu0
      %v5013 = vadd.f32 %v4914, %v5012
      %v5014 = vpop.f32.mrf.mxu0
      %v5015 = vpop.f32.mrf.mxu0
      %v5016 = vadd.f32 %v4917, %v5015
      %v5017 = vpop.f32.mrf.mxu0
      %5018 = vmatprep.mubr.bf16.mxu0 0
      %5019 = vmatmul.mubr.bf16.gmra.mxu0 %v4839
      %v5020 = vpop.f32.mrf.mxu0
      %v5021 = vadd.f32 %v4922, %v5020
      %v5022 = vpop.f32.mrf.mxu0
      %v5023 = vpop.f32.mrf.mxu0
      %v5024 = vadd.f32 %v4925, %v5023
      %v5025 = vpop.f32.mrf.mxu0
      %5026 = vmatprep.mubr.bf16.mxu0 0
      %5027 = vmatmul.mubr.bf16.gmra.mxu0 %v4841
      %v5028 = vpop.f32.mrf.mxu0
      %v5029 = vadd.f32 %v4930, %v5028
      %v5030 = vpop.f32.mrf.mxu0
      %v5031 = vpop.f32.mrf.mxu0
      %v5032 = vadd.f32 %v4933, %v5031
      %v5033 = vpop.f32.mrf.mxu0
      %5034 = vmatprep.mubr.bf16.mxu0 0
      %5035 = vmatmul.mubr.bf16.gmra.mxu0 %v4843
      %v5036 = vpop.f32.mrf.mxu0
      %v5037 = vadd.f32 %v4938, %v5036
      %v5038 = vpop.f32.mrf.mxu0
      %v5039 = vpop.f32.mrf.mxu0
      %v5040 = vadd.f32 %v4941, %v5039
      %v5041 = vpop.f32.mrf.mxu0
      %5042 = vdwg.mxu0
      %v5043 = vsel %vm1403, %v4830, 0
      %5045 = vmatprep.subr.bf16.mxu0 0
      %5046 = vmatpush1.bf16.msra.mxu0 0
      %5047 = vmatprep.subr.bf16.mxu0 0
      %5048 = vmatpush1.bf16.msra.mxu0 0
      %5049 = vmatprep.subr.bf16.mxu0 0
      %5050 = vmatpush1.bf16.msra.mxu0 0
      %5051 = vmatprep.subr.bf16.mxu0 0
      %5052 = vmatpush1.bf16.msra.mxu0 0
      %5053 = vmatprep.subr.bf16.mxu0 0
      %5054 = vmatpush1.bf16.msra.mxu0 0
      %5055 = vmatprep.subr.bf16.mxu0 0
      %5056 = vmatpush1.bf16.msra.mxu0 0
      %5057 = vmatprep.subr.bf16.mxu0 0
      %5058 = vmatpush1.bf16.msra.mxu0 0
      %5059 = vmatprep.subr.bf16.mxu0 0
      %5060 = vmatpush1.bf16.msra.mxu0 %v4206
      %5061 = vmatprep.subr.bf16.mxu0 0
      %5062 = vmatpush2.bf16.msra.mxu0 0
      %5063 = vmatprep.subr.bf16.mxu0 0
      %5064 = vmatpush2.bf16.msra.mxu0 0
      %5065 = vmatprep.subr.bf16.mxu0 0
      %5066 = vmatpush2.bf16.msra.mxu0 0
      %5067 = vmatprep.subr.bf16.mxu0 0
      %5068 = vmatpush2.bf16.msra.mxu0 0
      %5069 = vmatprep.subr.bf16.mxu0 0
      %5070 = vmatpush2.bf16.msra.mxu0 0
      %5071 = vmatprep.subr.bf16.mxu0 0
      %5072 = vmatpush2.bf16.msra.mxu0 0
      %5073 = vmatprep.subr.bf16.mxu0 0
      %5074 = vmatpush2.bf16.msra.mxu0 0
      %5075 = vmatprep.subr.bf16.mxu0 0
      %5076 = vmatpush2.bf16.msra.mxu0 0
      %5077 = vmatprep.mubr.bf16.mxu0 0
      %5078 = vmatmul.mubr.bf16.gmra.mxu0 %v4833
      %v5079 = vpop.f32.mrf.mxu0
      %v5080 = vadd.f32 0.0, %v5079
      %v5081 = vpop.f32.mrf.mxu0
      %v5082 = vpop.f32.mrf.mxu0
      %v5083 = vadd.f32 0.0, %v5082
      %v5084 = vpop.f32.mrf.mxu0
      %5085 = vmatprep.mubr.bf16.mxu0 0
      %5086 = vmatmul.mubr.bf16.gmra.mxu0 %v4835
      %v5087 = vpop.f32.mrf.mxu0
      %v5088 = vadd.f32 0.0, %v5087
      %v5089 = vpop.f32.mrf.mxu0
      %v5090 = vpop.f32.mrf.mxu0
      %v5091 = vadd.f32 0.0, %v5090
      %v5092 = vpop.f32.mrf.mxu0
      %5093 = vmatprep.mubr.bf16.mxu0 0
      %5094 = vmatmul.mubr.bf16.gmra.mxu0 %v4837
      %v5095 = vpop.f32.mrf.mxu0
      %v5096 = vadd.f32 0.0, %v5095
      %v5097 = vpop.f32.mrf.mxu0
      %v5098 = vpop.f32.mrf.mxu0
      %v5099 = vadd.f32 0.0, %v5098
      %v5100 = vpop.f32.mrf.mxu0
      %5101 = vmatprep.mubr.bf16.mxu0 0
      %5102 = vmatmul.mubr.bf16.gmra.mxu0 %v4839
      %v5103 = vpop.f32.mrf.mxu0
      %v5104 = vadd.f32 0.0, %v5103
      %v5105 = vpop.f32.mrf.mxu0
      %v5106 = vpop.f32.mrf.mxu0
      %v5107 = vadd.f32 0.0, %v5106
      %v5108 = vpop.f32.mrf.mxu0
      %5109 = vmatprep.mubr.bf16.mxu0 0
      %5110 = vmatmul.mubr.bf16.gmra.mxu0 %v4841
      %v5111 = vpop.f32.mrf.mxu0
      %v5112 = vadd.f32 0.0, %v5111
      %v5113 = vpop.f32.mrf.mxu0
      %v5114 = vpop.f32.mrf.mxu0
      %v5115 = vadd.f32 0.0, %v5114
      %v5116 = vpop.f32.mrf.mxu0
      %5117 = vmatprep.mubr.bf16.mxu0 0
      %5118 = vmatmul.mubr.bf16.gmra.mxu0 %v4843
      %v5119 = vpop.f32.mrf.mxu0
      %v5120 = vadd.f32 0.0, %v5119
      %v5121 = vpop.f32.mrf.mxu0
      %v5122 = vpop.f32.mrf.mxu0
      %v5123 = vadd.f32 0.0, %v5122
      %v5124 = vpop.f32.mrf.mxu0
      %5125 = vmatprep.mubr.bf16.mxu0 0
      %5126 = vmatmul.mubr.bf16.gmra.mxu0 %v4845
      %v5127 = vpop.f32.mrf.mxu0
      %v5128 = vadd.f32 0.0, %v5127
      %v5129 = vpop.f32.mrf.mxu0
      %v5130 = vpop.f32.mrf.mxu0
      %v5131 = vadd.f32 0.0, %v5130
      %v5132 = vpop.f32.mrf.mxu0
      %5133 = vmatprep.mubr.bf16.mxu0 0
      %5134 = vmatmul.mubr.bf16.gmra.mxu0 %v5043
      %v5135 = vpop.f32.mrf.mxu0
      %v5136 = vadd.f32 0.0, %v5135
      %v5137 = vpop.f32.mrf.mxu0
      %v5138 = vpop.f32.mrf.mxu0
      %v5139 = vadd.f32 0.0, %v5138
      %v5140 = vpop.f32.mrf.mxu0
      %5141 = vdwg.mxu0
      %v5142 = vadd.f32 %v4981, %v5080
      %v5143 = vadd.f32 %v4984, %v5083
      %v5144 = vadd.f32 %v4989, %v5088
      %v5145 = vadd.f32 %v4992, %v5091
      %v5146 = vadd.f32 %v4997, %v5096
      %v5147 = vadd.f32 %v5000, %v5099
      %v5148 = vadd.f32 %v5005, %v5104
      %v5149 = vadd.f32 %v5008, %v5107
      %v5150 = vadd.f32 %v5013, %v5112
      %v5151 = vadd.f32 %v5016, %v5115
      %v5152 = vadd.f32 %v5021, %v5120
      %v5153 = vadd.f32 %v5024, %v5123
      %v5154 = vadd.f32 %v5029, %v5128
      %v5155 = vadd.f32 %v5032, %v5131
      %v5156 = vadd.f32 %v5037, %v5136
      %v5157 = vadd.f32 %v5040, %v5139
      %v5158 = vadd.f32 %v5142, %v4325
      %v5159 = vadd.f32 %v5143, %v4325
      %v5160 = vadd.f32 %v5144, %v4325
      %v5161 = vadd.f32 %v5145, %v4325
      %v5162 = vadd.f32 %v5146, %v4325
      %v5163 = vadd.f32 %v5147, %v4325
      %v5164 = vadd.f32 %v5148, %v4325
      %v5165 = vadd.f32 %v5149, %v4325
      %v5166 = vadd.f32 %v5150, %v4325
      %v5167 = vadd.f32 %v5151, %v4325
      %v5168 = vadd.f32 %v5152, %v4325
      %v5169 = vadd.f32 %v5153, %v4325
      %v5170 = vadd.f32 %v5154, %v4325
      %v5171 = vadd.f32 %v5155, %v4325
      %v5172 = vadd.f32 %v5156, %v4325
      %v5173 = vadd.f32 %v5157, %v4325
      %v5174 = vsel %vm1356, %v5158, 0.0
      %v5175 = vsel %vm1356, %v5159, 0.0
      %v5176 = vadd.f32 %v5174, %v5175
      %v5177 = vsel %vm1356, %v5160, 0.0
      %v5178 = vadd.f32 %v5176, %v5177
      %v5179 = vsel %vm1356, %v5161, 0.0
      %v5180 = vadd.f32 %v5178, %v5179
      %v5181 = vsel %vm1356, %v5162, 0.0
      %v5182 = vadd.f32 %v5180, %v5181
      %v5183 = vsel %vm1356, %v5163, 0.0
      %v5184 = vadd.f32 %v5182, %v5183
      %v5185 = vsel %vm1356, %v5164, 0.0
      %v5186 = vadd.f32 %v5184, %v5185
      %v5187 = vsel %vm1356, %v5165, 0.0
      %v5188 = vadd.f32 %v5186, %v5187
      %v5189 = vsel %vm1356, %v5166, 0.0
      %v5190 = vadd.f32 %v5188, %v5189
      %v5191 = vsel %vm1356, %v5167, 0.0
      %v5192 = vadd.f32 %v5190, %v5191
      %v5193 = vsel %vm1356, %v5168, 0.0
      %v5194 = vadd.f32 %v5192, %v5193
      %v5195 = vsel %vm1356, %v5169, 0.0
      %v5196 = vadd.f32 %v5194, %v5195
      %v5197 = vsel %vm1356, %v5170, 0.0
      %v5198 = vadd.f32 %v5196, %v5197
      %v5199 = vsel %vm1356, %v5171, 0.0
      %v5200 = vadd.f32 %v5198, %v5199
      %v5201 = vsel %vm1356, %v5172, 0.0
      %v5202 = vadd.f32 %v5200, %v5201
      %v5203 = vsel %vm1356, %v5173, 0.0
      %v5204 = vadd.f32 %v5202, %v5203
      %v5205 = vrot.slane %v5204, 4
      %v5206 = vadd.f32 %v5204, %v5205
      %v5207 = vrot.slane %v5206, 2
      %v5208 = vadd.f32 %v5206, %v5207
      %v5209 = vrot.slane %v5208, 1
      %v5210 = vadd.f32 %v5208, %v5209
      %v5211 = vadd.f32 %v4380, %v5210
      %v5212 = vmul.f32 %v5158, %v5158
      %v5213 = vmul.f32 %v5159, %v5159
      %v5214 = vmul.f32 %v5160, %v5160
      %v5215 = vmul.f32 %v5161, %v5161
      %v5216 = vmul.f32 %v5162, %v5162
      %v5217 = vmul.f32 %v5163, %v5163
      %v5218 = vmul.f32 %v5164, %v5164
      %v5219 = vmul.f32 %v5165, %v5165
      %v5220 = vmul.f32 %v5166, %v5166
      %v5221 = vmul.f32 %v5167, %v5167
      %v5222 = vmul.f32 %v5168, %v5168
      %v5223 = vmul.f32 %v5169, %v5169
      %v5224 = vmul.f32 %v5170, %v5170
      %v5225 = vmul.f32 %v5171, %v5171
      %v5226 = vmul.f32 %v5172, %v5172
      %v5227 = vmul.f32 %v5173, %v5173
      %v5228 = vsel %vm1356, %v5212, 0.0
      %v5229 = vsel %vm1356, %v5213, 0.0
      %v5230 = vadd.f32 %v5228, %v5229
      %v5231 = vsel %vm1356, %v5214, 0.0
      %v5232 = vadd.f32 %v5230, %v5231
      %v5233 = vsel %vm1356, %v5215, 0.0
      %v5234 = vadd.f32 %v5232, %v5233
      %v5235 = vsel %vm1356, %v5216, 0.0
      %v5236 = vadd.f32 %v5234, %v5235
      %v5237 = vsel %vm1356, %v5217, 0.0
      %v5238 = vadd.f32 %v5236, %v5237
      %v5239 = vsel %vm1356, %v5218, 0.0
      %v5240 = vadd.f32 %v5238, %v5239
      %v5241 = vsel %vm1356, %v5219, 0.0
      %v5242 = vadd.f32 %v5240, %v5241
      %v5243 = vsel %vm1356, %v5220, 0.0
      %v5244 = vadd.f32 %v5242, %v5243
      %v5245 = vsel %vm1356, %v5221, 0.0
      %v5246 = vadd.f32 %v5244, %v5245
      %v5247 = vsel %vm1356, %v5222, 0.0
      %v5248 = vadd.f32 %v5246, %v5247
      %v5249 = vsel %vm1356, %v5223, 0.0
      %v5250 = vadd.f32 %v5248, %v5249
      %v5251 = vsel %vm1356, %v5224, 0.0
      %v5252 = vadd.f32 %v5250, %v5251
      %v5253 = vsel %vm1356, %v5225, 0.0
      %v5254 = vadd.f32 %v5252, %v5253
      %v5255 = vsel %vm1356, %v5226, 0.0
      %v5256 = vadd.f32 %v5254, %v5255
      %v5257 = vsel %vm1356, %v5227, 0.0
      %v5258 = vadd.f32 %v5256, %v5257
      %v5259 = vrot.slane %v5258, 4
      %v5260 = vadd.f32 %v5258, %v5259
      %v5261 = vrot.slane %v5260, 2
      %v5262 = vadd.f32 %v5260, %v5261
      %v5263 = vrot.slane %v5262, 1
      %v5264 = vadd.f32 %v5262, %v5263
      %v5265 = vadd.f32 %v4434, %v5264
      %5266 = vst.msk [vmem:[%s2697] sm:$0xff] %vm1356, %v5158
      %5267 = vst.msk [vmem:[%s2697 + $0x8] sm:$0xff] %vm1356, %v5159
      %5268 = vst.msk [vmem:[%s2697 + $0x10] sm:$0xff] %vm1356, %v5160
      %5269 = vst.msk [vmem:[%s2697 + $0x18] sm:$0xff] %vm1356, %v5161
      %5270 = vst.msk [vmem:[%s2697 + $0x20] sm:$0xff] %vm1356, %v5162
      %5271 = vst.msk [vmem:[%s2697 + $0x28] sm:$0xff] %vm1356, %v5163
      %5272 = vst.msk [vmem:[%s2697 + $0x30] sm:$0xff] %vm1356, %v5164
      %5273 = vst.msk [vmem:[%s2697 + $0x38] sm:$0xff] %vm1356, %v5165
      %5274 = vst.msk [vmem:[%s2697 + $0x40] sm:$0xff] %vm1356, %v5166
      %5275 = vst.msk [vmem:[%s2697 + $0x48] sm:$0xff] %vm1356, %v5167
      %5276 = vst.msk [vmem:[%s2697 + $0x50] sm:$0xff] %vm1356, %v5168
      %5277 = vst.msk [vmem:[%s2697 + $0x58] sm:$0xff] %vm1356, %v5169
      %5278 = vst.msk [vmem:[%s2697 + $0x60] sm:$0xff] %vm1356, %v5170
      %5279 = vst.msk [vmem:[%s2697 + $0x68] sm:$0xff] %vm1356, %v5171
      %5280 = vst.msk [vmem:[%s2697 + $0x70] sm:$0xff] %vm1356, %v5172
      %5281 = vst.msk [vmem:[%s2697 + $0x78] sm:$0xff] %vm1356, %v5173
      %v5282 = vmul.f32 %v5211, 0.00390625
      %v5283 = vmul.f32 %v5265, 0.00390625
      %v5284 = vmul.f32 %v5282, %v5282
      %v5285 = vsub.f32 %v5283, %v5284
      %v5286 = vmax.f32 %v5285, 0.0
      %v5287 = vadd.f32 %v5286, 1e-05
      %v5288 = vrsqrt.pop %v5287
      %v5289 = vld [vmem:[#allocation3] sm:$0xff]
      %v5290 = vld [vmem:[#allocation3 + $0x8] sm:$0xff]
      %v5291 = vld [vmem:[#allocation3 + $0x10] sm:$0xff]
      %v5292 = vld [vmem:[#allocation3 + $0x18] sm:$0xff]
      %v5293 = vld [vmem:[#allocation3 + $0x20] sm:$0xff]
      %v5294 = vld [vmem:[#allocation3 + $0x28] sm:$0xff]
      %v5295 = vld [vmem:[#allocation3 + $0x30] sm:$0xff]
      %v5296 = vld [vmem:[#allocation3 + $0x38] sm:$0xff]
      %v5297 = vld [vmem:[#allocation3 + $0x40] sm:$0xff]
      %v5298 = vld [vmem:[#allocation3 + $0x48] sm:$0xff]
      %v5299 = vld [vmem:[#allocation3 + $0x50] sm:$0xff]
      %v5300 = vld [vmem:[#allocation3 + $0x58] sm:$0xff]
      %v5301 = vld [vmem:[#allocation3 + $0x60] sm:$0xff]
      %v5302 = vld [vmem:[#allocation3 + $0x68] sm:$0xff]
      %v5303 = vld [vmem:[#allocation3 + $0x70] sm:$0xff]
      %v5304 = vld [vmem:[#allocation3 + $0x78] sm:$0xff]
      %v5305 = vld [vmem:[#allocation3 + $0x80] sm:$0xff]
      %v5306 = vld [vmem:[#allocation3 + $0x88] sm:$0xff]
      %v5307 = vld [vmem:[#allocation3 + $0x90] sm:$0xff]
      %v5308 = vld [vmem:[#allocation3 + $0x98] sm:$0xff]
      %v5309 = vld [vmem:[#allocation3 + $0xa0] sm:$0xff]
      %v5310 = vld [vmem:[#allocation3 + $0xa8] sm:$0xff]
      %v5311 = vld [vmem:[#allocation3 + $0xb0] sm:$0xff]
      %v5312 = vld [vmem:[#allocation3 + $0xb8] sm:$0xff]
      %v5313 = vld [vmem:[#allocation3 + $0xc0] sm:$0xff]
      %v5314 = vld [vmem:[#allocation3 + $0xc8] sm:$0xff]
      %v5315 = vld [vmem:[#allocation3 + $0xd0] sm:$0xff]
      %v5316 = vld [vmem:[#allocation3 + $0xd8] sm:$0xff]
      %v5317 = vld [vmem:[#allocation3 + $0xe0] sm:$0xff]
      %v5318 = vld [vmem:[#allocation3 + $0xe8] sm:$0xff]
      %v5319 = vld [vmem:[#allocation3 + $0xf0] sm:$0xff]
      %v5320 = vld [vmem:[#allocation3 + $0xf8] sm:$0xff]
      %v5321 = vsub.f32 %v5289, %v5282
      %v5322 = vsub.f32 %v5290, %v5282
      %v5323 = vsub.f32 %v5291, %v5282
      %v5324 = vsub.f32 %v5292, %v5282
      %v5325 = vsub.f32 %v5293, %v5282
      %v5326 = vsub.f32 %v5294, %v5282
      %v5327 = vsub.f32 %v5295, %v5282
      %v5328 = vsub.f32 %v5296, %v5282
      %v5329 = vsub.f32 %v5297, %v5282
      %v5330 = vsub.f32 %v5298, %v5282
      %v5331 = vsub.f32 %v5299, %v5282
      %v5332 = vsub.f32 %v5300, %v5282
      %v5333 = vsub.f32 %v5301, %v5282
      %v5334 = vsub.f32 %v5302, %v5282
      %v5335 = vsub.f32 %v5303, %v5282
      %v5336 = vsub.f32 %v5304, %v5282
      %v5337 = vsub.f32 %v5305, %v5282
      %v5338 = vsub.f32 %v5306, %v5282
      %v5339 = vsub.f32 %v5307, %v5282
      %v5340 = vsub.f32 %v5308, %v5282
      %v5341 = vsub.f32 %v5309, %v5282
      %v5342 = vsub.f32 %v5310, %v5282
      %v5343 = vsub.f32 %v5311, %v5282
      %v5344 = vsub.f32 %v5312, %v5282
      %v5345 = vsub.f32 %v5313, %v5282
      %v5346 = vsub.f32 %v5314, %v5282
      %v5347 = vsub.f32 %v5315, %v5282
      %v5348 = vsub.f32 %v5316, %v5282
      %v5349 = vsub.f32 %v5317, %v5282
      %v5350 = vsub.f32 %v5318, %v5282
      %v5351 = vsub.f32 %v5319, %v5282
      %v5352 = vsub.f32 %v5320, %v5282
      %v5353 = vmul.f32 %v5321, %v5288
      %v5354 = vmul.f32 %v5322, %v5288
      %v5355 = vmul.f32 %v5323, %v5288
      %v5356 = vmul.f32 %v5324, %v5288
      %v5357 = vmul.f32 %v5325, %v5288
      %v5358 = vmul.f32 %v5326, %v5288
      %v5359 = vmul.f32 %v5327, %v5288
      %v5360 = vmul.f32 %v5328, %v5288
      %v5361 = vmul.f32 %v5329, %v5288
      %v5362 = vmul.f32 %v5330, %v5288
      %v5363 = vmul.f32 %v5331, %v5288
      %v5364 = vmul.f32 %v5332, %v5288
      %v5365 = vmul.f32 %v5333, %v5288
      %v5366 = vmul.f32 %v5334, %v5288
      %v5367 = vmul.f32 %v5335, %v5288
      %v5368 = vmul.f32 %v5336, %v5288
      %v5369 = vmul.f32 %v5337, %v5288
      %v5370 = vmul.f32 %v5338, %v5288
      %v5371 = vmul.f32 %v5339, %v5288
      %v5372 = vmul.f32 %v5340, %v5288
      %v5373 = vmul.f32 %v5341, %v5288
      %v5374 = vmul.f32 %v5342, %v5288
      %v5375 = vmul.f32 %v5343, %v5288
      %v5376 = vmul.f32 %v5344, %v5288
      %v5377 = vmul.f32 %v5345, %v5288
      %v5378 = vmul.f32 %v5346, %v5288
      %v5379 = vmul.f32 %v5347, %v5288
      %v5380 = vmul.f32 %v5348, %v5288
      %v5381 = vmul.f32 %v5349, %v5288
      %v5382 = vmul.f32 %v5350, %v5288
      %v5383 = vmul.f32 %v5351, %v5288
      %v5384 = vmul.f32 %v5352, %v5288
      %v5385 = vadd.f32 %v226, %v5353
      %v5386 = vadd.f32 %v227, %v5354
      %v5387 = vadd.f32 %v228, %v5355
      %v5388 = vadd.f32 %v229, %v5356
      %v5389 = vadd.f32 %v230, %v5357
      %v5390 = vadd.f32 %v231, %v5358
      %v5391 = vadd.f32 %v232, %v5359
      %v5392 = vadd.f32 %v233, %v5360
      %v5393 = vadd.f32 %v234, %v5361
      %v5394 = vadd.f32 %v235, %v5362
      %v5395 = vadd.f32 %v236, %v5363
      %v5396 = vadd.f32 %v237, %v5364
      %v5397 = vadd.f32 %v238, %v5365
      %v5398 = vadd.f32 %v239, %v5366
      %v5399 = vadd.f32 %v240, %v5367
      %v5400 = vadd.f32 %v241, %v5368
      %v5401 = vadd.f32 %v242, %v5369
      %v5402 = vadd.f32 %v243, %v5370
      %v5403 = vadd.f32 %v244, %v5371
      %v5404 = vadd.f32 %v245, %v5372
      %v5405 = vadd.f32 %v246, %v5373
      %v5406 = vadd.f32 %v247, %v5374
      %v5407 = vadd.f32 %v248, %v5375
      %v5408 = vadd.f32 %v249, %v5376
      %v5409 = vadd.f32 %v250, %v5377
      %v5410 = vadd.f32 %v251, %v5378
      %v5411 = vadd.f32 %v252, %v5379
      %v5412 = vadd.f32 %v253, %v5380
      %v5413 = vadd.f32 %v254, %v5381
      %v5414 = vadd.f32 %v255, %v5382
      %v5415 = vadd.f32 %v256, %v5383
      %v5416 = vadd.f32 %v257, %v5384
      %5417 = vst.msk [vmem:[%s224] sm:$0xff] %vm1356, %v5385
      %5418 = vst.msk [vmem:[%s224 + $0x8] sm:$0xff] %vm1356, %v5386
      %5419 = vst.msk [vmem:[%s224 + $0x10] sm:$0xff] %vm1356, %v5387
      %5420 = vst.msk [vmem:[%s224 + $0x18] sm:$0xff] %vm1356, %v5388
      %5421 = vst.msk [vmem:[%s224 + $0x20] sm:$0xff] %vm1356, %v5389
      %5422 = vst.msk [vmem:[%s224 + $0x28] sm:$0xff] %vm1356, %v5390
      %5423 = vst.msk [vmem:[%s224 + $0x30] sm:$0xff] %vm1356, %v5391
      %5424 = vst.msk [vmem:[%s224 + $0x38] sm:$0xff] %vm1356, %v5392
      %5425 = vst.msk [vmem:[%s224 + $0x40] sm:$0xff] %vm1356, %v5393
      %5426 = vst.msk [vmem:[%s224 + $0x48] sm:$0xff] %vm1356, %v5394
      %5427 = vst.msk [vmem:[%s224 + $0x50] sm:$0xff] %vm1356, %v5395
      %5428 = vst.msk [vmem:[%s224 + $0x58] sm:$0xff] %vm1356, %v5396
      %5429 = vst.msk [vmem:[%s224 + $0x60] sm:$0xff] %vm1356, %v5397
      %5430 = vst.msk [vmem:[%s224 + $0x68] sm:$0xff] %vm1356, %v5398
      %5431 = vst.msk [vmem:[%s224 + $0x70] sm:$0xff] %vm1356, %v5399
      %5432 = vst.msk [vmem:[%s224 + $0x78] sm:$0xff] %vm1356, %v5400
      %5433 = vst.msk [vmem:[%s224 + $0x80] sm:$0xff] %vm1356, %v5401
      %5434 = vst.msk [vmem:[%s224 + $0x88] sm:$0xff] %vm1356, %v5402
      %5435 = vst.msk [vmem:[%s224 + $0x90] sm:$0xff] %vm1356, %v5403
      %5436 = vst.msk [vmem:[%s224 + $0x98] sm:$0xff] %vm1356, %v5404
      %5437 = vst.msk [vmem:[%s224 + $0xa0] sm:$0xff] %vm1356, %v5405
      %5438 = vst.msk [vmem:[%s224 + $0xa8] sm:$0xff] %vm1356, %v5406
      %5439 = vst.msk [vmem:[%s224 + $0xb0] sm:$0xff] %vm1356, %v5407
      %5440 = vst.msk [vmem:[%s224 + $0xb8] sm:$0xff] %vm1356, %v5408
      %5441 = vst.msk [vmem:[%s224 + $0xc0] sm:$0xff] %vm1356, %v5409
      %5442 = vst.msk [vmem:[%s224 + $0xc8] sm:$0xff] %vm1356, %v5410
      %5443 = vst.msk [vmem:[%s224 + $0xd0] sm:$0xff] %vm1356, %v5411
      %5444 = vst.msk [vmem:[%s224 + $0xd8] sm:$0xff] %vm1356, %v5412
      %5445 = vst.msk [vmem:[%s224 + $0xe0] sm:$0xff] %vm1356, %v5413
      %5446 = vst.msk [vmem:[%s224 + $0xe8] sm:$0xff] %vm1356, %v5414
      %5447 = vst.msk [vmem:[%s224 + $0xf0] sm:$0xff] %vm1356, %v5415
      %5448 = vst.msk [vmem:[%s224 + $0xf8] sm:$0xff] %vm1356, %v5416
      %p5449 = scmp.lt.s32.totalorder %s16, 1
      %s5450 = scalar_select %p5449, %s16, 1
      %s5451 = smul.addr %s5450, 32
      %s5452 = smul.addr %s5451, 8
      %s5453 = scalar_lea.vmem %s5, %s5452
      // Predicated region
      $region41: #{tpu_custom_call.1} parent=39 // pred_check
        %p5454 = pneg %p144
      $region42: #{tpu_custom_call.1} parent=39 // pred_check_branch
        %5456 = sbr.rel (%p5454) target = $region44
      $region43: #{tpu_custom_call.1} parent=39 // pred_region
        _
      $region44: #{tpu_custom_call.1} parent=39 // pred_fallthru
        _
    $region40: #{tpu_custom_call.1} parent=5 // pred_fallthru
      _
    %p5457 = scmp.le.s32.totalorder 2, %s11
    // Predicated region
    $region45: #{tpu_custom_call.1} parent=5 // pred_check
      %p5458 = pneg %p5457
    $region46: #{tpu_custom_call.1} parent=5 // pred_check_branch
      %5460 = sbr.rel (%p5458) target = $region48
    $region47: #{tpu_custom_call.1} parent=5 // pred_region
      %s5461 = ssub.s32 %s11, 2
      // Predicated region
      $region49: #{tpu_custom_call.1} parent=47 // pred_check
        %p5462 = pneg %p150
      $region50: #{tpu_custom_call.1} parent=47 // pred_check_branch
        %5464 = sbr.rel (%p5462) target = $region52
      $region51: #{tpu_custom_call.1} parent=47 // pred_region
        %p5465 = scmp.lt.s32.totalorder %s17, 1
        %s5466 = scalar_select %p5465, %s17, 1
        %s5467 = smul.addr %s5466, 32
        %s5468 = smul.addr %s5467, 8
        %s5469 = scalar_lea.vmem %s5, %s5468
      $region52: #{tpu_custom_call.1} parent=47 // pred_fallthru
        _
    $region48: #{tpu_custom_call.1} parent=5 // pred_fallthru
      _
  $region6: #{tpu_custom_call.1} parent=0 // loop_footer
    %s15 = sadd.s32 1, %s11
  $region7: #{tpu_custom_call.1} parent=0 // loop_footer_branch
    %10 = sbr.rel target = $region3
  $region8: #{tpu_custom_call.1} parent=0 // loop_exit
    _

</llo_original>
